<compile_context>
chip_gen: v6e
topology: v6e:2x2x1
jax: 0.10.0
libtpu: 0.0.40
codegen_flags: <defaults>
</compile_context>

<pallas_src>
import jax
import jax.numpy as jnp
from jax import lax
from jax.experimental import pallas as pl
from jax.experimental.pallas import tpu as pltpu

LANES = 128  # pad every "output channel / feature" axis to a full vreg lane dim


def _pad_last(a, n):
    pad = [(0, 0)] * (a.ndim - 1) + [(0, n - a.shape[-1])]
    return jnp.pad(a, pad)


# ----------------------------- Pallas kernels ------------------------------

def _conv_pool_relu_kernel(a00, a01, a10, a11, w_ref, b_ref, o_ref):
    """Fused conv (as im2col matmul) + bias + 2x2 max-pool + ReLU.

    a00..a11 are the im2col matrices of the four 2x2 pool taps
    (shape (B*Ho/2*Wo/2, C*k*k)); pooling = elementwise max of the four
    matmul results, done while the tiles are still in VMEM.
    """
    w = w_ref[...]
    m = jnp.dot(a00[...], w, preferred_element_type=jnp.float32)
    m = jnp.maximum(m, jnp.dot(a01[...], w, preferred_element_type=jnp.float32))
    m = jnp.maximum(m, jnp.dot(a10[...], w, preferred_element_type=jnp.float32))
    m = jnp.maximum(m, jnp.dot(a11[...], w, preferred_element_type=jnp.float32))
    # bias is per-output-channel, so it commutes with the spatial max;
    # a single ReLU replaces relu(maxpool(relu(.))) (they commute).
    o_ref[...] = jnp.maximum(m + b_ref[...], 0.0)


def conv_pool_relu(cols4, w_pad, b_pad):
    m_rows = cols4[0].shape[0]
    return pl.pallas_call(
        _conv_pool_relu_kernel,
        out_shape=jax.ShapeDtypeStruct((m_rows, LANES), jnp.float32),
    )(*cols4, w_pad, b_pad)


def _bernoulli_half(seed, salt, shape):
    """Deterministic counter-based Bernoulli(0.5) mask in {0., 1.} (int32 hash).

    Avoids pltpu.prng_* so the kernel lowers both on TPU (Mosaic) and in
    interpret mode.  lowbias32-style avalanche; int32 arithmetic wraps.
    """
    r = lax.broadcasted_iota(jnp.int32, shape, 0)
    c = lax.broadcasted_iota(jnp.int32, shape, 1)
    x = r * jnp.int32(shape[1]) + c
    x = x + seed * jnp.int32(1664525) + jnp.int32(salt) * jnp.int32(1013904223)
    sh = jnp.int32(16)
    mc = jnp.int32(0x45D9F3B)
    x = (lax.shift_right_logical(x, sh) ^ x) * mc
    x = (lax.shift_right_logical(x, sh) ^ x) * mc
    x = lax.shift_right_logical(x, sh) ^ x
    return (x & jnp.int32(1)).astype(jnp.float32)


def _fc_head_kernel(seed_ref, x_ref, w1, b1, w2, b2, w3, b3, o_ref):
    """Fused fc1 + ReLU + dropout + fc2 + ReLU + dropout + fc3 (MC dropout on)."""
    seed = seed_ref[0]
    h = jnp.dot(x_ref[...], w1[...], preferred_element_type=jnp.float32) + b1[...]
    h = jnp.maximum(h, 0.0)
    h = h * _bernoulli_half(seed, 1, h.shape) * 2.0        # dropout p=0.5, scale 1/(1-p)
    h = jnp.dot(h, w2[...], preferred_element_type=jnp.float32) + b2[...]
    h = jnp.maximum(h, 0.0)
    h = h * _bernoulli_half(seed, 2, h.shape) * 2.0
    o_ref[...] = jnp.dot(h, w3[...], preferred_element_type=jnp.float32) + b3[...]


def fc_head(x_flat, w1, b1, w2, b2, w3, b3, seed):
    B = x_flat.shape[0]
    vmem = pl.BlockSpec(memory_space=pltpu.MemorySpace.VMEM)
    smem = pl.BlockSpec(memory_space=pltpu.MemorySpace.SMEM)
    seed_arr = jnp.full((1,), seed, dtype=jnp.int32)
    return pl.pallas_call(
        _fc_head_kernel,
        out_shape=jax.ShapeDtypeStruct((B, LANES), jnp.float32),
        in_specs=[smem] + [vmem] * 7,
        out_specs=vmem,
    )(seed_arr, x_flat, w1, b1, w2, b2, w3, b3)


# ------------------------------- JAX glue ----------------------------------

def _im2col_pooled(x_nhwc, k, pad):
    """Build four im2col matrices (one per 2x2 pool tap), K ordered (C, kh, kw).

    Returns [cols_00, cols_01, cols_10, cols_11], each (B*Ho/2*Wo/2, C*k*k).
    NHWC input so no transpose is needed after stacking the taps.
    """
    B, H, W, C = x_nhwc.shape
    xp = jnp.pad(x_nhwc, ((0, 0), (pad, pad), (pad, pad), (0, 0)))
    Ho = H + 2 * pad - k + 1
    Wo = W + 2 * pad - k + 1
    Hp2, Wp2 = Ho // 2, Wo // 2
    cols = []
    for dy in range(2):
        for dx in range(2):
            taps = []
            for i in range(k):
                for j in range(k):
                    taps.append(xp[:, dy + i: dy + i + 2 * Hp2: 2,
                                      dx + j: dx + j + 2 * Wp2: 2, :])
            t = jnp.stack(taps, axis=-1)                 # (B, Hp2, Wp2, C, k*k)
            cols.append(t.reshape(B * Hp2 * Wp2, C * k * k))
    return cols, Hp2, Wp2


def init_params():
    """Deterministic parameter init (PyTorch-style uniform(-1/sqrt(fan_in)))."""
    key = jax.random.PRNGKey(42)
    ks = jax.random.split(key, 10)

    def unif(k, shape, fan_in):
        bound = 1.0 / jnp.sqrt(float(fan_in))
        return jax.random.uniform(k, shape, jnp.float32, -bound, bound)

    return {
        "conv1_w": unif(ks[0], (6, 1, 5, 5), 1 * 5 * 5),
        "conv1_b": unif(ks[1], (6,), 1 * 5 * 5),
        "conv2_w": unif(ks[2], (16, 6, 5, 5), 6 * 5 * 5),
        "conv2_b": unif(ks[3], (16,), 6 * 5 * 5),
        "fc1_w": unif(ks[4], (120, 400), 400),   # PyTorch Linear layout (out, in)
        "fc1_b": unif(ks[5], (120,), 400),
        "fc2_w": unif(ks[6], (84, 120), 120),
        "fc2_b": unif(ks[7], (84,), 120),
        "fc3_w": unif(ks[8], (10, 84), 84),
        "fc3_b": unif(ks[9], (10,), 84),
    }


def prepare_params(p):
    """One-time repack: transpose, reorder and zero-pad all weights to 128 lanes."""
    def conv_pack(w, b):
        O, C, k, _ = w.shape
        wm = _pad_last(jnp.transpose(w.reshape(O, C * k * k)), LANES)   # (C*k*k, 128)
        return wm, _pad_last(b.reshape(1, O), LANES)

    c1w, c1b = conv_pack(p["conv1_w"], p["conv1_b"])
    c2w, c2b = conv_pack(p["conv2_w"], p["conv2_b"])

    # fc1: remap torch's (c, y, x) flatten order to the kernel's
    # (y, x, c-padded-to-128) order so the conv2 output can be fed as a pure
    # reshape (lanes stay dense, no channel slicing before the FC head).
    w1 = p["fc1_w"].reshape(120, 16, 5, 5).transpose(0, 2, 3, 1)        # (O, y, x, c)
    w1 = jnp.pad(w1, ((0, 0), (0, 0), (0, 0), (0, LANES - 16)))         # (O, 5, 5, 128)
    w1 = _pad_last(jnp.transpose(w1.reshape(120, 5 * 5 * LANES)), LANES)  # (3200, 128)
    b1 = _pad_last(p["fc1_b"].reshape(1, 120), LANES)

    w2 = jnp.pad(jnp.transpose(p["fc2_w"]), ((0, LANES - 120), (0, LANES - 84)))
    b2 = _pad_last(p["fc2_b"].reshape(1, 84), LANES)
    w3 = jnp.pad(jnp.transpose(p["fc3_w"]), ((0, LANES - 84), (0, LANES - 10)))
    b3 = _pad_last(p["fc3_b"].reshape(1, 10), LANES)

    return {"c1w": c1w, "c1b": c1b, "c2w": c2w, "c2b": c2b,
            "w1": w1, "b1": b1, "w2": w2, "b2": b2, "w3": w3, "b3": b3}


def lenet5_mcdropout_forward(packed, x, seed=0):
    """x: (B, 1, 28, 28) float32 NCHW.  Returns logits (B, 10)."""
    B = x.shape[0]
    x = jnp.transpose(x, (0, 2, 3, 1))                                  # NCHW -> NHWC

    # conv1 (5x5, pad=2) + ReLU + 2x2 maxpool + ReLU  -> (B*14*14, 128), 6 valid lanes
    cols, Hp2, Wp2 = _im2col_pooled(x, k=5, pad=2)
    h = conv_pool_relu(cols, packed["c1w"], packed["c1b"])
    h = h.reshape(B, Hp2, Wp2, LANES)[:, :, :, :6]                      # NHWC, 6 channels

    # conv2 (5x5, pad=0) + ReLU + 2x2 maxpool + ReLU  -> (B*5*5, 128), 16 valid lanes
    cols, Hp2, Wp2 = _im2col_pooled(h, k=5, pad=0)
    h = conv_pool_relu(cols, packed["c2w"], packed["c2b"])

    # flatten (pure reshape — padded lanes stay, fc1 weight rows for them are 0)
    h = h.reshape(B, Hp2 * Wp2 * LANES)                                 # (B, 3200)

    # fused FC head: fc1 + ReLU + dropout + fc2 + ReLU + dropout + fc3
    out = fc_head(h, packed["w1"], packed["b1"], packed["w2"], packed["b2"],
                  packed["w3"], packed["b3"], seed)                     # (B, 128)
    return out[:, :10]


if __name__ == "__main__":
    params = prepare_params(init_params())
    # fc1 expects 16*5*5 = 400 features, which pins the input to (B, 1, 28, 28).
    x = jax.random.normal(jax.random.PRNGKey(0), (2, 1, 28, 28), jnp.float32)
    fwd = jax.jit(lenet5_mcdropout_forward)
    out = fwd(params, x, jnp.int32(0))
    out = jax.block_until_ready(out)
    assert out.shape == (2, 10) and out.dtype == jnp.float32
    print("KERNEL_OK")
</pallas_src>

<mosaic_0001>
module attributes {stable_mosaic.version = 11 : i64} {
  func.func @_conv_pool_relu_kernel(%arg0: memref<392x25xf32, #tpu.memory_space<vmem>>, %arg1: memref<392x25xf32, #tpu.memory_space<vmem>>, %arg2: memref<392x25xf32, #tpu.memory_space<vmem>>, %arg3: memref<392x25xf32, #tpu.memory_space<vmem>>, %arg4: memref<25x128xf32, #tpu.memory_space<vmem>>, %arg5: memref<1x128xf32, #tpu.memory_space<vmem>>, %arg6: memref<392x128xf32, #tpu.memory_space<vmem>>) attributes {dimension_semantics = [], scalar_prefetch = 0 : i64, scratch_operands = 0 : i64, tpu.core_type = #tpu.core_type<tc>} {
    %c0 = arith.constant 0 : index
    %c0_0 = arith.constant 0 : index
    %0 = vector.load %arg4[%c0, %c0_0] : memref<25x128xf32, #tpu.memory_space<vmem>>, vector<25x128xf32>
    %c0_1 = arith.constant 0 : index
    %c0_2 = arith.constant 0 : index
    %1 = vector.load %arg0[%c0_1, %c0_2] : memref<392x25xf32, #tpu.memory_space<vmem>>, vector<392x25xf32>
    %cst = arith.constant dense<0.000000e+00> : vector<392x128xf32>
    %2 = tpu.matmul %1, %0, %cst {dimension_numbers = #tpu.dot_dimension_numbers<[1], [0], [0], [1], [0, 0, 1, 1], [], []>} : vector<392x25xf32>, vector<25x128xf32>, vector<392x128xf32> -> vector<392x128xf32>
    %c0_3 = arith.constant 0 : index
    %c0_4 = arith.constant 0 : index
    %3 = vector.load %arg1[%c0_3, %c0_4] : memref<392x25xf32, #tpu.memory_space<vmem>>, vector<392x25xf32>
    %cst_5 = arith.constant dense<0.000000e+00> : vector<392x128xf32>
    %4 = tpu.matmul %3, %0, %cst_5 {dimension_numbers = #tpu.dot_dimension_numbers<[1], [0], [0], [1], [0, 0, 1, 1], [], []>} : vector<392x25xf32>, vector<25x128xf32>, vector<392x128xf32> -> vector<392x128xf32>
    %5 = arith.maximumf %2, %4 : vector<392x128xf32>
    %c0_6 = arith.constant 0 : index
    %c0_7 = arith.constant 0 : index
    %6 = vector.load %arg2[%c0_6, %c0_7] : memref<392x25xf32, #tpu.memory_space<vmem>>, vector<392x25xf32>
    %cst_8 = arith.constant dense<0.000000e+00> : vector<392x128xf32>
    %7 = tpu.matmul %6, %0, %cst_8 {dimension_numbers = #tpu.dot_dimension_numbers<[1], [0], [0], [1], [0, 0, 1, 1], [], []>} : vector<392x25xf32>, vector<25x128xf32>, vector<392x128xf32> -> vector<392x128xf32>
    %8 = arith.maximumf %5, %7 : vector<392x128xf32>
    %c0_9 = arith.constant 0 : index
    %c0_10 = arith.constant 0 : index
    %9 = vector.load %arg3[%c0_9, %c0_10] : memref<392x25xf32, #tpu.memory_space<vmem>>, vector<392x25xf32>
    %cst_11 = arith.constant dense<0.000000e+00> : vector<392x128xf32>
    %10 = tpu.matmul %9, %0, %cst_11 {dimension_numbers = #tpu.dot_dimension_numbers<[1], [0], [0], [1], [0, 0, 1, 1], [], []>} : vector<392x25xf32>, vector<25x128xf32>, vector<392x128xf32> -> vector<392x128xf32>
    %11 = arith.maximumf %8, %10 : vector<392x128xf32>
    %c0_12 = arith.constant 0 : index
    %c0_13 = arith.constant 0 : index
    %12 = vector.load %arg5[%c0_12, %c0_13] : memref<1x128xf32, #tpu.memory_space<vmem>>, vector<1x128xf32>
    %13 = vector.broadcast %12 : vector<1x128xf32> to vector<392x128xf32>
    %14 = arith.addf %11, %13 : vector<392x128xf32>
    %cst_14 = arith.constant 0.000000e+00 : f32
    %15 = vector.broadcast %cst_14 : f32 to vector<392x128xf32>
    %16 = arith.maximumf %14, %15 : vector<392x128xf32>
    %c0_15 = arith.constant 0 : index
    %c0_16 = arith.constant 0 : index
    %17 = vector.load %arg6[%c0_15, %c0_16] : memref<392x128xf32, #tpu.memory_space<vmem>>, vector<392x128xf32>
    tpu.vector_store %arg6[%c0_15, %c0_16], %16 {strides = array<i32>} : memref<392x128xf32, #tpu.memory_space<vmem>>, vector<392x128xf32>,
    return
  }
}

module attributes {stable_mosaic.version = 11 : i64} {
  func.func @_conv_pool_relu_kernel(%arg0: memref<50x150xf32, #tpu.memory_space<vmem>>, %arg1: memref<50x150xf32, #tpu.memory_space<vmem>>, %arg2: memref<50x150xf32, #tpu.memory_space<vmem>>, %arg3: memref<50x150xf32, #tpu.memory_space<vmem>>, %arg4: memref<150x128xf32, #tpu.memory_space<vmem>>, %arg5: memref<1x128xf32, #tpu.memory_space<vmem>>, %arg6: memref<50x128xf32, #tpu.memory_space<vmem>>) attributes {dimension_semantics = [], scalar_prefetch = 0 : i64, scratch_operands = 0 : i64, tpu.core_type = #tpu.core_type<tc>} {
    %c0 = arith.constant 0 : index
    %c0_0 = arith.constant 0 : index
    %0 = vector.load %arg4[%c0, %c0_0] : memref<150x128xf32, #tpu.memory_space<vmem>>, vector<150x128xf32>
    %c0_1 = arith.constant 0 : index
    %c0_2 = arith.constant 0 : index
    %1 = vector.load %arg0[%c0_1, %c0_2] : memref<50x150xf32, #tpu.memory_space<vmem>>, vector<50x150xf32>
    %cst = arith.constant dense<0.000000e+00> : vector<50x128xf32>
    %2 = tpu.matmul %1, %0, %cst {dimension_numbers = #tpu.dot_dimension_numbers<[1], [0], [0], [1], [0, 0, 1, 1], [], []>} : vector<50x150xf32>, vector<150x128xf32>, vector<50x128xf32> -> vector<50x128xf32>
    %c0_3 = arith.constant 0 : index
    %c0_4 = arith.constant 0 : index
    %3 = vector.load %arg1[%c0_3, %c0_4] : memref<50x150xf32, #tpu.memory_space<vmem>>, vector<50x150xf32>
    %cst_5 = arith.constant dense<0.000000e+00> : vector<50x128xf32>
    %4 = tpu.matmul %3, %0, %cst_5 {dimension_numbers = #tpu.dot_dimension_numbers<[1], [0], [0], [1], [0, 0, 1, 1], [], []>} : vector<50x150xf32>, vector<150x128xf32>, vector<50x128xf32> -> vector<50x128xf32>
    %5 = arith.maximumf %2, %4 : vector<50x128xf32>
    %c0_6 = arith.constant 0 : index
    %c0_7 = arith.constant 0 : index
    %6 = vector.load %arg2[%c0_6, %c0_7] : memref<50x150xf32, #tpu.memory_space<vmem>>, vector<50x150xf32>
    %cst_8 = arith.constant dense<0.000000e+00> : vector<50x128xf32>
    %7 = tpu.matmul %6, %0, %cst_8 {dimension_numbers = #tpu.dot_dimension_numbers<[1], [0], [0], [1], [0, 0, 1, 1], [], []>} : vector<50x150xf32>, vector<150x128xf32>, vector<50x128xf32> -> vector<50x128xf32>
    %8 = arith.maximumf %5, %7 : vector<50x128xf32>
    %c0_9 = arith.constant 0 : index
    %c0_10 = arith.constant 0 : index
    %9 = vector.load %arg3[%c0_9, %c0_10] : memref<50x150xf32, #tpu.memory_space<vmem>>, vector<50x150xf32>
    %cst_11 = arith.constant dense<0.000000e+00> : vector<50x128xf32>
    %10 = tpu.matmul %9, %0, %cst_11 {dimension_numbers = #tpu.dot_dimension_numbers<[1], [0], [0], [1], [0, 0, 1, 1], [], []>} : vector<50x150xf32>, vector<150x128xf32>, vector<50x128xf32> -> vector<50x128xf32>
    %11 = arith.maximumf %8, %10 : vector<50x128xf32>
    %c0_12 = arith.constant 0 : index
    %c0_13 = arith.constant 0 : index
    %12 = vector.load %arg5[%c0_12, %c0_13] : memref<1x128xf32, #tpu.memory_space<vmem>>, vector<1x128xf32>
    %13 = vector.broadcast %12 : vector<1x128xf32> to vector<50x128xf32>
    %14 = arith.addf %11, %13 : vector<50x128xf32>
    %cst_14 = arith.constant 0.000000e+00 : f32
    %15 = vector.broadcast %cst_14 : f32 to vector<50x128xf32>
    %16 = arith.maximumf %14, %15 : vector<50x128xf32>
    %c0_15 = arith.constant 0 : index
    %c0_16 = arith.constant 0 : index
    %17 = vector.load %arg6[%c0_15, %c0_16] : memref<50x128xf32, #tpu.memory_space<vmem>>, vector<50x128xf32>
    tpu.vector_store %arg6[%c0_15, %c0_16], %16 {strides = array<i32>} : memref<50x128xf32, #tpu.memory_space<vmem>>, vector<50x128xf32>,
    return
  }
}

module attributes {stable_mosaic.version = 11 : i64} {
  func.func @_fc_head_kernel(%arg0: memref<1xi32, #tpu.memory_space<smem>>, %arg1: memref<2x3200xf32, #tpu.memory_space<vmem>>, %arg2: memref<3200x128xf32, #tpu.memory_space<vmem>>, %arg3: memref<1x128xf32, #tpu.memory_space<vmem>>, %arg4: memref<128x128xf32, #tpu.memory_space<vmem>>, %arg5: memref<1x128xf32, #tpu.memory_space<vmem>>, %arg6: memref<128x128xf32, #tpu.memory_space<vmem>>, %arg7: memref<1x128xf32, #tpu.memory_space<vmem>>, %arg8: memref<2x128xf32, #tpu.memory_space<vmem>>) attributes {dimension_semantics = [], scalar_prefetch = 0 : i64, scratch_operands = 0 : i64, tpu.core_type = #tpu.core_type<tc>} {
    %c0 = arith.constant 0 : index
    %0 = memref.load %arg0[%c0] : memref<1xi32, #tpu.memory_space<smem>>
    %c0_0 = arith.constant 0 : index
    %c0_1 = arith.constant 0 : index
    %1 = vector.load %arg1[%c0_0, %c0_1] : memref<2x3200xf32, #tpu.memory_space<vmem>>, vector<2x3200xf32>
    %c0_2 = arith.constant 0 : index
    %c0_3 = arith.constant 0 : index
    %2 = vector.load %arg2[%c0_2, %c0_3] : memref<3200x128xf32, #tpu.memory_space<vmem>>, vector<3200x128xf32>
    %cst = arith.constant dense<0.000000e+00> : vector<2x128xf32>
    %3 = tpu.matmul %1, %2, %cst {dimension_numbers = #tpu.dot_dimension_numbers<[1], [0], [0], [1], [0, 0, 1, 1], [], []>} : vector<2x3200xf32>, vector<3200x128xf32>, vector<2x128xf32> -> vector<2x128xf32>
    %c0_4 = arith.constant 0 : index
    %c0_5 = arith.constant 0 : index
    %4 = vector.load %arg3[%c0_4, %c0_5] : memref<1x128xf32, #tpu.memory_space<vmem>>, vector<1x128xf32>
    %5 = vector.broadcast %4 : vector<1x128xf32> to vector<2x128xf32>
    %6 = arith.addf %3, %5 : vector<2x128xf32>
    %cst_6 = arith.constant 0.000000e+00 : f32
    %7 = vector.broadcast %cst_6 : f32 to vector<2x128xf32>
    %8 = arith.maximumf %6, %7 : vector<2x128xf32>
    %9 = tpu.iota {dimensions = array<i32: 0>} : vector<2x128xi32>
    %10 = tpu.iota {dimensions = array<i32: 1>} : vector<2x128xi32>
    %c128_i32 = arith.constant 128 : i32
    %11 = vector.broadcast %c128_i32 : i32 to vector<2x128xi32>
    %12 = arith.muli %9, %11 : vector<2x128xi32>
    %13 = arith.addi %12, %10 : vector<2x128xi32>
    %c1664525_i32 = arith.constant 1664525 : i32
    %14 = arith.muli %0, %c1664525_i32 : i32
    %15 = vector.broadcast %14 : i32 to vector<2x128xi32>
    %16 = arith.addi %13, %15 : vector<2x128xi32>
    %c1_i32 = arith.constant 1 : i32
    %c1013904223_i32 = arith.constant 1013904223 : i32
    %17 = arith.muli %c1_i32, %c1013904223_i32 : i32
    %18 = vector.broadcast %17 : i32 to vector<2x128xi32>
    %19 = arith.addi %16, %18 : vector<2x128xi32>
    %c16_i32 = arith.constant 16 : i32
    %20 = vector.broadcast %c16_i32 : i32 to vector<2x128xi32>
    %21 = arith.shrui %19, %20 : vector<2x128xi32>
    %22 = arith.xori %21, %19 : vector<2x128xi32>
    %c73244475_i32 = arith.constant 73244475 : i32
    %23 = vector.broadcast %c73244475_i32 : i32 to vector<2x128xi32>
    %24 = arith.muli %22, %23 : vector<2x128xi32>
    %c16_i32_7 = arith.constant 16 : i32
    %25 = vector.broadcast %c16_i32_7 : i32 to vector<2x128xi32>
    %26 = arith.shrui %24, %25 : vector<2x128xi32>
    %27 = arith.xori %26, %24 : vector<2x128xi32>
    %c73244475_i32_8 = arith.constant 73244475 : i32
    %28 = vector.broadcast %c73244475_i32_8 : i32 to vector<2x128xi32>
    %29 = arith.muli %27, %28 : vector<2x128xi32>
    %c16_i32_9 = arith.constant 16 : i32
    %30 = vector.broadcast %c16_i32_9 : i32 to vector<2x128xi32>
    %31 = arith.shrui %29, %30 : vector<2x128xi32>
    %32 = arith.xori %31, %29 : vector<2x128xi32>
    %c1_i32_10 = arith.constant 1 : i32
    %33 = vector.broadcast %c1_i32_10 : i32 to vector<2x128xi32>
    %34 = arith.andi %32, %33 : vector<2x128xi32>
    %35 = arith.sitofp %34 : vector<2x128xi32> to vector<2x128xf32>
    %36 = arith.mulf %8, %35 : vector<2x128xf32>
    %cst_11 = arith.constant 2.000000e+00 : f32
    %37 = vector.broadcast %cst_11 : f32 to vector<2x128xf32>
    %38 = arith.mulf %36, %37 : vector<2x128xf32>
    %c0_12 = arith.constant 0 : index
    %c0_13 = arith.constant 0 : index
    %39 = vector.load %arg4[%c0_12, %c0_13] : memref<128x128xf32, #tpu.memory_space<vmem>>, vector<128x128xf32>
    %cst_14 = arith.constant dense<0.000000e+00> : vector<2x128xf32>
    %40 = tpu.matmul %38, %39, %cst_14 {dimension_numbers = #tpu.dot_dimension_numbers<[1], [0], [0], [1], [0, 0, 1, 1], [], []>} : vector<2x128xf32>, vector<128x128xf32>, vector<2x128xf32> -> vector<2x128xf32>
    %c0_15 = arith.constant 0 : index
    %c0_16 = arith.constant 0 : index
    %41 = vector.load %arg5[%c0_15, %c0_16] : memref<1x128xf32, #tpu.memory_space<vmem>>, vector<1x128xf32>
    %42 = vector.broadcast %41 : vector<1x128xf32> to vector<2x128xf32>
    %43 = arith.addf %40, %42 : vector<2x128xf32>
    %cst_17 = arith.constant 0.000000e+00 : f32
    %44 = vector.broadcast %cst_17 : f32 to vector<2x128xf32>
    %45 = arith.maximumf %43, %44 : vector<2x128xf32>
    %46 = tpu.iota {dimensions = array<i32: 0>} : vector<2x128xi32>
    %47 = tpu.iota {dimensions = array<i32: 1>} : vector<2x128xi32>
    %c128_i32_18 = arith.constant 128 : i32
    %48 = vector.broadcast %c128_i32_18 : i32 to vector<2x128xi32>
    %49 = arith.muli %46, %48 : vector<2x128xi32>
    %50 = arith.addi %49, %47 : vector<2x128xi32>
    %c1664525_i32_19 = arith.constant 1664525 : i32
    %51 = arith.muli %0, %c1664525_i32_19 : i32
    %52 = vector.broadcast %51 : i32 to vector<2x128xi32>
    %53 = arith.addi %50, %52 : vector<2x128xi32>
    %c2_i32 = arith.constant 2 : i32
    %c1013904223_i32_20 = arith.constant 1013904223 : i32
    %54 = arith.muli %c2_i32, %c1013904223_i32_20 : i32
    %55 = vector.broadcast %54 : i32 to vector<2x128xi32>
    %56 = arith.addi %53, %55 : vector<2x128xi32>
    %c16_i32_21 = arith.constant 16 : i32
    %57 = vector.broadcast %c16_i32_21 : i32 to vector<2x128xi32>
    %58 = arith.shrui %56, %57 : vector<2x128xi32>
    %59 = arith.xori %58, %56 : vector<2x128xi32>
    %c73244475_i32_22 = arith.constant 73244475 : i32
    %60 = vector.broadcast %c73244475_i32_22 : i32 to vector<2x128xi32>
    %61 = arith.muli %59, %60 : vector<2x128xi32>
    %c16_i32_23 = arith.constant 16 : i32
    %62 = vector.broadcast %c16_i32_23 : i32 to vector<2x128xi32>
    %63 = arith.shrui %61, %62 : vector<2x128xi32>
    %64 = arith.xori %63, %61 : vector<2x128xi32>
    %c73244475_i32_24 = arith.constant 73244475 : i32
    %65 = vector.broadcast %c73244475_i32_24 : i32 to vector<2x128xi32>
    %66 = arith.muli %64, %65 : vector<2x128xi32>
    %c16_i32_25 = arith.constant 16 : i32
    %67 = vector.broadcast %c16_i32_25 : i32 to vector<2x128xi32>
    %68 = arith.shrui %66, %67 : vector<2x128xi32>
    %69 = arith.xori %68, %66 : vector<2x128xi32>
    %c1_i32_26 = arith.constant 1 : i32
    %70 = vector.broadcast %c1_i32_26 : i32 to vector<2x128xi32>
    %71 = arith.andi %69, %70 : vector<2x128xi32>
    %72 = arith.sitofp %71 : vector<2x128xi32> to vector<2x128xf32>
    %73 = arith.mulf %45, %72 : vector<2x128xf32>
    %cst_27 = arith.constant 2.000000e+00 : f32
    %74 = vector.broadcast %cst_27 : f32 to vector<2x128xf32>
    %75 = arith.mulf %73, %74 : vector<2x128xf32>
    %c0_28 = arith.constant 0 : index
    %c0_29 = arith.constant 0 : index
    %76 = vector.load %arg6[%c0_28, %c0_29] : memref<128x128xf32, #tpu.memory_space<vmem>>, vector<128x128xf32>
    %cst_30 = arith.constant dense<0.000000e+00> : vector<2x128xf32>
    %77 = tpu.matmul %75, %76, %cst_30 {dimension_numbers = #tpu.dot_dimension_numbers<[1], [0], [0], [1], [0, 0, 1, 1], [], []>} : vector<2x128xf32>, vector<128x128xf32>, vector<2x128xf32> -> vector<2x128xf32>
    %c0_31 = arith.constant 0 : index
    %c0_32 = arith.constant 0 : index
    %78 = vector.load %arg7[%c0_31, %c0_32] : memref<1x128xf32, #tpu.memory_space<vmem>>, vector<1x128xf32>
    %79 = vector.broadcast %78 : vector<1x128xf32> to vector<2x128xf32>
    %80 = arith.addf %77, %79 : vector<2x128xf32>
    %c0_33 = arith.constant 0 : index
    %c0_34 = arith.constant 0 : index
    %81 = vector.load %arg8[%c0_33, %c0_34] : memref<2x128xf32, #tpu.memory_space<vmem>>, vector<2x128xf32>
    tpu.vector_store %arg8[%c0_33, %c0_34], %80 {strides = array<i32>} : memref<2x128xf32, #tpu.memory_space<vmem>>, vector<2x128xf32>,
    return
  }
}

</mosaic_0001>

<llo_original>
// kernel: lenet5_mcdropout_forward.3
$region0: #{lenet5_mcdropout_forward.3}
  #allocation0 [shape = 'u32[]', space=smem, size = 0x4, offset = 0x4, fixed_abs, tag = 'smem constant byte address 0x4 - core index']
  #allocation1 [shape = 'u32[144,128]{1,0:T(1,128)}', space=vmem, size = 0x12000, scoped, tag = 'internal scratch']
  %s0 = inlined_call_operand.vmem [shape: f32[392,25], index: 0, kind: input, shape index: {}]
  %s1 = inlined_call_operand.vmem [shape: f32[392,25], index: 1, kind: input, shape index: {}]
  %s2 = inlined_call_operand.vmem [shape: f32[392,25], index: 2, kind: input, shape index: {}]
  %s3 = inlined_call_operand.vmem [shape: f32[392,25], index: 3, kind: input, shape index: {}]
  %s4 = inlined_call_operand.vmem [shape: f32[25,128], index: 4, kind: input, shape index: {}]
  %s5 = inlined_call_operand.vmem [shape: f32[1,128], index: 5, kind: input, shape index: {}]
  %s6 = inlined_call_operand.vmem [shape: f32[392,128], index: 6, kind: output, shape index: {}]
  %s7 = sld [smem:[#allocation0]]
  $region34: #{lenet5_mcdropout_forward.3} parent=0
    _
  %s9 = ssub.s32 1, %s7
  %s10 = scalar_select 0, %s9, %s7
  // Predicated region
  $region2: #{lenet5_mcdropout_forward.3} parent=0 // pred_check
    _
  $region3: #{lenet5_mcdropout_forward.3} parent=0 // pred_check_branch
    %12 = sbr.rel (0) target = $region5
  $region4: #{lenet5_mcdropout_forward.3} parent=0 // pred_region
    _
  $region5: #{lenet5_mcdropout_forward.3} parent=0 // pred_fallthru
    _
  // Predicated region
  $region6: #{lenet5_mcdropout_forward.3} parent=0 // pred_check
    _
  $region7: #{lenet5_mcdropout_forward.3} parent=0 // pred_check_branch
    %14 = sbr.rel (0) target = $region9
  $region8: #{lenet5_mcdropout_forward.3} parent=0 // pred_region
    _
  $region9: #{lenet5_mcdropout_forward.3} parent=0 // pred_fallthru
    _
  // Predicated region
  $region10: #{lenet5_mcdropout_forward.3} parent=0 // pred_check
    _
  $region11: #{lenet5_mcdropout_forward.3} parent=0 // pred_check_branch
    %16 = sbr.rel (0) target = $region13
  $region12: #{lenet5_mcdropout_forward.3} parent=0 // pred_region
    _
  $region13: #{lenet5_mcdropout_forward.3} parent=0 // pred_fallthru
    _
  // Predicated region
  $region14: #{lenet5_mcdropout_forward.3} parent=0 // pred_check
    _
  $region15: #{lenet5_mcdropout_forward.3} parent=0 // pred_check_branch
    %18 = sbr.rel (0) target = $region17
  $region16: #{lenet5_mcdropout_forward.3} parent=0 // pred_region
    _
  $region17: #{lenet5_mcdropout_forward.3} parent=0 // pred_fallthru
    _
  // Predicated region
  $region18: #{lenet5_mcdropout_forward.3} parent=0 // pred_check
    _
  $region19: #{lenet5_mcdropout_forward.3} parent=0 // pred_check_branch
    %20 = sbr.rel (0) target = $region21
  $region20: #{lenet5_mcdropout_forward.3} parent=0 // pred_region
    _
  $region21: #{lenet5_mcdropout_forward.3} parent=0 // pred_fallthru
    _
  // Predicated region
  $region22: #{lenet5_mcdropout_forward.3} parent=0 // pred_check
    _
  $region23: #{lenet5_mcdropout_forward.3} parent=0 // pred_check_branch
    %22 = sbr.rel (0) target = $region25
  $region24: #{lenet5_mcdropout_forward.3} parent=0 // pred_region
    _
  $region25: #{lenet5_mcdropout_forward.3} parent=0 // pred_fallthru
    _
  %v23 = vld [vmem:[%s4] sm:$0xff]
  %v24 = vld [vmem:[%s4 + $0x8] sm:$0xff]
  %v25 = vld [vmem:[%s4 + $0x10] sm:$0xff]
  %v26 = vld [vmem:[%s4 + $0x18] sm:$0x1]
  %v27 = vld [vmem:[%s0] sm:$0xff]
  %v28 = vld [vmem:[%s0 + $0x8] sm:$0xff]
  %v29 = vld [vmem:[%s0 + $0x10] sm:$0xff]
  %v30 = vld [vmem:[%s0 + $0x18] sm:$0xff]
  %v31 = vld [vmem:[%s0 + $0x20] sm:$0xff]
  %v32 = vld [vmem:[%s0 + $0x28] sm:$0xff]
  %v33 = vld [vmem:[%s0 + $0x30] sm:$0xff]
  %v34 = vld [vmem:[%s0 + $0x38] sm:$0xff]
  %v35 = vld [vmem:[%s0 + $0x40] sm:$0xff]
  %v36 = vld [vmem:[%s0 + $0x48] sm:$0xff]
  %v37 = vld [vmem:[%s0 + $0x50] sm:$0xff]
  %v38 = vld [vmem:[%s0 + $0x58] sm:$0xff]
  %v39 = vld [vmem:[%s0 + $0x60] sm:$0xff]
  %v40 = vld [vmem:[%s0 + $0x68] sm:$0xff]
  %v41 = vld [vmem:[%s0 + $0x70] sm:$0xff]
  %v42 = vld [vmem:[%s0 + $0x78] sm:$0xff]
  %v43 = vld [vmem:[%s0 + $0x80] sm:$0xff]
  %v44 = vld [vmem:[%s0 + $0x88] sm:$0xff]
  %v45 = vld [vmem:[%s0 + $0x90] sm:$0xff]
  %v46 = vld [vmem:[%s0 + $0x98] sm:$0xff]
  %v47 = vld [vmem:[%s0 + $0xa0] sm:$0xff]
  %v48 = vld [vmem:[%s0 + $0xa8] sm:$0xff]
  %v49 = vld [vmem:[%s0 + $0xb0] sm:$0xff]
  %v50 = vld [vmem:[%s0 + $0xb8] sm:$0xff]
  %v51 = vld [vmem:[%s0 + $0xc0] sm:$0xff]
  %v52 = vld [vmem:[%s0 + $0xc8] sm:$0xff]
  %v53 = vld [vmem:[%s0 + $0xd0] sm:$0xff]
  %v54 = vld [vmem:[%s0 + $0xd8] sm:$0xff]
  %v55 = vld [vmem:[%s0 + $0xe0] sm:$0xff]
  %v56 = vld [vmem:[%s0 + $0xe8] sm:$0xff]
  %v57 = vld [vmem:[%s0 + $0xf0] sm:$0xff]
  %v58 = vld [vmem:[%s0 + $0xf8] sm:$0xff]
  %v59 = vld [vmem:[%s0 + $0x100] sm:$0xff]
  %v60 = vld [vmem:[%s0 + $0x108] sm:$0xff]
  %v61 = vld [vmem:[%s0 + $0x110] sm:$0xff]
  %v62 = vld [vmem:[%s0 + $0x118] sm:$0xff]
  %v63 = vld [vmem:[%s0 + $0x120] sm:$0xff]
  %v64 = vld [vmem:[%s0 + $0x128] sm:$0xff]
  %v65 = vld [vmem:[%s0 + $0x130] sm:$0xff]
  %v66 = vld [vmem:[%s0 + $0x138] sm:$0xff]
  %v67 = vld [vmem:[%s0 + $0x140] sm:$0xff]
  %v68 = vld [vmem:[%s0 + $0x148] sm:$0xff]
  %v69 = vld [vmem:[%s0 + $0x150] sm:$0xff]
  %v70 = vld [vmem:[%s0 + $0x158] sm:$0xff]
  %v71 = vld [vmem:[%s0 + $0x160] sm:$0xff]
  %v72 = vld [vmem:[%s0 + $0x168] sm:$0xff]
  %v73 = vld [vmem:[%s0 + $0x170] sm:$0xff]
  %v74 = vld [vmem:[%s0 + $0x178] sm:$0xff]
  %v75 = vld [vmem:[%s0 + $0x180] sm:$0xff]
  %vm76 = vcmask 203776
  %v78 = vsel %vm76, %v27, 0
  %v81 = vsel %vm76, %v28, 0
  %v84 = vsel %vm76, %v29, 0
  %v87 = vsel %vm76, %v30, 0
  %v90 = vsel %vm76, %v31, 0
  %v93 = vsel %vm76, %v32, 0
  %v96 = vsel %vm76, %v33, 0
  %v99 = vsel %vm76, %v34, 0
  %v102 = vsel %vm76, %v35, 0
  %v105 = vsel %vm76, %v36, 0
  %v108 = vsel %vm76, %v37, 0
  %v111 = vsel %vm76, %v38, 0
  %v114 = vsel %vm76, %v39, 0
  %v117 = vsel %vm76, %v40, 0
  %v120 = vsel %vm76, %v41, 0
  %v123 = vsel %vm76, %v42, 0
  %v126 = vsel %vm76, %v43, 0
  %v129 = vsel %vm76, %v44, 0
  %v132 = vsel %vm76, %v45, 0
  %v135 = vsel %vm76, %v46, 0
  %v138 = vsel %vm76, %v47, 0
  %v141 = vsel %vm76, %v48, 0
  %v144 = vsel %vm76, %v49, 0
  %v147 = vsel %vm76, %v50, 0
  %v150 = vsel %vm76, %v51, 0
  %v153 = vsel %vm76, %v52, 0
  %v156 = vsel %vm76, %v53, 0
  %v159 = vsel %vm76, %v54, 0
  %v162 = vsel %vm76, %v55, 0
  %v165 = vsel %vm76, %v56, 0
  %v168 = vsel %vm76, %v57, 0
  %v171 = vsel %vm76, %v58, 0
  %v174 = vsel %vm76, %v59, 0
  %v177 = vsel %vm76, %v60, 0
  %v180 = vsel %vm76, %v61, 0
  %v183 = vsel %vm76, %v62, 0
  %v186 = vsel %vm76, %v63, 0
  %v189 = vsel %vm76, %v64, 0
  %v192 = vsel %vm76, %v65, 0
  %v195 = vsel %vm76, %v66, 0
  %v198 = vsel %vm76, %v67, 0
  %v201 = vsel %vm76, %v68, 0
  %v204 = vsel %vm76, %v69, 0
  %v207 = vsel %vm76, %v70, 0
  %v210 = vsel %vm76, %v71, 0
  %v213 = vsel %vm76, %v72, 0
  %v216 = vsel %vm76, %v73, 0
  %v219 = vsel %vm76, %v74, 0
  %v222 = vsel %vm76, %v75, 0
  %vm224 = vcmask 1040384
  %v226 = vsel %vm224, %v26, 0
  %228 = vmatprep.subr.mxu0 0.0
  %229 = vmatpush1.msra.mxu0 0.0
  %230 = vmatprep.subr.mxu0 0.0
  %231 = vmatpush1.msra.mxu0 0.0
  %232 = vmatprep.subr.mxu0 0.0
  %233 = vmatpush1.msra.mxu0 0.0
  %234 = vmatprep.subr.mxu0 0.0
  %235 = vmatpush1.msra.mxu0 0.0
  %236 = vmatprep.subr.mxu0 0.0
  %237 = vmatpush1.msra.mxu0 0.0
  %238 = vmatprep.subr.mxu0 0.0
  %239 = vmatpush1.msra.mxu0 0.0
  %240 = vmatprep.subr.mxu0 0.0
  %241 = vmatpush1.msra.mxu0 0.0
  %242 = vmatprep.subr.mxu0 0.0
  %243 = vmatpush1.msra.mxu0 0.0
  %244 = vmatprep.subr.mxu0 0.0
  %245 = vmatpush1.msra.mxu0 0.0
  %246 = vmatprep.subr.mxu0 0.0
  %247 = vmatpush1.msra.mxu0 0.0
  %248 = vmatprep.subr.mxu0 0.0
  %249 = vmatpush1.msra.mxu0 0.0
  %250 = vmatprep.subr.mxu0 0.0
  %251 = vmatpush1.msra.mxu0 0.0
  %252 = vmatprep.subr.mxu0 0.0
  %253 = vmatpush1.msra.mxu0 %v226
  %254 = vmatprep.subr.mxu0 0.0
  %255 = vmatpush1.msra.mxu0 %v25
  %256 = vmatprep.subr.mxu0 0.0
  %257 = vmatpush1.msra.mxu0 %v24
  %258 = vmatprep.subr.mxu0 0.0
  %259 = vmatpush1.msra.mxu0 %v23
  %260 = vmatprep.subr.mxu0 0.0
  %261 = vmatpush2.msra.mxu0 0.0
  %262 = vmatprep.subr.mxu0 0.0
  %263 = vmatpush2.msra.mxu0 0.0
  %264 = vmatprep.subr.mxu0 0.0
  %265 = vmatpush2.msra.mxu0 0.0
  %266 = vmatprep.subr.mxu0 0.0
  %267 = vmatpush2.msra.mxu0 0.0
  %268 = vmatprep.subr.mxu0 0.0
  %269 = vmatpush2.msra.mxu0 0.0
  %270 = vmatprep.subr.mxu0 0.0
  %271 = vmatpush2.msra.mxu0 0.0
  %272 = vmatprep.subr.mxu0 0.0
  %273 = vmatpush2.msra.mxu0 0.0
  %274 = vmatprep.subr.mxu0 0.0
  %275 = vmatpush2.msra.mxu0 0.0
  %276 = vmatprep.subr.mxu0 0.0
  %277 = vmatpush2.msra.mxu0 0.0
  %278 = vmatprep.subr.mxu0 0.0
  %279 = vmatpush2.msra.mxu0 0.0
  %280 = vmatprep.subr.mxu0 0.0
  %281 = vmatpush2.msra.mxu0 0.0
  %282 = vmatprep.subr.mxu0 0.0
  %283 = vmatpush2.msra.mxu0 0.0
  %284 = vmatprep.subr.mxu0 0.0
  %285 = vmatpush2.msra.mxu0 0.0
  %286 = vmatprep.subr.mxu0 0.0
  %287 = vmatpush2.msra.mxu0 0.0
  %288 = vmatprep.subr.mxu0 0.0
  %289 = vmatpush2.msra.mxu0 0.0
  %290 = vmatprep.subr.mxu0 0.0
  %291 = vmatpush2.msra.mxu0 0.0
  %292 = vmatprep.mubr.f32.mxu0 0.0
  %293 = vmatmul.mubr.f32.gmra.mxu0 %v78
  %v294 = vpop.f32.mrf.mxu0
  %v295 = vadd.f32 0.0, %v294
  %v296 = vpop.f32.mrf.mxu0
  %297 = vmatprep.mubr.f32.mxu0 0.0
  %298 = vmatmul.mubr.f32.gmra.mxu0 %v81
  %v299 = vpop.f32.mrf.mxu0
  %v300 = vadd.f32 0.0, %v299
  %v301 = vpop.f32.mrf.mxu0
  %302 = vmatprep.mubr.f32.mxu0 0.0
  %303 = vmatmul.mubr.f32.gmra.mxu0 %v84
  %v304 = vpop.f32.mrf.mxu0
  %v305 = vadd.f32 0.0, %v304
  %v306 = vpop.f32.mrf.mxu0
  %307 = vmatprep.mubr.f32.mxu0 0.0
  %308 = vmatmul.mubr.f32.gmra.mxu0 %v87
  %v309 = vpop.f32.mrf.mxu0
  %v310 = vadd.f32 0.0, %v309
  %v311 = vpop.f32.mrf.mxu0
  %312 = vmatprep.mubr.f32.mxu0 0.0
  %313 = vmatmul.mubr.f32.gmra.mxu0 %v90
  %v314 = vpop.f32.mrf.mxu0
  %v315 = vadd.f32 0.0, %v314
  %v316 = vpop.f32.mrf.mxu0
  %317 = vmatprep.mubr.f32.mxu0 0.0
  %318 = vmatmul.mubr.f32.gmra.mxu0 %v93
  %v319 = vpop.f32.mrf.mxu0
  %v320 = vadd.f32 0.0, %v319
  %v321 = vpop.f32.mrf.mxu0
  %322 = vmatprep.mubr.f32.mxu0 0.0
  %323 = vmatmul.mubr.f32.gmra.mxu0 %v96
  %v324 = vpop.f32.mrf.mxu0
  %v325 = vadd.f32 0.0, %v324
  %v326 = vpop.f32.mrf.mxu0
  %327 = vmatprep.mubr.f32.mxu0 0.0
  %328 = vmatmul.mubr.f32.gmra.mxu0 %v99
  %v329 = vpop.f32.mrf.mxu0
  %v330 = vadd.f32 0.0, %v329
  %v331 = vpop.f32.mrf.mxu0
  %332 = vmatprep.mubr.f32.mxu0 0.0
  %333 = vmatmul.mubr.f32.gmra.mxu0 %v102
  %v334 = vpop.f32.mrf.mxu0
  %v335 = vadd.f32 0.0, %v334
  %v336 = vpop.f32.mrf.mxu0
  %337 = vmatprep.mubr.f32.mxu0 0.0
  %338 = vmatmul.mubr.f32.gmra.mxu0 %v105
  %v339 = vpop.f32.mrf.mxu0
  %v340 = vadd.f32 0.0, %v339
  %v341 = vpop.f32.mrf.mxu0
  %342 = vmatprep.mubr.f32.mxu0 0.0
  %343 = vmatmul.mubr.f32.gmra.mxu0 %v108
  %v344 = vpop.f32.mrf.mxu0
  %v345 = vadd.f32 0.0, %v344
  %v346 = vpop.f32.mrf.mxu0
  %347 = vmatprep.mubr.f32.mxu0 0.0
  %348 = vmatmul.mubr.f32.gmra.mxu0 %v111
  %v349 = vpop.f32.mrf.mxu0
  %v350 = vadd.f32 0.0, %v349
  %v351 = vpop.f32.mrf.mxu0
  %352 = vmatprep.mubr.f32.mxu0 0.0
  %353 = vmatmul.mubr.f32.gmra.mxu0 %v114
  %v354 = vpop.f32.mrf.mxu0
  %v355 = vadd.f32 0.0, %v354
  %v356 = vpop.f32.mrf.mxu0
  %357 = vmatprep.mubr.f32.mxu0 0.0
  %358 = vmatmul.mubr.f32.gmra.mxu0 %v117
  %v359 = vpop.f32.mrf.mxu0
  %v360 = vadd.f32 0.0, %v359
  %v361 = vpop.f32.mrf.mxu0
  %362 = vmatprep.mubr.f32.mxu0 0.0
  %363 = vmatmul.mubr.f32.gmra.mxu0 %v120
  %v364 = vpop.f32.mrf.mxu0
  %v365 = vadd.f32 0.0, %v364
  %v366 = vpop.f32.mrf.mxu0
  %367 = vmatprep.mubr.f32.mxu0 0.0
  %368 = vmatmul.mubr.f32.gmra.mxu0 %v123
  %v369 = vpop.f32.mrf.mxu0
  %v370 = vadd.f32 0.0, %v369
  %v371 = vpop.f32.mrf.mxu0
  %372 = vmatprep.mubr.f32.mxu0 0.0
  %373 = vmatmul.mubr.f32.gmra.mxu0 %v126
  %v374 = vpop.f32.mrf.mxu0
  %v375 = vadd.f32 0.0, %v374
  %v376 = vpop.f32.mrf.mxu0
  %377 = vmatprep.mubr.f32.mxu0 0.0
  %378 = vmatmul.mubr.f32.gmra.mxu0 %v129
  %v379 = vpop.f32.mrf.mxu0
  %v380 = vadd.f32 0.0, %v379
  %v381 = vpop.f32.mrf.mxu0
  %382 = vmatprep.mubr.f32.mxu0 0.0
  %383 = vmatmul.mubr.f32.gmra.mxu0 %v132
  %v384 = vpop.f32.mrf.mxu0
  %v385 = vadd.f32 0.0, %v384
  %v386 = vpop.f32.mrf.mxu0
  %387 = vmatprep.mubr.f32.mxu0 0.0
  %388 = vmatmul.mubr.f32.gmra.mxu0 %v135
  %v389 = vpop.f32.mrf.mxu0
  %v390 = vadd.f32 0.0, %v389
  %v391 = vpop.f32.mrf.mxu0
  %392 = vmatprep.mubr.f32.mxu0 0.0
  %393 = vmatmul.mubr.f32.gmra.mxu0 %v138
  %v394 = vpop.f32.mrf.mxu0
  %v395 = vadd.f32 0.0, %v394
  %v396 = vpop.f32.mrf.mxu0
  %397 = vmatprep.mubr.f32.mxu0 0.0
  %398 = vmatmul.mubr.f32.gmra.mxu0 %v141
  %v399 = vpop.f32.mrf.mxu0
  %v400 = vadd.f32 0.0, %v399
  %v401 = vpop.f32.mrf.mxu0
  %402 = vmatprep.mubr.f32.mxu0 0.0
  %403 = vmatmul.mubr.f32.gmra.mxu0 %v144
  %v404 = vpop.f32.mrf.mxu0
  %v405 = vadd.f32 0.0, %v404
  %v406 = vpop.f32.mrf.mxu0
  %407 = vmatprep.mubr.f32.mxu0 0.0
  %408 = vmatmul.mubr.f32.gmra.mxu0 %v147
  %v409 = vpop.f32.mrf.mxu0
  %v410 = vadd.f32 0.0, %v409
  %v411 = vpop.f32.mrf.mxu0
  %412 = vmatprep.mubr.f32.mxu0 0.0
  %413 = vmatmul.mubr.f32.gmra.mxu0 %v150
  %v414 = vpop.f32.mrf.mxu0
  %v415 = vadd.f32 0.0, %v414
  %v416 = vpop.f32.mrf.mxu0
  %417 = vmatprep.mubr.f32.mxu0 0.0
  %418 = vmatmul.mubr.f32.gmra.mxu0 %v153
  %v419 = vpop.f32.mrf.mxu0
  %v420 = vadd.f32 0.0, %v419
  %v421 = vpop.f32.mrf.mxu0
  %422 = vmatprep.mubr.f32.mxu0 0.0
  %423 = vmatmul.mubr.f32.gmra.mxu0 %v156
  %v424 = vpop.f32.mrf.mxu0
  %v425 = vadd.f32 0.0, %v424
  %v426 = vpop.f32.mrf.mxu0
  %427 = vmatprep.mubr.f32.mxu0 0.0
  %428 = vmatmul.mubr.f32.gmra.mxu0 %v159
  %v429 = vpop.f32.mrf.mxu0
  %v430 = vadd.f32 0.0, %v429
  %v431 = vpop.f32.mrf.mxu0
  %432 = vmatprep.mubr.f32.mxu0 0.0
  %433 = vmatmul.mubr.f32.gmra.mxu0 %v162
  %v434 = vpop.f32.mrf.mxu0
  %v435 = vadd.f32 0.0, %v434
  %v436 = vpop.f32.mrf.mxu0
  %437 = vmatprep.mubr.f32.mxu0 0.0
  %438 = vmatmul.mubr.f32.gmra.mxu0 %v165
  %v439 = vpop.f32.mrf.mxu0
  %v440 = vadd.f32 0.0, %v439
  %v441 = vpop.f32.mrf.mxu0
  %442 = vmatprep.mubr.f32.mxu0 0.0
  %443 = vmatmul.mubr.f32.gmra.mxu0 %v168
  %v444 = vpop.f32.mrf.mxu0
  %v445 = vadd.f32 0.0, %v444
  %v446 = vpop.f32.mrf.mxu0
  %447 = vmatprep.mubr.f32.mxu0 0.0
  %448 = vmatmul.mubr.f32.gmra.mxu0 %v171
  %v449 = vpop.f32.mrf.mxu0
  %v450 = vadd.f32 0.0, %v449
  %v451 = vpop.f32.mrf.mxu0
  %452 = vmatprep.mubr.f32.mxu0 0.0
  %453 = vmatmul.mubr.f32.gmra.mxu0 %v174
  %v454 = vpop.f32.mrf.mxu0
  %v455 = vadd.f32 0.0, %v454
  %v456 = vpop.f32.mrf.mxu0
  %457 = vmatprep.mubr.f32.mxu0 0.0
  %458 = vmatmul.mubr.f32.gmra.mxu0 %v177
  %v459 = vpop.f32.mrf.mxu0
  %v460 = vadd.f32 0.0, %v459
  %v461 = vpop.f32.mrf.mxu0
  %462 = vmatprep.mubr.f32.mxu0 0.0
  %463 = vmatmul.mubr.f32.gmra.mxu0 %v180
  %v464 = vpop.f32.mrf.mxu0
  %v465 = vadd.f32 0.0, %v464
  %v466 = vpop.f32.mrf.mxu0
  %467 = vmatprep.mubr.f32.mxu0 0.0
  %468 = vmatmul.mubr.f32.gmra.mxu0 %v183
  %v469 = vpop.f32.mrf.mxu0
  %v470 = vadd.f32 0.0, %v469
  %v471 = vpop.f32.mrf.mxu0
  %472 = vmatprep.mubr.f32.mxu0 0.0
  %473 = vmatmul.mubr.f32.gmra.mxu0 %v186
  %v474 = vpop.f32.mrf.mxu0
  %v475 = vadd.f32 0.0, %v474
  %v476 = vpop.f32.mrf.mxu0
  %477 = vmatprep.mubr.f32.mxu0 0.0
  %478 = vmatmul.mubr.f32.gmra.mxu0 %v189
  %v479 = vpop.f32.mrf.mxu0
  %v480 = vadd.f32 0.0, %v479
  %v481 = vpop.f32.mrf.mxu0
  %482 = vmatprep.mubr.f32.mxu0 0.0
  %483 = vmatmul.mubr.f32.gmra.mxu0 %v192
  %v484 = vpop.f32.mrf.mxu0
  %v485 = vadd.f32 0.0, %v484
  %v486 = vpop.f32.mrf.mxu0
  %487 = vmatprep.mubr.f32.mxu0 0.0
  %488 = vmatmul.mubr.f32.gmra.mxu0 %v195
  %v489 = vpop.f32.mrf.mxu0
  %v490 = vadd.f32 0.0, %v489
  %v491 = vpop.f32.mrf.mxu0
  %492 = vmatprep.mubr.f32.mxu0 0.0
  %493 = vmatmul.mubr.f32.gmra.mxu0 %v198
  %v494 = vpop.f32.mrf.mxu0
  %v495 = vadd.f32 0.0, %v494
  %v496 = vpop.f32.mrf.mxu0
  %497 = vmatprep.mubr.f32.mxu0 0.0
  %498 = vmatmul.mubr.f32.gmra.mxu0 %v201
  %v499 = vpop.f32.mrf.mxu0
  %v500 = vadd.f32 0.0, %v499
  %v501 = vpop.f32.mrf.mxu0
  %502 = vmatprep.mubr.f32.mxu0 0.0
  %503 = vmatmul.mubr.f32.gmra.mxu0 %v204
  %v504 = vpop.f32.mrf.mxu0
  %v505 = vadd.f32 0.0, %v504
  %v506 = vpop.f32.mrf.mxu0
  %507 = vmatprep.mubr.f32.mxu0 0.0
  %508 = vmatmul.mubr.f32.gmra.mxu0 %v207
  %v509 = vpop.f32.mrf.mxu0
  %v510 = vadd.f32 0.0, %v509
  %v511 = vpop.f32.mrf.mxu0
  %512 = vmatprep.mubr.f32.mxu0 0.0
  %513 = vmatmul.mubr.f32.gmra.mxu0 %v210
  %v514 = vpop.f32.mrf.mxu0
  %v515 = vadd.f32 0.0, %v514
  %v516 = vpop.f32.mrf.mxu0
  %517 = vmatprep.mubr.f32.mxu0 0.0
  %518 = vmatmul.mubr.f32.gmra.mxu0 %v213
  %v519 = vpop.f32.mrf.mxu0
  %v520 = vadd.f32 0.0, %v519
  %v521 = vpop.f32.mrf.mxu0
  %522 = vmatprep.mubr.f32.mxu0 0.0
  %523 = vmatmul.mubr.f32.gmra.mxu0 %v216
  %v524 = vpop.f32.mrf.mxu0
  %v525 = vadd.f32 0.0, %v524
  %v526 = vpop.f32.mrf.mxu0
  %527 = vmatprep.mubr.f32.mxu0 0.0
  %528 = vmatmul.mubr.f32.gmra.mxu0 %v219
  %v529 = vpop.f32.mrf.mxu0
  %v530 = vadd.f32 0.0, %v529
  %v531 = vpop.f32.mrf.mxu0
  %532 = vmatprep.mubr.f32.mxu0 0.0
  %533 = vmatmul.mubr.f32.gmra.mxu0 %v222
  %v534 = vpop.f32.mrf.mxu0
  %v535 = vadd.f32 0.0, %v534
  %v536 = vpop.f32.mrf.mxu0
  %537 = vdwg.mxu0
  %v538 = vld [vmem:[%s1] sm:$0xff]
  %v539 = vld [vmem:[%s1 + $0x8] sm:$0xff]
  %v540 = vld [vmem:[%s1 + $0x10] sm:$0xff]
  %v541 = vld [vmem:[%s1 + $0x18] sm:$0xff]
  %v542 = vld [vmem:[%s1 + $0x20] sm:$0xff]
  %v543 = vld [vmem:[%s1 + $0x28] sm:$0xff]
  %v544 = vld [vmem:[%s1 + $0x30] sm:$0xff]
  %v545 = vld [vmem:[%s1 + $0x38] sm:$0xff]
  %v546 = vld [vmem:[%s1 + $0x40] sm:$0xff]
  %v547 = vld [vmem:[%s1 + $0x48] sm:$0xff]
  %v548 = vld [vmem:[%s1 + $0x50] sm:$0xff]
  %v549 = vld [vmem:[%s1 + $0x58] sm:$0xff]
  %v550 = vld [vmem:[%s1 + $0x60] sm:$0xff]
  %v551 = vld [vmem:[%s1 + $0x68] sm:$0xff]
  %v552 = vld [vmem:[%s1 + $0x70] sm:$0xff]
  %v553 = vld [vmem:[%s1 + $0x78] sm:$0xff]
  %v554 = vld [vmem:[%s1 + $0x80] sm:$0xff]
  %v555 = vld [vmem:[%s1 + $0x88] sm:$0xff]
  %v556 = vld [vmem:[%s1 + $0x90] sm:$0xff]
  %v557 = vld [vmem:[%s1 + $0x98] sm:$0xff]
  %v558 = vld [vmem:[%s1 + $0xa0] sm:$0xff]
  %v559 = vld [vmem:[%s1 + $0xa8] sm:$0xff]
  %v560 = vld [vmem:[%s1 + $0xb0] sm:$0xff]
  %v561 = vld [vmem:[%s1 + $0xb8] sm:$0xff]
  %v562 = vld [vmem:[%s1 + $0xc0] sm:$0xff]
  %v563 = vld [vmem:[%s1 + $0xc8] sm:$0xff]
  %v564 = vld [vmem:[%s1 + $0xd0] sm:$0xff]
  %v565 = vld [vmem:[%s1 + $0xd8] sm:$0xff]
  %v566 = vld [vmem:[%s1 + $0xe0] sm:$0xff]
  %v567 = vld [vmem:[%s1 + $0xe8] sm:$0xff]
  %v568 = vld [vmem:[%s1 + $0xf0] sm:$0xff]
  %v569 = vld [vmem:[%s1 + $0xf8] sm:$0xff]
  %v570 = vld [vmem:[%s1 + $0x100] sm:$0xff]
  %v571 = vld [vmem:[%s1 + $0x108] sm:$0xff]
  %v572 = vld [vmem:[%s1 + $0x110] sm:$0xff]
  %v573 = vld [vmem:[%s1 + $0x118] sm:$0xff]
  %v574 = vld [vmem:[%s1 + $0x120] sm:$0xff]
  %v575 = vld [vmem:[%s1 + $0x128] sm:$0xff]
  %v576 = vld [vmem:[%s1 + $0x130] sm:$0xff]
  %v577 = vld [vmem:[%s1 + $0x138] sm:$0xff]
  %v578 = vld [vmem:[%s1 + $0x140] sm:$0xff]
  %v579 = vld [vmem:[%s1 + $0x148] sm:$0xff]
  %v580 = vld [vmem:[%s1 + $0x150] sm:$0xff]
  %v581 = vld [vmem:[%s1 + $0x158] sm:$0xff]
  %v582 = vld [vmem:[%s1 + $0x160] sm:$0xff]
  %v583 = vld [vmem:[%s1 + $0x168] sm:$0xff]
  %v584 = vld [vmem:[%s1 + $0x170] sm:$0xff]
  %v585 = vld [vmem:[%s1 + $0x178] sm:$0xff]
  %v586 = vld [vmem:[%s1 + $0x180] sm:$0xff]
  %v588 = vsel %vm76, %v538, 0
  %v591 = vsel %vm76, %v539, 0
  %v594 = vsel %vm76, %v540, 0
  %v597 = vsel %vm76, %v541, 0
  %v600 = vsel %vm76, %v542, 0
  %v603 = vsel %vm76, %v543, 0
  %v606 = vsel %vm76, %v544, 0
  %v609 = vsel %vm76, %v545, 0
  %v612 = vsel %vm76, %v546, 0
  %v615 = vsel %vm76, %v547, 0
  %v618 = vsel %vm76, %v548, 0
  %v621 = vsel %vm76, %v549, 0
  %v624 = vsel %vm76, %v550, 0
  %v627 = vsel %vm76, %v551, 0
  %v630 = vsel %vm76, %v552, 0
  %v633 = vsel %vm76, %v553, 0
  %v636 = vsel %vm76, %v554, 0
  %v639 = vsel %vm76, %v555, 0
  %v642 = vsel %vm76, %v556, 0
  %v645 = vsel %vm76, %v557, 0
  %v648 = vsel %vm76, %v558, 0
  %v651 = vsel %vm76, %v559, 0
  %v654 = vsel %vm76, %v560, 0
  %v657 = vsel %vm76, %v561, 0
  %v660 = vsel %vm76, %v562, 0
  %v663 = vsel %vm76, %v563, 0
  %v666 = vsel %vm76, %v564, 0
  %v669 = vsel %vm76, %v565, 0
  %v672 = vsel %vm76, %v566, 0
  %v675 = vsel %vm76, %v567, 0
  %v678 = vsel %vm76, %v568, 0
  %v681 = vsel %vm76, %v569, 0
  %v684 = vsel %vm76, %v570, 0
  %v687 = vsel %vm76, %v571, 0
  %v690 = vsel %vm76, %v572, 0
  %v693 = vsel %vm76, %v573, 0
  %v696 = vsel %vm76, %v574, 0
  %v699 = vsel %vm76, %v575, 0
  %v702 = vsel %vm76, %v576, 0
  %v705 = vsel %vm76, %v577, 0
  %v708 = vsel %vm76, %v578, 0
  %v711 = vsel %vm76, %v579, 0
  %v714 = vsel %vm76, %v580, 0
  %v717 = vsel %vm76, %v581, 0
  %v720 = vsel %vm76, %v582, 0
  %v723 = vsel %vm76, %v583, 0
  %v726 = vsel %vm76, %v584, 0
  %v729 = vsel %vm76, %v585, 0
  %v732 = vsel %vm76, %v586, 0
  %734 = vmatprep.subr.mxu0 0.0
  %735 = vmatpush1.msra.mxu0 0.0
  %736 = vmatprep.subr.mxu0 0.0
  %737 = vmatpush1.msra.mxu0 0.0
  %738 = vmatprep.subr.mxu0 0.0
  %739 = vmatpush1.msra.mxu0 0.0
  %740 = vmatprep.subr.mxu0 0.0
  %741 = vmatpush1.msra.mxu0 0.0
  %742 = vmatprep.subr.mxu0 0.0
  %743 = vmatpush1.msra.mxu0 0.0
  %744 = vmatprep.subr.mxu0 0.0
  %745 = vmatpush1.msra.mxu0 0.0
  %746 = vmatprep.subr.mxu0 0.0
  %747 = vmatpush1.msra.mxu0 0.0
  %748 = vmatprep.subr.mxu0 0.0
  %749 = vmatpush1.msra.mxu0 0.0
  %750 = vmatprep.subr.mxu0 0.0
  %751 = vmatpush1.msra.mxu0 0.0
  %752 = vmatprep.subr.mxu0 0.0
  %753 = vmatpush1.msra.mxu0 0.0
  %754 = vmatprep.subr.mxu0 0.0
  %755 = vmatpush1.msra.mxu0 0.0
  %756 = vmatprep.subr.mxu0 0.0
  %757 = vmatpush1.msra.mxu0 0.0
  %758 = vmatprep.subr.mxu0 0.0
  %759 = vmatpush1.msra.mxu0 %v226
  %760 = vmatprep.subr.mxu0 0.0
  %761 = vmatpush1.msra.mxu0 %v25
  %762 = vmatprep.subr.mxu0 0.0
  %763 = vmatpush1.msra.mxu0 %v24
  %764 = vmatprep.subr.mxu0 0.0
  %765 = vmatpush1.msra.mxu0 %v23
  %766 = vmatprep.subr.mxu0 0.0
  %767 = vmatpush2.msra.mxu0 0.0
  %768 = vmatprep.subr.mxu0 0.0
  %769 = vmatpush2.msra.mxu0 0.0
  %770 = vmatprep.subr.mxu0 0.0
  %771 = vmatpush2.msra.mxu0 0.0
  %772 = vmatprep.subr.mxu0 0.0
  %773 = vmatpush2.msra.mxu0 0.0
  %774 = vmatprep.subr.mxu0 0.0
  %775 = vmatpush2.msra.mxu0 0.0
  %776 = vmatprep.subr.mxu0 0.0
  %777 = vmatpush2.msra.mxu0 0.0
  %778 = vmatprep.subr.mxu0 0.0
  %779 = vmatpush2.msra.mxu0 0.0
  %780 = vmatprep.subr.mxu0 0.0
  %781 = vmatpush2.msra.mxu0 0.0
  %782 = vmatprep.subr.mxu0 0.0
  %783 = vmatpush2.msra.mxu0 0.0
  %784 = vmatprep.subr.mxu0 0.0
  %785 = vmatpush2.msra.mxu0 0.0
  %786 = vmatprep.subr.mxu0 0.0
  %787 = vmatpush2.msra.mxu0 0.0
  %788 = vmatprep.subr.mxu0 0.0
  %789 = vmatpush2.msra.mxu0 0.0
  %790 = vmatprep.subr.mxu0 0.0
  %791 = vmatpush2.msra.mxu0 0.0
  %792 = vmatprep.subr.mxu0 0.0
  %793 = vmatpush2.msra.mxu0 0.0
  %794 = vmatprep.subr.mxu0 0.0
  %795 = vmatpush2.msra.mxu0 0.0
  %796 = vmatprep.subr.mxu0 0.0
  %797 = vmatpush2.msra.mxu0 0.0
  %798 = vmatprep.mubr.f32.mxu0 0.0
  %799 = vmatmul.mubr.f32.gmra.mxu0 %v588
  %v800 = vpop.f32.mrf.mxu0
  %v801 = vadd.f32 0.0, %v800
  %v802 = vpop.f32.mrf.mxu0
  %803 = vmatprep.mubr.f32.mxu0 0.0
  %804 = vmatmul.mubr.f32.gmra.mxu0 %v591
  %v805 = vpop.f32.mrf.mxu0
  %v806 = vadd.f32 0.0, %v805
  %v807 = vpop.f32.mrf.mxu0
  %808 = vmatprep.mubr.f32.mxu0 0.0
  %809 = vmatmul.mubr.f32.gmra.mxu0 %v594
  %v810 = vpop.f32.mrf.mxu0
  %v811 = vadd.f32 0.0, %v810
  %v812 = vpop.f32.mrf.mxu0
  %813 = vmatprep.mubr.f32.mxu0 0.0
  %814 = vmatmul.mubr.f32.gmra.mxu0 %v597
  %v815 = vpop.f32.mrf.mxu0
  %v816 = vadd.f32 0.0, %v815
  %v817 = vpop.f32.mrf.mxu0
  %818 = vmatprep.mubr.f32.mxu0 0.0
  %819 = vmatmul.mubr.f32.gmra.mxu0 %v600
  %v820 = vpop.f32.mrf.mxu0
  %v821 = vadd.f32 0.0, %v820
  %v822 = vpop.f32.mrf.mxu0
  %823 = vmatprep.mubr.f32.mxu0 0.0
  %824 = vmatmul.mubr.f32.gmra.mxu0 %v603
  %v825 = vpop.f32.mrf.mxu0
  %v826 = vadd.f32 0.0, %v825
  %v827 = vpop.f32.mrf.mxu0
  %828 = vmatprep.mubr.f32.mxu0 0.0
  %829 = vmatmul.mubr.f32.gmra.mxu0 %v606
  %v830 = vpop.f32.mrf.mxu0
  %v831 = vadd.f32 0.0, %v830
  %v832 = vpop.f32.mrf.mxu0
  %833 = vmatprep.mubr.f32.mxu0 0.0
  %834 = vmatmul.mubr.f32.gmra.mxu0 %v609
  %v835 = vpop.f32.mrf.mxu0
  %v836 = vadd.f32 0.0, %v835
  %v837 = vpop.f32.mrf.mxu0
  %838 = vmatprep.mubr.f32.mxu0 0.0
  %839 = vmatmul.mubr.f32.gmra.mxu0 %v612
  %v840 = vpop.f32.mrf.mxu0
  %v841 = vadd.f32 0.0, %v840
  %v842 = vpop.f32.mrf.mxu0
  %843 = vmatprep.mubr.f32.mxu0 0.0
  %844 = vmatmul.mubr.f32.gmra.mxu0 %v615
  %v845 = vpop.f32.mrf.mxu0
  %v846 = vadd.f32 0.0, %v845
  %v847 = vpop.f32.mrf.mxu0
  %848 = vmatprep.mubr.f32.mxu0 0.0
  %849 = vmatmul.mubr.f32.gmra.mxu0 %v618
  %v850 = vpop.f32.mrf.mxu0
  %v851 = vadd.f32 0.0, %v850
  %v852 = vpop.f32.mrf.mxu0
  %853 = vmatprep.mubr.f32.mxu0 0.0
  %854 = vmatmul.mubr.f32.gmra.mxu0 %v621
  %v855 = vpop.f32.mrf.mxu0
  %v856 = vadd.f32 0.0, %v855
  %v857 = vpop.f32.mrf.mxu0
  %858 = vmatprep.mubr.f32.mxu0 0.0
  %859 = vmatmul.mubr.f32.gmra.mxu0 %v624
  %v860 = vpop.f32.mrf.mxu0
  %v861 = vadd.f32 0.0, %v860
  %v862 = vpop.f32.mrf.mxu0
  %863 = vmatprep.mubr.f32.mxu0 0.0
  %864 = vmatmul.mubr.f32.gmra.mxu0 %v627
  %v865 = vpop.f32.mrf.mxu0
  %v866 = vadd.f32 0.0, %v865
  %v867 = vpop.f32.mrf.mxu0
  %868 = vmatprep.mubr.f32.mxu0 0.0
  %869 = vmatmul.mubr.f32.gmra.mxu0 %v630
  %v870 = vpop.f32.mrf.mxu0
  %v871 = vadd.f32 0.0, %v870
  %v872 = vpop.f32.mrf.mxu0
  %873 = vmatprep.mubr.f32.mxu0 0.0
  %874 = vmatmul.mubr.f32.gmra.mxu0 %v633
  %v875 = vpop.f32.mrf.mxu0
  %v876 = vadd.f32 0.0, %v875
  %v877 = vpop.f32.mrf.mxu0
  %878 = vmatprep.mubr.f32.mxu0 0.0
  %879 = vmatmul.mubr.f32.gmra.mxu0 %v636
  %v880 = vpop.f32.mrf.mxu0
  %v881 = vadd.f32 0.0, %v880
  %v882 = vpop.f32.mrf.mxu0
  %883 = vmatprep.mubr.f32.mxu0 0.0
  %884 = vmatmul.mubr.f32.gmra.mxu0 %v639
  %v885 = vpop.f32.mrf.mxu0
  %v886 = vadd.f32 0.0, %v885
  %v887 = vpop.f32.mrf.mxu0
  %888 = vmatprep.mubr.f32.mxu0 0.0
  %889 = vmatmul.mubr.f32.gmra.mxu0 %v642
  %v890 = vpop.f32.mrf.mxu0
  %v891 = vadd.f32 0.0, %v890
  %v892 = vpop.f32.mrf.mxu0
  %893 = vmatprep.mubr.f32.mxu0 0.0
  %894 = vmatmul.mubr.f32.gmra.mxu0 %v645
  %v895 = vpop.f32.mrf.mxu0
  %v896 = vadd.f32 0.0, %v895
  %v897 = vpop.f32.mrf.mxu0
  %898 = vmatprep.mubr.f32.mxu0 0.0
  %899 = vmatmul.mubr.f32.gmra.mxu0 %v648
  %v900 = vpop.f32.mrf.mxu0
  %v901 = vadd.f32 0.0, %v900
  %v902 = vpop.f32.mrf.mxu0
  %903 = vmatprep.mubr.f32.mxu0 0.0
  %904 = vmatmul.mubr.f32.gmra.mxu0 %v651
  %v905 = vpop.f32.mrf.mxu0
  %v906 = vadd.f32 0.0, %v905
  %v907 = vpop.f32.mrf.mxu0
  %908 = vmatprep.mubr.f32.mxu0 0.0
  %909 = vmatmul.mubr.f32.gmra.mxu0 %v654
  %v910 = vpop.f32.mrf.mxu0
  %v911 = vadd.f32 0.0, %v910
  %v912 = vpop.f32.mrf.mxu0
  %913 = vmatprep.mubr.f32.mxu0 0.0
  %914 = vmatmul.mubr.f32.gmra.mxu0 %v657
  %v915 = vpop.f32.mrf.mxu0
  %v916 = vadd.f32 0.0, %v915
  %v917 = vpop.f32.mrf.mxu0
  %918 = vmatprep.mubr.f32.mxu0 0.0
  %919 = vmatmul.mubr.f32.gmra.mxu0 %v660
  %v920 = vpop.f32.mrf.mxu0
  %v921 = vadd.f32 0.0, %v920
  %v922 = vpop.f32.mrf.mxu0
  %923 = vmatprep.mubr.f32.mxu0 0.0
  %924 = vmatmul.mubr.f32.gmra.mxu0 %v663
  %v925 = vpop.f32.mrf.mxu0
  %v926 = vadd.f32 0.0, %v925
  %v927 = vpop.f32.mrf.mxu0
  %928 = vmatprep.mubr.f32.mxu0 0.0
  %929 = vmatmul.mubr.f32.gmra.mxu0 %v666
  %v930 = vpop.f32.mrf.mxu0
  %v931 = vadd.f32 0.0, %v930
  %v932 = vpop.f32.mrf.mxu0
  %933 = vmatprep.mubr.f32.mxu0 0.0
  %934 = vmatmul.mubr.f32.gmra.mxu0 %v669
  %v935 = vpop.f32.mrf.mxu0
  %v936 = vadd.f32 0.0, %v935
  %v937 = vpop.f32.mrf.mxu0
  %938 = vmatprep.mubr.f32.mxu0 0.0
  %939 = vmatmul.mubr.f32.gmra.mxu0 %v672
  %v940 = vpop.f32.mrf.mxu0
  %v941 = vadd.f32 0.0, %v940
  %v942 = vpop.f32.mrf.mxu0
  %943 = vmatprep.mubr.f32.mxu0 0.0
  %944 = vmatmul.mubr.f32.gmra.mxu0 %v675
  %v945 = vpop.f32.mrf.mxu0
  %v946 = vadd.f32 0.0, %v945
  %v947 = vpop.f32.mrf.mxu0
  %948 = vmatprep.mubr.f32.mxu0 0.0
  %949 = vmatmul.mubr.f32.gmra.mxu0 %v678
  %v950 = vpop.f32.mrf.mxu0
  %v951 = vadd.f32 0.0, %v950
  %v952 = vpop.f32.mrf.mxu0
  %953 = vmatprep.mubr.f32.mxu0 0.0
  %954 = vmatmul.mubr.f32.gmra.mxu0 %v681
  %v955 = vpop.f32.mrf.mxu0
  %v956 = vadd.f32 0.0, %v955
  %v957 = vpop.f32.mrf.mxu0
  %958 = vmatprep.mubr.f32.mxu0 0.0
  %959 = vmatmul.mubr.f32.gmra.mxu0 %v684
  %v960 = vpop.f32.mrf.mxu0
  %v961 = vadd.f32 0.0, %v960
  %v962 = vpop.f32.mrf.mxu0
  %963 = vmatprep.mubr.f32.mxu0 0.0
  %964 = vmatmul.mubr.f32.gmra.mxu0 %v687
  %v965 = vpop.f32.mrf.mxu0
  %v966 = vadd.f32 0.0, %v965
  %v967 = vpop.f32.mrf.mxu0
  %968 = vmatprep.mubr.f32.mxu0 0.0
  %969 = vmatmul.mubr.f32.gmra.mxu0 %v690
  %v970 = vpop.f32.mrf.mxu0
  %v971 = vadd.f32 0.0, %v970
  %v972 = vpop.f32.mrf.mxu0
  %973 = vmatprep.mubr.f32.mxu0 0.0
  %974 = vmatmul.mubr.f32.gmra.mxu0 %v693
  %v975 = vpop.f32.mrf.mxu0
  %v976 = vadd.f32 0.0, %v975
  %v977 = vpop.f32.mrf.mxu0
  %978 = vmatprep.mubr.f32.mxu0 0.0
  %979 = vmatmul.mubr.f32.gmra.mxu0 %v696
  %v980 = vpop.f32.mrf.mxu0
  %v981 = vadd.f32 0.0, %v980
  %v982 = vpop.f32.mrf.mxu0
  %983 = vmatprep.mubr.f32.mxu0 0.0
  %984 = vmatmul.mubr.f32.gmra.mxu0 %v699
  %v985 = vpop.f32.mrf.mxu0
  %v986 = vadd.f32 0.0, %v985
  %v987 = vpop.f32.mrf.mxu0
  %988 = vmatprep.mubr.f32.mxu0 0.0
  %989 = vmatmul.mubr.f32.gmra.mxu0 %v702
  %v990 = vpop.f32.mrf.mxu0
  %v991 = vadd.f32 0.0, %v990
  %v992 = vpop.f32.mrf.mxu0
  %993 = vmatprep.mubr.f32.mxu0 0.0
  %994 = vmatmul.mubr.f32.gmra.mxu0 %v705
  %v995 = vpop.f32.mrf.mxu0
  %v996 = vadd.f32 0.0, %v995
  %v997 = vpop.f32.mrf.mxu0
  %998 = vmatprep.mubr.f32.mxu0 0.0
  %999 = vmatmul.mubr.f32.gmra.mxu0 %v708
  %v1000 = vpop.f32.mrf.mxu0
  %v1001 = vadd.f32 0.0, %v1000
  %v1002 = vpop.f32.mrf.mxu0
  %1003 = vmatprep.mubr.f32.mxu0 0.0
  %1004 = vmatmul.mubr.f32.gmra.mxu0 %v711
  %v1005 = vpop.f32.mrf.mxu0
  %v1006 = vadd.f32 0.0, %v1005
  %v1007 = vpop.f32.mrf.mxu0
  %1008 = vmatprep.mubr.f32.mxu0 0.0
  %1009 = vmatmul.mubr.f32.gmra.mxu0 %v714
  %v1010 = vpop.f32.mrf.mxu0
  %v1011 = vadd.f32 0.0, %v1010
  %v1012 = vpop.f32.mrf.mxu0
  %1013 = vmatprep.mubr.f32.mxu0 0.0
  %1014 = vmatmul.mubr.f32.gmra.mxu0 %v717
  %v1015 = vpop.f32.mrf.mxu0
  %v1016 = vadd.f32 0.0, %v1015
  %v1017 = vpop.f32.mrf.mxu0
  %1018 = vmatprep.mubr.f32.mxu0 0.0
  %1019 = vmatmul.mubr.f32.gmra.mxu0 %v720
  %v1020 = vpop.f32.mrf.mxu0
  %v1021 = vadd.f32 0.0, %v1020
  %v1022 = vpop.f32.mrf.mxu0
  %1023 = vmatprep.mubr.f32.mxu0 0.0
  %1024 = vmatmul.mubr.f32.gmra.mxu0 %v723
  %v1025 = vpop.f32.mrf.mxu0
  %v1026 = vadd.f32 0.0, %v1025
  %v1027 = vpop.f32.mrf.mxu0
  %1028 = vmatprep.mubr.f32.mxu0 0.0
  %1029 = vmatmul.mubr.f32.gmra.mxu0 %v726
  %v1030 = vpop.f32.mrf.mxu0
  %v1031 = vadd.f32 0.0, %v1030
  %v1032 = vpop.f32.mrf.mxu0
  %1033 = vmatprep.mubr.f32.mxu0 0.0
  %1034 = vmatmul.mubr.f32.gmra.mxu0 %v729
  %v1035 = vpop.f32.mrf.mxu0
  %v1036 = vadd.f32 0.0, %v1035
  %v1037 = vpop.f32.mrf.mxu0
  %1038 = vmatprep.mubr.f32.mxu0 0.0
  %1039 = vmatmul.mubr.f32.gmra.mxu0 %v732
  %v1040 = vpop.f32.mrf.mxu0
  %v1041 = vadd.f32 0.0, %v1040
  %v1042 = vpop.f32.mrf.mxu0
  %1043 = vdwg.mxu0
  %v1044 = vmax.f32 %v295, %v801
  %v1045 = vmax.f32 %v300, %v806
  %v1046 = vmax.f32 %v305, %v811
  %v1047 = vmax.f32 %v310, %v816
  %v1048 = vmax.f32 %v315, %v821
  %v1049 = vmax.f32 %v320, %v826
  %v1050 = vmax.f32 %v325, %v831
  %v1051 = vmax.f32 %v330, %v836
  %v1052 = vmax.f32 %v335, %v841
  %v1053 = vmax.f32 %v340, %v846
  %v1054 = vmax.f32 %v345, %v851
  %v1055 = vmax.f32 %v350, %v856
  %v1056 = vmax.f32 %v355, %v861
  %v1057 = vmax.f32 %v360, %v866
  %v1058 = vmax.f32 %v365, %v871
  %v1059 = vmax.f32 %v370, %v876
  %v1060 = vmax.f32 %v375, %v881
  %v1061 = vmax.f32 %v380, %v886
  %v1062 = vmax.f32 %v385, %v891
  %v1063 = vmax.f32 %v390, %v896
  %v1064 = vmax.f32 %v395, %v901
  %v1065 = vmax.f32 %v400, %v906
  %v1066 = vmax.f32 %v405, %v911
  %v1067 = vmax.f32 %v410, %v916
  %v1068 = vmax.f32 %v415, %v921
  %v1069 = vmax.f32 %v420, %v926
  %v1070 = vmax.f32 %v425, %v931
  %v1071 = vmax.f32 %v430, %v936
  %v1072 = vmax.f32 %v435, %v941
  %v1073 = vmax.f32 %v440, %v946
  %v1074 = vmax.f32 %v445, %v951
  %v1075 = vmax.f32 %v450, %v956
  %v1076 = vmax.f32 %v455, %v961
  %v1077 = vmax.f32 %v460, %v966
  %v1078 = vmax.f32 %v465, %v971
  %v1079 = vmax.f32 %v470, %v976
  %v1080 = vmax.f32 %v475, %v981
  %v1081 = vmax.f32 %v480, %v986
  %v1082 = vmax.f32 %v485, %v991
  %v1083 = vmax.f32 %v490, %v996
  %v1084 = vmax.f32 %v495, %v1001
  %v1085 = vmax.f32 %v500, %v1006
  %v1086 = vmax.f32 %v505, %v1011
  %v1087 = vmax.f32 %v510, %v1016
  %v1088 = vmax.f32 %v515, %v1021
  %v1089 = vmax.f32 %v520, %v1026
  %v1090 = vmax.f32 %v525, %v1031
  %v1091 = vmax.f32 %v530, %v1036
  %v1092 = vmax.f32 %v535, %v1041
  %v1093 = vld [vmem:[%s2] sm:$0xff]
  %v1094 = vld [vmem:[%s2 + $0x8] sm:$0xff]
  %v1095 = vld [vmem:[%s2 + $0x10] sm:$0xff]
  %v1096 = vld [vmem:[%s2 + $0x18] sm:$0xff]
  %v1097 = vld [vmem:[%s2 + $0x20] sm:$0xff]
  %v1098 = vld [vmem:[%s2 + $0x28] sm:$0xff]
  %v1099 = vld [vmem:[%s2 + $0x30] sm:$0xff]
  %v1100 = vld [vmem:[%s2 + $0x38] sm:$0xff]
  %v1101 = vld [vmem:[%s2 + $0x40] sm:$0xff]
  %v1102 = vld [vmem:[%s2 + $0x48] sm:$0xff]
  %v1103 = vld [vmem:[%s2 + $0x50] sm:$0xff]
  %v1104 = vld [vmem:[%s2 + $0x58] sm:$0xff]
  %v1105 = vld [vmem:[%s2 + $0x60] sm:$0xff]
  %v1106 = vld [vmem:[%s2 + $0x68] sm:$0xff]
  %v1107 = vld [vmem:[%s2 + $0x70] sm:$0xff]
  %v1108 = vld [vmem:[%s2 + $0x78] sm:$0xff]
  %v1109 = vld [vmem:[%s2 + $0x80] sm:$0xff]
  %v1110 = vld [vmem:[%s2 + $0x88] sm:$0xff]
  %v1111 = vld [vmem:[%s2 + $0x90] sm:$0xff]
  %v1112 = vld [vmem:[%s2 + $0x98] sm:$0xff]
  %v1113 = vld [vmem:[%s2 + $0xa0] sm:$0xff]
  %v1114 = vld [vmem:[%s2 + $0xa8] sm:$0xff]
  %v1115 = vld [vmem:[%s2 + $0xb0] sm:$0xff]
  %v1116 = vld [vmem:[%s2 + $0xb8] sm:$0xff]
  %v1117 = vld [vmem:[%s2 + $0xc0] sm:$0xff]
  %v1118 = vld [vmem:[%s2 + $0xc8] sm:$0xff]
  %v1119 = vld [vmem:[%s2 + $0xd0] sm:$0xff]
  %v1120 = vld [vmem:[%s2 + $0xd8] sm:$0xff]
  %v1121 = vld [vmem:[%s2 + $0xe0] sm:$0xff]
  %v1122 = vld [vmem:[%s2 + $0xe8] sm:$0xff]
  %v1123 = vld [vmem:[%s2 + $0xf0] sm:$0xff]
  %v1124 = vld [vmem:[%s2 + $0xf8] sm:$0xff]
  %v1125 = vld [vmem:[%s2 + $0x100] sm:$0xff]
  %v1126 = vld [vmem:[%s2 + $0x108] sm:$0xff]
  %v1127 = vld [vmem:[%s2 + $0x110] sm:$0xff]
  %v1128 = vld [vmem:[%s2 + $0x118] sm:$0xff]
  %v1129 = vld [vmem:[%s2 + $0x120] sm:$0xff]
  %v1130 = vld [vmem:[%s2 + $0x128] sm:$0xff]
  %v1131 = vld [vmem:[%s2 + $0x130] sm:$0xff]
  %v1132 = vld [vmem:[%s2 + $0x138] sm:$0xff]
  %v1133 = vld [vmem:[%s2 + $0x140] sm:$0xff]
  %v1134 = vld [vmem:[%s2 + $0x148] sm:$0xff]
  %v1135 = vld [vmem:[%s2 + $0x150] sm:$0xff]
  %v1136 = vld [vmem:[%s2 + $0x158] sm:$0xff]
  %v1137 = vld [vmem:[%s2 + $0x160] sm:$0xff]
  %v1138 = vld [vmem:[%s2 + $0x168] sm:$0xff]
  %v1139 = vld [vmem:[%s2 + $0x170] sm:$0xff]
  %v1140 = vld [vmem:[%s2 + $0x178] sm:$0xff]
  %v1141 = vld [vmem:[%s2 + $0x180] sm:$0xff]
  %v1143 = vsel %vm76, %v1093, 0
  %v1146 = vsel %vm76, %v1094, 0
  %v1149 = vsel %vm76, %v1095, 0
  %v1152 = vsel %vm76, %v1096, 0
  %v1155 = vsel %vm76, %v1097, 0
  %v1158 = vsel %vm76, %v1098, 0
  %v1161 = vsel %vm76, %v1099, 0
  %v1164 = vsel %vm76, %v1100, 0
  %v1167 = vsel %vm76, %v1101, 0
  %v1170 = vsel %vm76, %v1102, 0
  %v1173 = vsel %vm76, %v1103, 0
  %v1176 = vsel %vm76, %v1104, 0
  %v1179 = vsel %vm76, %v1105, 0
  %v1182 = vsel %vm76, %v1106, 0
  %v1185 = vsel %vm76, %v1107, 0
  %v1188 = vsel %vm76, %v1108, 0
  %v1191 = vsel %vm76, %v1109, 0
  %v1194 = vsel %vm76, %v1110, 0
  %v1197 = vsel %vm76, %v1111, 0
  %v1200 = vsel %vm76, %v1112, 0
  %v1203 = vsel %vm76, %v1113, 0
  %v1206 = vsel %vm76, %v1114, 0
  %v1209 = vsel %vm76, %v1115, 0
  %v1212 = vsel %vm76, %v1116, 0
  %v1215 = vsel %vm76, %v1117, 0
  %v1218 = vsel %vm76, %v1118, 0
  %v1221 = vsel %vm76, %v1119, 0
  %v1224 = vsel %vm76, %v1120, 0
  %v1227 = vsel %vm76, %v1121, 0
  %v1230 = vsel %vm76, %v1122, 0
  %v1233 = vsel %vm76, %v1123, 0
  %v1236 = vsel %vm76, %v1124, 0
  %v1239 = vsel %vm76, %v1125, 0
  %v1242 = vsel %vm76, %v1126, 0
  %v1245 = vsel %vm76, %v1127, 0
  %v1248 = vsel %vm76, %v1128, 0
  %v1251 = vsel %vm76, %v1129, 0
  %v1254 = vsel %vm76, %v1130, 0
  %v1257 = vsel %vm76, %v1131, 0
  %v1260 = vsel %vm76, %v1132, 0
  %v1263 = vsel %vm76, %v1133, 0
  %v1266 = vsel %vm76, %v1134, 0
  %v1269 = vsel %vm76, %v1135, 0
  %v1272 = vsel %vm76, %v1136, 0
  %v1275 = vsel %vm76, %v1137, 0
  %v1278 = vsel %vm76, %v1138, 0
  %v1281 = vsel %vm76, %v1139, 0
  %v1284 = vsel %vm76, %v1140, 0
  %v1287 = vsel %vm76, %v1141, 0
  %1289 = vmatprep.subr.mxu0 0.0
  %1290 = vmatpush1.msra.mxu0 0.0
  %1291 = vmatprep.subr.mxu0 0.0
  %1292 = vmatpush1.msra.mxu0 0.0
  %1293 = vmatprep.subr.mxu0 0.0
  %1294 = vmatpush1.msra.mxu0 0.0
  %1295 = vmatprep.subr.mxu0 0.0
  %1296 = vmatpush1.msra.mxu0 0.0
  %1297 = vmatprep.subr.mxu0 0.0
  %1298 = vmatpush1.msra.mxu0 0.0
  %1299 = vmatprep.subr.mxu0 0.0
  %1300 = vmatpush1.msra.mxu0 0.0
  %1301 = vmatprep.subr.mxu0 0.0
  %1302 = vmatpush1.msra.mxu0 0.0
  %1303 = vmatprep.subr.mxu0 0.0
  %1304 = vmatpush1.msra.mxu0 0.0
  %1305 = vmatprep.subr.mxu0 0.0
  %1306 = vmatpush1.msra.mxu0 0.0
  %1307 = vmatprep.subr.mxu0 0.0
  %1308 = vmatpush1.msra.mxu0 0.0
  %1309 = vmatprep.subr.mxu0 0.0
  %1310 = vmatpush1.msra.mxu0 0.0
  %1311 = vmatprep.subr.mxu0 0.0
  %1312 = vmatpush1.msra.mxu0 0.0
  %1313 = vmatprep.subr.mxu0 0.0
  %1314 = vmatpush1.msra.mxu0 %v226
  %1315 = vmatprep.subr.mxu0 0.0
  %1316 = vmatpush1.msra.mxu0 %v25
  %1317 = vmatprep.subr.mxu0 0.0
  %1318 = vmatpush1.msra.mxu0 %v24
  %1319 = vmatprep.subr.mxu0 0.0
  %1320 = vmatpush1.msra.mxu0 %v23
  %1321 = vmatprep.subr.mxu0 0.0
  %1322 = vmatpush2.msra.mxu0 0.0
  %1323 = vmatprep.subr.mxu0 0.0
  %1324 = vmatpush2.msra.mxu0 0.0
  %1325 = vmatprep.subr.mxu0 0.0
  %1326 = vmatpush2.msra.mxu0 0.0
  %1327 = vmatprep.subr.mxu0 0.0
  %1328 = vmatpush2.msra.mxu0 0.0
  %1329 = vmatprep.subr.mxu0 0.0
  %1330 = vmatpush2.msra.mxu0 0.0
  %1331 = vmatprep.subr.mxu0 0.0
  %1332 = vmatpush2.msra.mxu0 0.0
  %1333 = vmatprep.subr.mxu0 0.0
  %1334 = vmatpush2.msra.mxu0 0.0
  %1335 = vmatprep.subr.mxu0 0.0
  %1336 = vmatpush2.msra.mxu0 0.0
  %1337 = vmatprep.subr.mxu0 0.0
  %1338 = vmatpush2.msra.mxu0 0.0
  %1339 = vmatprep.subr.mxu0 0.0
  %1340 = vmatpush2.msra.mxu0 0.0
  %1341 = vmatprep.subr.mxu0 0.0
  %1342 = vmatpush2.msra.mxu0 0.0
  %1343 = vmatprep.subr.mxu0 0.0
  %1344 = vmatpush2.msra.mxu0 0.0
  %1345 = vmatprep.subr.mxu0 0.0
  %1346 = vmatpush2.msra.mxu0 0.0
  %1347 = vmatprep.subr.mxu0 0.0
  %1348 = vmatpush2.msra.mxu0 0.0
  %1349 = vmatprep.subr.mxu0 0.0
  %1350 = vmatpush2.msra.mxu0 0.0
  %1351 = vmatprep.subr.mxu0 0.0
  %1352 = vmatpush2.msra.mxu0 0.0
  %1353 = vmatprep.mubr.f32.mxu0 0.0
  %1354 = vmatmul.mubr.f32.gmra.mxu0 %v1143
  %v1355 = vpop.f32.mrf.mxu0
  %v1356 = vadd.f32 0.0, %v1355
  %v1357 = vpop.f32.mrf.mxu0
  %1358 = vmatprep.mubr.f32.mxu0 0.0
  %1359 = vmatmul.mubr.f32.gmra.mxu0 %v1146
  %v1360 = vpop.f32.mrf.mxu0
  %v1361 = vadd.f32 0.0, %v1360
  %v1362 = vpop.f32.mrf.mxu0
  %1363 = vmatprep.mubr.f32.mxu0 0.0
  %1364 = vmatmul.mubr.f32.gmra.mxu0 %v1149
  %v1365 = vpop.f32.mrf.mxu0
  %v1366 = vadd.f32 0.0, %v1365
  %v1367 = vpop.f32.mrf.mxu0
  %1368 = vmatprep.mubr.f32.mxu0 0.0
  %1369 = vmatmul.mubr.f32.gmra.mxu0 %v1152
  %v1370 = vpop.f32.mrf.mxu0
  %v1371 = vadd.f32 0.0, %v1370
  %v1372 = vpop.f32.mrf.mxu0
  %1373 = vmatprep.mubr.f32.mxu0 0.0
  %1374 = vmatmul.mubr.f32.gmra.mxu0 %v1155
  %v1375 = vpop.f32.mrf.mxu0
  %v1376 = vadd.f32 0.0, %v1375
  %v1377 = vpop.f32.mrf.mxu0
  %1378 = vmatprep.mubr.f32.mxu0 0.0
  %1379 = vmatmul.mubr.f32.gmra.mxu0 %v1158
  %v1380 = vpop.f32.mrf.mxu0
  %v1381 = vadd.f32 0.0, %v1380
  %v1382 = vpop.f32.mrf.mxu0
  %1383 = vmatprep.mubr.f32.mxu0 0.0
  %1384 = vmatmul.mubr.f32.gmra.mxu0 %v1161
  %v1385 = vpop.f32.mrf.mxu0
  %v1386 = vadd.f32 0.0, %v1385
  %v1387 = vpop.f32.mrf.mxu0
  %1388 = vmatprep.mubr.f32.mxu0 0.0
  %1389 = vmatmul.mubr.f32.gmra.mxu0 %v1164
  %v1390 = vpop.f32.mrf.mxu0
  %v1391 = vadd.f32 0.0, %v1390
  %v1392 = vpop.f32.mrf.mxu0
  %1393 = vmatprep.mubr.f32.mxu0 0.0
  %1394 = vmatmul.mubr.f32.gmra.mxu0 %v1167
  %v1395 = vpop.f32.mrf.mxu0
  %v1396 = vadd.f32 0.0, %v1395
  %v1397 = vpop.f32.mrf.mxu0
  %1398 = vmatprep.mubr.f32.mxu0 0.0
  %1399 = vmatmul.mubr.f32.gmra.mxu0 %v1170
  %v1400 = vpop.f32.mrf.mxu0
  %v1401 = vadd.f32 0.0, %v1400
  %v1402 = vpop.f32.mrf.mxu0
  %1403 = vmatprep.mubr.f32.mxu0 0.0
  %1404 = vmatmul.mubr.f32.gmra.mxu0 %v1173
  %v1405 = vpop.f32.mrf.mxu0
  %v1406 = vadd.f32 0.0, %v1405
  %v1407 = vpop.f32.mrf.mxu0
  %1408 = vmatprep.mubr.f32.mxu0 0.0
  %1409 = vmatmul.mubr.f32.gmra.mxu0 %v1176
  %v1410 = vpop.f32.mrf.mxu0
  %v1411 = vadd.f32 0.0, %v1410
  %v1412 = vpop.f32.mrf.mxu0
  %1413 = vmatprep.mubr.f32.mxu0 0.0
  %1414 = vmatmul.mubr.f32.gmra.mxu0 %v1179
  %v1415 = vpop.f32.mrf.mxu0
  %v1416 = vadd.f32 0.0, %v1415
  %v1417 = vpop.f32.mrf.mxu0
  %1418 = vmatprep.mubr.f32.mxu0 0.0
  %1419 = vmatmul.mubr.f32.gmra.mxu0 %v1182
  %v1420 = vpop.f32.mrf.mxu0
  %v1421 = vadd.f32 0.0, %v1420
  %v1422 = vpop.f32.mrf.mxu0
  %1423 = vmatprep.mubr.f32.mxu0 0.0
  %1424 = vmatmul.mubr.f32.gmra.mxu0 %v1185
  %v1425 = vpop.f32.mrf.mxu0
  %v1426 = vadd.f32 0.0, %v1425
  %v1427 = vpop.f32.mrf.mxu0
  %1428 = vmatprep.mubr.f32.mxu0 0.0
  %1429 = vmatmul.mubr.f32.gmra.mxu0 %v1188
  %v1430 = vpop.f32.mrf.mxu0
  %v1431 = vadd.f32 0.0, %v1430
  %v1432 = vpop.f32.mrf.mxu0
  %1433 = vmatprep.mubr.f32.mxu0 0.0
  %1434 = vmatmul.mubr.f32.gmra.mxu0 %v1191
  %v1435 = vpop.f32.mrf.mxu0
  %v1436 = vadd.f32 0.0, %v1435
  %v1437 = vpop.f32.mrf.mxu0
  %1438 = vmatprep.mubr.f32.mxu0 0.0
  %1439 = vmatmul.mubr.f32.gmra.mxu0 %v1194
  %v1440 = vpop.f32.mrf.mxu0
  %v1441 = vadd.f32 0.0, %v1440
  %v1442 = vpop.f32.mrf.mxu0
  %1443 = vmatprep.mubr.f32.mxu0 0.0
  %1444 = vmatmul.mubr.f32.gmra.mxu0 %v1197
  %v1445 = vpop.f32.mrf.mxu0
  %v1446 = vadd.f32 0.0, %v1445
  %v1447 = vpop.f32.mrf.mxu0
  %1448 = vmatprep.mubr.f32.mxu0 0.0
  %1449 = vmatmul.mubr.f32.gmra.mxu0 %v1200
  %v1450 = vpop.f32.mrf.mxu0
  %v1451 = vadd.f32 0.0, %v1450
  %v1452 = vpop.f32.mrf.mxu0
  %1453 = vmatprep.mubr.f32.mxu0 0.0
  %1454 = vmatmul.mubr.f32.gmra.mxu0 %v1203
  %v1455 = vpop.f32.mrf.mxu0
  %v1456 = vadd.f32 0.0, %v1455
  %v1457 = vpop.f32.mrf.mxu0
  %1458 = vmatprep.mubr.f32.mxu0 0.0
  %1459 = vmatmul.mubr.f32.gmra.mxu0 %v1206
  %v1460 = vpop.f32.mrf.mxu0
  %v1461 = vadd.f32 0.0, %v1460
  %v1462 = vpop.f32.mrf.mxu0
  %1463 = vmatprep.mubr.f32.mxu0 0.0
  %1464 = vmatmul.mubr.f32.gmra.mxu0 %v1209
  %v1465 = vpop.f32.mrf.mxu0
  %v1466 = vadd.f32 0.0, %v1465
  %v1467 = vpop.f32.mrf.mxu0
  %1468 = vmatprep.mubr.f32.mxu0 0.0
  %1469 = vmatmul.mubr.f32.gmra.mxu0 %v1212
  %v1470 = vpop.f32.mrf.mxu0
  %v1471 = vadd.f32 0.0, %v1470
  %v1472 = vpop.f32.mrf.mxu0
  %1473 = vmatprep.mubr.f32.mxu0 0.0
  %1474 = vmatmul.mubr.f32.gmra.mxu0 %v1215
  %v1475 = vpop.f32.mrf.mxu0
  %v1476 = vadd.f32 0.0, %v1475
  %v1477 = vpop.f32.mrf.mxu0
  %1478 = vmatprep.mubr.f32.mxu0 0.0
  %1479 = vmatmul.mubr.f32.gmra.mxu0 %v1218
  %v1480 = vpop.f32.mrf.mxu0
  %v1481 = vadd.f32 0.0, %v1480
  %v1482 = vpop.f32.mrf.mxu0
  %1483 = vmatprep.mubr.f32.mxu0 0.0
  %1484 = vmatmul.mubr.f32.gmra.mxu0 %v1221
  %v1485 = vpop.f32.mrf.mxu0
  %v1486 = vadd.f32 0.0, %v1485
  %v1487 = vpop.f32.mrf.mxu0
  %1488 = vmatprep.mubr.f32.mxu0 0.0
  %1489 = vmatmul.mubr.f32.gmra.mxu0 %v1224
  %v1490 = vpop.f32.mrf.mxu0
  %v1491 = vadd.f32 0.0, %v1490
  %v1492 = vpop.f32.mrf.mxu0
  %1493 = vmatprep.mubr.f32.mxu0 0.0
  %1494 = vmatmul.mubr.f32.gmra.mxu0 %v1227
  %v1495 = vpop.f32.mrf.mxu0
  %v1496 = vadd.f32 0.0, %v1495
  %v1497 = vpop.f32.mrf.mxu0
  %1498 = vmatprep.mubr.f32.mxu0 0.0
  %1499 = vmatmul.mubr.f32.gmra.mxu0 %v1230
  %v1500 = vpop.f32.mrf.mxu0
  %v1501 = vadd.f32 0.0, %v1500
  %v1502 = vpop.f32.mrf.mxu0
  %1503 = vmatprep.mubr.f32.mxu0 0.0
  %1504 = vmatmul.mubr.f32.gmra.mxu0 %v1233
  %v1505 = vpop.f32.mrf.mxu0
  %v1506 = vadd.f32 0.0, %v1505
  %v1507 = vpop.f32.mrf.mxu0
  %1508 = vmatprep.mubr.f32.mxu0 0.0
  %1509 = vmatmul.mubr.f32.gmra.mxu0 %v1236
  %v1510 = vpop.f32.mrf.mxu0
  %v1511 = vadd.f32 0.0, %v1510
  %v1512 = vpop.f32.mrf.mxu0
  %1513 = vmatprep.mubr.f32.mxu0 0.0
  %1514 = vmatmul.mubr.f32.gmra.mxu0 %v1239
  %v1515 = vpop.f32.mrf.mxu0
  %v1516 = vadd.f32 0.0, %v1515
  %v1517 = vpop.f32.mrf.mxu0
  %1518 = vmatprep.mubr.f32.mxu0 0.0
  %1519 = vmatmul.mubr.f32.gmra.mxu0 %v1242
  %v1520 = vpop.f32.mrf.mxu0
  %v1521 = vadd.f32 0.0, %v1520
  %v1522 = vpop.f32.mrf.mxu0
  %1523 = vmatprep.mubr.f32.mxu0 0.0
  %1524 = vmatmul.mubr.f32.gmra.mxu0 %v1245
  %v1525 = vpop.f32.mrf.mxu0
  %v1526 = vadd.f32 0.0, %v1525
  %v1527 = vpop.f32.mrf.mxu0
  %1528 = vmatprep.mubr.f32.mxu0 0.0
  %1529 = vmatmul.mubr.f32.gmra.mxu0 %v1248
  %v1530 = vpop.f32.mrf.mxu0
  %v1531 = vadd.f32 0.0, %v1530
  %v1532 = vpop.f32.mrf.mxu0
  %1533 = vmatprep.mubr.f32.mxu0 0.0
  %1534 = vmatmul.mubr.f32.gmra.mxu0 %v1251
  %v1535 = vpop.f32.mrf.mxu0
  %v1536 = vadd.f32 0.0, %v1535
  %v1537 = vpop.f32.mrf.mxu0
  %1538 = vmatprep.mubr.f32.mxu0 0.0
  %1539 = vmatmul.mubr.f32.gmra.mxu0 %v1254
  %v1540 = vpop.f32.mrf.mxu0
  %v1541 = vadd.f32 0.0, %v1540
  %v1542 = vpop.f32.mrf.mxu0
  %1543 = vmatprep.mubr.f32.mxu0 0.0
  %1544 = vmatmul.mubr.f32.gmra.mxu0 %v1257
  %v1545 = vpop.f32.mrf.mxu0
  %v1546 = vadd.f32 0.0, %v1545
  %v1547 = vpop.f32.mrf.mxu0
  %1548 = vmatprep.mubr.f32.mxu0 0.0
  %1549 = vmatmul.mubr.f32.gmra.mxu0 %v1260
  %v1550 = vpop.f32.mrf.mxu0
  %v1551 = vadd.f32 0.0, %v1550
  %v1552 = vpop.f32.mrf.mxu0
  %1553 = vmatprep.mubr.f32.mxu0 0.0
  %1554 = vmatmul.mubr.f32.gmra.mxu0 %v1263
  %v1555 = vpop.f32.mrf.mxu0
  %v1556 = vadd.f32 0.0, %v1555
  %v1557 = vpop.f32.mrf.mxu0
  %1558 = vmatprep.mubr.f32.mxu0 0.0
  %1559 = vmatmul.mubr.f32.gmra.mxu0 %v1266
  %v1560 = vpop.f32.mrf.mxu0
  %v1561 = vadd.f32 0.0, %v1560
  %v1562 = vpop.f32.mrf.mxu0
  %1563 = vmatprep.mubr.f32.mxu0 0.0
  %1564 = vmatmul.mubr.f32.gmra.mxu0 %v1269
  %v1565 = vpop.f32.mrf.mxu0
  %v1566 = vadd.f32 0.0, %v1565
  %v1567 = vpop.f32.mrf.mxu0
  %1568 = vmatprep.mubr.f32.mxu0 0.0
  %1569 = vmatmul.mubr.f32.gmra.mxu0 %v1272
  %v1570 = vpop.f32.mrf.mxu0
  %v1571 = vadd.f32 0.0, %v1570
  %v1572 = vpop.f32.mrf.mxu0
  %1573 = vmatprep.mubr.f32.mxu0 0.0
  %1574 = vmatmul.mubr.f32.gmra.mxu0 %v1275
  %v1575 = vpop.f32.mrf.mxu0
  %v1576 = vadd.f32 0.0, %v1575
  %v1577 = vpop.f32.mrf.mxu0
  %1578 = vmatprep.mubr.f32.mxu0 0.0
  %1579 = vmatmul.mubr.f32.gmra.mxu0 %v1278
  %v1580 = vpop.f32.mrf.mxu0
  %v1581 = vadd.f32 0.0, %v1580
  %v1582 = vpop.f32.mrf.mxu0
  %1583 = vmatprep.mubr.f32.mxu0 0.0
  %1584 = vmatmul.mubr.f32.gmra.mxu0 %v1281
  %v1585 = vpop.f32.mrf.mxu0
  %v1586 = vadd.f32 0.0, %v1585
  %v1587 = vpop.f32.mrf.mxu0
  %1588 = vmatprep.mubr.f32.mxu0 0.0
  %1589 = vmatmul.mubr.f32.gmra.mxu0 %v1284
  %v1590 = vpop.f32.mrf.mxu0
  %v1591 = vadd.f32 0.0, %v1590
  %v1592 = vpop.f32.mrf.mxu0
  %1593 = vmatprep.mubr.f32.mxu0 0.0
  %1594 = vmatmul.mubr.f32.gmra.mxu0 %v1287
  %v1595 = vpop.f32.mrf.mxu0
  %v1596 = vadd.f32 0.0, %v1595
  %v1597 = vpop.f32.mrf.mxu0
  %1598 = vdwg.mxu0
  %v1599 = vmax.f32 %v1044, %v1356
  %v1600 = vmax.f32 %v1045, %v1361
  %v1601 = vmax.f32 %v1046, %v1366
  %v1602 = vmax.f32 %v1047, %v1371
  %v1603 = vmax.f32 %v1048, %v1376
  %v1604 = vmax.f32 %v1049, %v1381
  %v1605 = vmax.f32 %v1050, %v1386
  %v1606 = vmax.f32 %v1051, %v1391
  %v1607 = vmax.f32 %v1052, %v1396
  %v1608 = vmax.f32 %v1053, %v1401
  %v1609 = vmax.f32 %v1054, %v1406
  %v1610 = vmax.f32 %v1055, %v1411
  %v1611 = vmax.f32 %v1056, %v1416
  %v1612 = vmax.f32 %v1057, %v1421
  %v1613 = vmax.f32 %v1058, %v1426
  %v1614 = vmax.f32 %v1059, %v1431
  %v1615 = vmax.f32 %v1060, %v1436
  %v1616 = vmax.f32 %v1061, %v1441
  %v1617 = vmax.f32 %v1062, %v1446
  %v1618 = vmax.f32 %v1063, %v1451
  %v1619 = vmax.f32 %v1064, %v1456
  %v1620 = vmax.f32 %v1065, %v1461
  %v1621 = vmax.f32 %v1066, %v1466
  %v1622 = vmax.f32 %v1067, %v1471
  %v1623 = vmax.f32 %v1068, %v1476
  %v1624 = vmax.f32 %v1069, %v1481
  %v1625 = vmax.f32 %v1070, %v1486
  %v1626 = vmax.f32 %v1071, %v1491
  %v1627 = vmax.f32 %v1072, %v1496
  %v1628 = vmax.f32 %v1073, %v1501
  %v1629 = vmax.f32 %v1074, %v1506
  %v1630 = vmax.f32 %v1075, %v1511
  %v1631 = vmax.f32 %v1076, %v1516
  %v1632 = vmax.f32 %v1077, %v1521
  %v1633 = vmax.f32 %v1078, %v1526
  %v1634 = vmax.f32 %v1079, %v1531
  %v1635 = vmax.f32 %v1080, %v1536
  %v1636 = vmax.f32 %v1081, %v1541
  %v1637 = vmax.f32 %v1082, %v1546
  %v1638 = vmax.f32 %v1083, %v1551
  %v1639 = vmax.f32 %v1084, %v1556
  %v1640 = vmax.f32 %v1085, %v1561
  %v1641 = vmax.f32 %v1086, %v1566
  %v1642 = vmax.f32 %v1087, %v1571
  %v1643 = vmax.f32 %v1088, %v1576
  %v1644 = vmax.f32 %v1089, %v1581
  %v1645 = vmax.f32 %v1090, %v1586
  %v1646 = vmax.f32 %v1091, %v1591
  %v1647 = vmax.f32 %v1092, %v1596
  %v1648 = vld [vmem:[%s3] sm:$0xff]
  %v1649 = vld [vmem:[%s3 + $0x8] sm:$0xff]
  %v1650 = vld [vmem:[%s3 + $0x10] sm:$0xff]
  %v1651 = vld [vmem:[%s3 + $0x18] sm:$0xff]
  %v1652 = vld [vmem:[%s3 + $0x20] sm:$0xff]
  %v1653 = vld [vmem:[%s3 + $0x28] sm:$0xff]
  %v1654 = vld [vmem:[%s3 + $0x30] sm:$0xff]
  %v1655 = vld [vmem:[%s3 + $0x38] sm:$0xff]
  %v1656 = vld [vmem:[%s3 + $0x40] sm:$0xff]
  %v1657 = vld [vmem:[%s3 + $0x48] sm:$0xff]
  %v1658 = vld [vmem:[%s3 + $0x50] sm:$0xff]
  %v1659 = vld [vmem:[%s3 + $0x58] sm:$0xff]
  %v1660 = vld [vmem:[%s3 + $0x60] sm:$0xff]
  %v1661 = vld [vmem:[%s3 + $0x68] sm:$0xff]
  %v1662 = vld [vmem:[%s3 + $0x70] sm:$0xff]
  %v1663 = vld [vmem:[%s3 + $0x78] sm:$0xff]
  %v1664 = vld [vmem:[%s3 + $0x80] sm:$0xff]
  %v1665 = vld [vmem:[%s3 + $0x88] sm:$0xff]
  %v1666 = vld [vmem:[%s3 + $0x90] sm:$0xff]
  %v1667 = vld [vmem:[%s3 + $0x98] sm:$0xff]
  %v1668 = vld [vmem:[%s3 + $0xa0] sm:$0xff]
  %v1669 = vld [vmem:[%s3 + $0xa8] sm:$0xff]
  %v1670 = vld [vmem:[%s3 + $0xb0] sm:$0xff]
  %v1671 = vld [vmem:[%s3 + $0xb8] sm:$0xff]
  %v1672 = vld [vmem:[%s3 + $0xc0] sm:$0xff]
  %v1673 = vld [vmem:[%s3 + $0xc8] sm:$0xff]
  %v1674 = vld [vmem:[%s3 + $0xd0] sm:$0xff]
  %v1675 = vld [vmem:[%s3 + $0xd8] sm:$0xff]
  %v1676 = vld [vmem:[%s3 + $0xe0] sm:$0xff]
  %v1677 = vld [vmem:[%s3 + $0xe8] sm:$0xff]
  %v1678 = vld [vmem:[%s3 + $0xf0] sm:$0xff]
  %v1679 = vld [vmem:[%s3 + $0xf8] sm:$0xff]
  %v1680 = vld [vmem:[%s3 + $0x100] sm:$0xff]
  %v1681 = vld [vmem:[%s3 + $0x108] sm:$0xff]
  %v1682 = vld [vmem:[%s3 + $0x110] sm:$0xff]
  %v1683 = vld [vmem:[%s3 + $0x118] sm:$0xff]
  %v1684 = vld [vmem:[%s3 + $0x120] sm:$0xff]
  %v1685 = vld [vmem:[%s3 + $0x128] sm:$0xff]
  %v1686 = vld [vmem:[%s3 + $0x130] sm:$0xff]
  %v1687 = vld [vmem:[%s3 + $0x138] sm:$0xff]
  %v1688 = vld [vmem:[%s3 + $0x140] sm:$0xff]
  %v1689 = vld [vmem:[%s3 + $0x148] sm:$0xff]
  %v1690 = vld [vmem:[%s3 + $0x150] sm:$0xff]
  %v1691 = vld [vmem:[%s3 + $0x158] sm:$0xff]
  %v1692 = vld [vmem:[%s3 + $0x160] sm:$0xff]
  %v1693 = vld [vmem:[%s3 + $0x168] sm:$0xff]
  %v1694 = vld [vmem:[%s3 + $0x170] sm:$0xff]
  %v1695 = vld [vmem:[%s3 + $0x178] sm:$0xff]
  %v1696 = vld [vmem:[%s3 + $0x180] sm:$0xff]
  %v1698 = vsel %vm76, %v1648, 0
  %v1701 = vsel %vm76, %v1649, 0
  %v1704 = vsel %vm76, %v1650, 0
  %v1707 = vsel %vm76, %v1651, 0
  %v1710 = vsel %vm76, %v1652, 0
  %v1713 = vsel %vm76, %v1653, 0
  %v1716 = vsel %vm76, %v1654, 0
  %v1719 = vsel %vm76, %v1655, 0
  %v1722 = vsel %vm76, %v1656, 0
  %v1725 = vsel %vm76, %v1657, 0
  %v1728 = vsel %vm76, %v1658, 0
  %v1731 = vsel %vm76, %v1659, 0
  %v1734 = vsel %vm76, %v1660, 0
  %v1737 = vsel %vm76, %v1661, 0
  %v1740 = vsel %vm76, %v1662, 0
  %v1743 = vsel %vm76, %v1663, 0
  %v1746 = vsel %vm76, %v1664, 0
  %v1749 = vsel %vm76, %v1665, 0
  %v1752 = vsel %vm76, %v1666, 0
  %v1755 = vsel %vm76, %v1667, 0
  %v1758 = vsel %vm76, %v1668, 0
  %v1761 = vsel %vm76, %v1669, 0
  %v1764 = vsel %vm76, %v1670, 0
  %v1767 = vsel %vm76, %v1671, 0
  %v1770 = vsel %vm76, %v1672, 0
  %v1773 = vsel %vm76, %v1673, 0
  %v1776 = vsel %vm76, %v1674, 0
  %v1779 = vsel %vm76, %v1675, 0
  %v1782 = vsel %vm76, %v1676, 0
  %v1785 = vsel %vm76, %v1677, 0
  %v1788 = vsel %vm76, %v1678, 0
  %v1791 = vsel %vm76, %v1679, 0
  %v1794 = vsel %vm76, %v1680, 0
  %v1797 = vsel %vm76, %v1681, 0
  %v1800 = vsel %vm76, %v1682, 0
  %v1803 = vsel %vm76, %v1683, 0
  %v1806 = vsel %vm76, %v1684, 0
  %v1809 = vsel %vm76, %v1685, 0
  %v1812 = vsel %vm76, %v1686, 0
  %v1815 = vsel %vm76, %v1687, 0
  %v1818 = vsel %vm76, %v1688, 0
  %v1821 = vsel %vm76, %v1689, 0
  %v1824 = vsel %vm76, %v1690, 0
  %v1827 = vsel %vm76, %v1691, 0
  %v1830 = vsel %vm76, %v1692, 0
  %v1833 = vsel %vm76, %v1693, 0
  %v1836 = vsel %vm76, %v1694, 0
  %v1839 = vsel %vm76, %v1695, 0
  %v1842 = vsel %vm76, %v1696, 0
  %1844 = vmatprep.subr.mxu0 0.0
  %1845 = vmatpush1.msra.mxu0 0.0
  %1846 = vmatprep.subr.mxu0 0.0
  %1847 = vmatpush1.msra.mxu0 0.0
  %1848 = vmatprep.subr.mxu0 0.0
  %1849 = vmatpush1.msra.mxu0 0.0
  %1850 = vmatprep.subr.mxu0 0.0
  %1851 = vmatpush1.msra.mxu0 0.0
  %1852 = vmatprep.subr.mxu0 0.0
  %1853 = vmatpush1.msra.mxu0 0.0
  %1854 = vmatprep.subr.mxu0 0.0
  %1855 = vmatpush1.msra.mxu0 0.0
  %1856 = vmatprep.subr.mxu0 0.0
  %1857 = vmatpush1.msra.mxu0 0.0
  %1858 = vmatprep.subr.mxu0 0.0
  %1859 = vmatpush1.msra.mxu0 0.0
  %1860 = vmatprep.subr.mxu0 0.0
  %1861 = vmatpush1.msra.mxu0 0.0
  %1862 = vmatprep.subr.mxu0 0.0
  %1863 = vmatpush1.msra.mxu0 0.0
  %1864 = vmatprep.subr.mxu0 0.0
  %1865 = vmatpush1.msra.mxu0 0.0
  %1866 = vmatprep.subr.mxu0 0.0
  %1867 = vmatpush1.msra.mxu0 0.0
  %1868 = vmatprep.subr.mxu0 0.0
  %1869 = vmatpush1.msra.mxu0 %v226
  %1870 = vmatprep.subr.mxu0 0.0
  %1871 = vmatpush1.msra.mxu0 %v25
  %1872 = vmatprep.subr.mxu0 0.0
  %1873 = vmatpush1.msra.mxu0 %v24
  %1874 = vmatprep.subr.mxu0 0.0
  %1875 = vmatpush1.msra.mxu0 %v23
  %1876 = vmatprep.subr.mxu0 0.0
  %1877 = vmatpush2.msra.mxu0 0.0
  %1878 = vmatprep.subr.mxu0 0.0
  %1879 = vmatpush2.msra.mxu0 0.0
  %1880 = vmatprep.subr.mxu0 0.0
  %1881 = vmatpush2.msra.mxu0 0.0
  %1882 = vmatprep.subr.mxu0 0.0
  %1883 = vmatpush2.msra.mxu0 0.0
  %1884 = vmatprep.subr.mxu0 0.0
  %1885 = vmatpush2.msra.mxu0 0.0
  %1886 = vmatprep.subr.mxu0 0.0
  %1887 = vmatpush2.msra.mxu0 0.0
  %1888 = vmatprep.subr.mxu0 0.0
  %1889 = vmatpush2.msra.mxu0 0.0
  %1890 = vmatprep.subr.mxu0 0.0
  %1891 = vmatpush2.msra.mxu0 0.0
  %1892 = vmatprep.subr.mxu0 0.0
  %1893 = vmatpush2.msra.mxu0 0.0
  %1894 = vmatprep.subr.mxu0 0.0
  %1895 = vmatpush2.msra.mxu0 0.0
  %1896 = vmatprep.subr.mxu0 0.0
  %1897 = vmatpush2.msra.mxu0 0.0
  %1898 = vmatprep.subr.mxu0 0.0
  %1899 = vmatpush2.msra.mxu0 0.0
  %1900 = vmatprep.subr.mxu0 0.0
  %1901 = vmatpush2.msra.mxu0 0.0
  %1902 = vmatprep.subr.mxu0 0.0
  %1903 = vmatpush2.msra.mxu0 0.0
  %1904 = vmatprep.subr.mxu0 0.0
  %1905 = vmatpush2.msra.mxu0 0.0
  %1906 = vmatprep.subr.mxu0 0.0
  %1907 = vmatpush2.msra.mxu0 0.0
  %1908 = vmatprep.mubr.f32.mxu0 0.0
  %1909 = vmatmul.mubr.f32.gmra.mxu0 %v1698
  %v1910 = vpop.f32.mrf.mxu0
  %v1911 = vadd.f32 0.0, %v1910
  %v1912 = vpop.f32.mrf.mxu0
  %1913 = vmatprep.mubr.f32.mxu0 0.0
  %1914 = vmatmul.mubr.f32.gmra.mxu0 %v1701
  %v1915 = vpop.f32.mrf.mxu0
  %v1916 = vadd.f32 0.0, %v1915
  %v1917 = vpop.f32.mrf.mxu0
  %1918 = vmatprep.mubr.f32.mxu0 0.0
  %1919 = vmatmul.mubr.f32.gmra.mxu0 %v1704
  %v1920 = vpop.f32.mrf.mxu0
  %v1921 = vadd.f32 0.0, %v1920
  %v1922 = vpop.f32.mrf.mxu0
  %1923 = vmatprep.mubr.f32.mxu0 0.0
  %1924 = vmatmul.mubr.f32.gmra.mxu0 %v1707
  %v1925 = vpop.f32.mrf.mxu0
  %v1926 = vadd.f32 0.0, %v1925
  %v1927 = vpop.f32.mrf.mxu0
  %1928 = vmatprep.mubr.f32.mxu0 0.0
  %1929 = vmatmul.mubr.f32.gmra.mxu0 %v1710
  %v1930 = vpop.f32.mrf.mxu0
  %v1931 = vadd.f32 0.0, %v1930
  %v1932 = vpop.f32.mrf.mxu0
  %1933 = vmatprep.mubr.f32.mxu0 0.0
  %1934 = vmatmul.mubr.f32.gmra.mxu0 %v1713
  %v1935 = vpop.f32.mrf.mxu0
  %v1936 = vadd.f32 0.0, %v1935
  %v1937 = vpop.f32.mrf.mxu0
  %1938 = vmatprep.mubr.f32.mxu0 0.0
  %1939 = vmatmul.mubr.f32.gmra.mxu0 %v1716
  %v1940 = vpop.f32.mrf.mxu0
  %v1941 = vadd.f32 0.0, %v1940
  %v1942 = vpop.f32.mrf.mxu0
  %1943 = vmatprep.mubr.f32.mxu0 0.0
  %1944 = vmatmul.mubr.f32.gmra.mxu0 %v1719
  %v1945 = vpop.f32.mrf.mxu0
  %v1946 = vadd.f32 0.0, %v1945
  %v1947 = vpop.f32.mrf.mxu0
  %1948 = vmatprep.mubr.f32.mxu0 0.0
  %1949 = vmatmul.mubr.f32.gmra.mxu0 %v1722
  %v1950 = vpop.f32.mrf.mxu0
  %v1951 = vadd.f32 0.0, %v1950
  %v1952 = vpop.f32.mrf.mxu0
  %1953 = vmatprep.mubr.f32.mxu0 0.0
  %1954 = vmatmul.mubr.f32.gmra.mxu0 %v1725
  %v1955 = vpop.f32.mrf.mxu0
  %v1956 = vadd.f32 0.0, %v1955
  %v1957 = vpop.f32.mrf.mxu0
  %1958 = vmatprep.mubr.f32.mxu0 0.0
  %1959 = vmatmul.mubr.f32.gmra.mxu0 %v1728
  %v1960 = vpop.f32.mrf.mxu0
  %v1961 = vadd.f32 0.0, %v1960
  %v1962 = vpop.f32.mrf.mxu0
  %1963 = vmatprep.mubr.f32.mxu0 0.0
  %1964 = vmatmul.mubr.f32.gmra.mxu0 %v1731
  %v1965 = vpop.f32.mrf.mxu0
  %v1966 = vadd.f32 0.0, %v1965
  %v1967 = vpop.f32.mrf.mxu0
  %1968 = vmatprep.mubr.f32.mxu0 0.0
  %1969 = vmatmul.mubr.f32.gmra.mxu0 %v1734
  %v1970 = vpop.f32.mrf.mxu0
  %v1971 = vadd.f32 0.0, %v1970
  %v1972 = vpop.f32.mrf.mxu0
  %1973 = vmatprep.mubr.f32.mxu0 0.0
  %1974 = vmatmul.mubr.f32.gmra.mxu0 %v1737
  %v1975 = vpop.f32.mrf.mxu0
  %v1976 = vadd.f32 0.0, %v1975
  %v1977 = vpop.f32.mrf.mxu0
  %1978 = vmatprep.mubr.f32.mxu0 0.0
  %1979 = vmatmul.mubr.f32.gmra.mxu0 %v1740
  %v1980 = vpop.f32.mrf.mxu0
  %v1981 = vadd.f32 0.0, %v1980
  %v1982 = vpop.f32.mrf.mxu0
  %1983 = vmatprep.mubr.f32.mxu0 0.0
  %1984 = vmatmul.mubr.f32.gmra.mxu0 %v1743
  %v1985 = vpop.f32.mrf.mxu0
  %v1986 = vadd.f32 0.0, %v1985
  %v1987 = vpop.f32.mrf.mxu0
  %1988 = vmatprep.mubr.f32.mxu0 0.0
  %1989 = vmatmul.mubr.f32.gmra.mxu0 %v1746
  %v1990 = vpop.f32.mrf.mxu0
  %v1991 = vadd.f32 0.0, %v1990
  %v1992 = vpop.f32.mrf.mxu0
  %1993 = vmatprep.mubr.f32.mxu0 0.0
  %1994 = vmatmul.mubr.f32.gmra.mxu0 %v1749
  %v1995 = vpop.f32.mrf.mxu0
  %v1996 = vadd.f32 0.0, %v1995
  %v1997 = vpop.f32.mrf.mxu0
  %1998 = vmatprep.mubr.f32.mxu0 0.0
  %1999 = vmatmul.mubr.f32.gmra.mxu0 %v1752
  %v2000 = vpop.f32.mrf.mxu0
  %v2001 = vadd.f32 0.0, %v2000
  %v2002 = vpop.f32.mrf.mxu0
  %2003 = vmatprep.mubr.f32.mxu0 0.0
  %2004 = vmatmul.mubr.f32.gmra.mxu0 %v1755
  %v2005 = vpop.f32.mrf.mxu0
  %v2006 = vadd.f32 0.0, %v2005
  %v2007 = vpop.f32.mrf.mxu0
  %2008 = vmatprep.mubr.f32.mxu0 0.0
  %2009 = vmatmul.mubr.f32.gmra.mxu0 %v1758
  %v2010 = vpop.f32.mrf.mxu0
  %v2011 = vadd.f32 0.0, %v2010
  %v2012 = vpop.f32.mrf.mxu0
  %2013 = vmatprep.mubr.f32.mxu0 0.0
  %2014 = vmatmul.mubr.f32.gmra.mxu0 %v1761
  %v2015 = vpop.f32.mrf.mxu0
  %v2016 = vadd.f32 0.0, %v2015
  %v2017 = vpop.f32.mrf.mxu0
  %2018 = vmatprep.mubr.f32.mxu0 0.0
  %2019 = vmatmul.mubr.f32.gmra.mxu0 %v1764
  %v2020 = vpop.f32.mrf.mxu0
  %v2021 = vadd.f32 0.0, %v2020
  %v2022 = vpop.f32.mrf.mxu0
  %2023 = vmatprep.mubr.f32.mxu0 0.0
  %2024 = vmatmul.mubr.f32.gmra.mxu0 %v1767
  %v2025 = vpop.f32.mrf.mxu0
  %v2026 = vadd.f32 0.0, %v2025
  %v2027 = vpop.f32.mrf.mxu0
  %2028 = vmatprep.mubr.f32.mxu0 0.0
  %2029 = vmatmul.mubr.f32.gmra.mxu0 %v1770
  %v2030 = vpop.f32.mrf.mxu0
  %v2031 = vadd.f32 0.0, %v2030
  %v2032 = vpop.f32.mrf.mxu0
  %2033 = vmatprep.mubr.f32.mxu0 0.0
  %2034 = vmatmul.mubr.f32.gmra.mxu0 %v1773
  %v2035 = vpop.f32.mrf.mxu0
  %v2036 = vadd.f32 0.0, %v2035
  %v2037 = vpop.f32.mrf.mxu0
  %2038 = vmatprep.mubr.f32.mxu0 0.0
  %2039 = vmatmul.mubr.f32.gmra.mxu0 %v1776
  %v2040 = vpop.f32.mrf.mxu0
  %v2041 = vadd.f32 0.0, %v2040
  %v2042 = vpop.f32.mrf.mxu0
  %2043 = vmatprep.mubr.f32.mxu0 0.0
  %2044 = vmatmul.mubr.f32.gmra.mxu0 %v1779
  %v2045 = vpop.f32.mrf.mxu0
  %v2046 = vadd.f32 0.0, %v2045
  %v2047 = vpop.f32.mrf.mxu0
  %2048 = vmatprep.mubr.f32.mxu0 0.0
  %2049 = vmatmul.mubr.f32.gmra.mxu0 %v1782
  %v2050 = vpop.f32.mrf.mxu0
  %v2051 = vadd.f32 0.0, %v2050
  %v2052 = vpop.f32.mrf.mxu0
  %2053 = vmatprep.mubr.f32.mxu0 0.0
  %2054 = vmatmul.mubr.f32.gmra.mxu0 %v1785
  %v2055 = vpop.f32.mrf.mxu0
  %v2056 = vadd.f32 0.0, %v2055
  %v2057 = vpop.f32.mrf.mxu0
  %2058 = vmatprep.mubr.f32.mxu0 0.0
  %2059 = vmatmul.mubr.f32.gmra.mxu0 %v1788
  %v2060 = vpop.f32.mrf.mxu0
  %v2061 = vadd.f32 0.0, %v2060
  %v2062 = vpop.f32.mrf.mxu0
  %2063 = vmatprep.mubr.f32.mxu0 0.0
  %2064 = vmatmul.mubr.f32.gmra.mxu0 %v1791
  %v2065 = vpop.f32.mrf.mxu0
  %v2066 = vadd.f32 0.0, %v2065
  %v2067 = vpop.f32.mrf.mxu0
  %2068 = vmatprep.mubr.f32.mxu0 0.0
  %2069 = vmatmul.mubr.f32.gmra.mxu0 %v1794
  %v2070 = vpop.f32.mrf.mxu0
  %v2071 = vadd.f32 0.0, %v2070
  %v2072 = vpop.f32.mrf.mxu0
  %2073 = vmatprep.mubr.f32.mxu0 0.0
  %2074 = vmatmul.mubr.f32.gmra.mxu0 %v1797
  %v2075 = vpop.f32.mrf.mxu0
  %v2076 = vadd.f32 0.0, %v2075
  %v2077 = vpop.f32.mrf.mxu0
  %2078 = vmatprep.mubr.f32.mxu0 0.0
  %2079 = vmatmul.mubr.f32.gmra.mxu0 %v1800
  %v2080 = vpop.f32.mrf.mxu0
  %v2081 = vadd.f32 0.0, %v2080
  %v2082 = vpop.f32.mrf.mxu0
  %2083 = vmatprep.mubr.f32.mxu0 0.0
  %2084 = vmatmul.mubr.f32.gmra.mxu0 %v1803
  %v2085 = vpop.f32.mrf.mxu0
  %v2086 = vadd.f32 0.0, %v2085
  %v2087 = vpop.f32.mrf.mxu0
  %2088 = vmatprep.mubr.f32.mxu0 0.0
  %2089 = vmatmul.mubr.f32.gmra.mxu0 %v1806
  %v2090 = vpop.f32.mrf.mxu0
  %v2091 = vadd.f32 0.0, %v2090
  %v2092 = vpop.f32.mrf.mxu0
  %2093 = vmatprep.mubr.f32.mxu0 0.0
  %2094 = vmatmul.mubr.f32.gmra.mxu0 %v1809
  %v2095 = vpop.f32.mrf.mxu0
  %v2096 = vadd.f32 0.0, %v2095
  %v2097 = vpop.f32.mrf.mxu0
  %2098 = vmatprep.mubr.f32.mxu0 0.0
  %2099 = vmatmul.mubr.f32.gmra.mxu0 %v1812
  %v2100 = vpop.f32.mrf.mxu0
  %v2101 = vadd.f32 0.0, %v2100
  %v2102 = vpop.f32.mrf.mxu0
  %2103 = vmatprep.mubr.f32.mxu0 0.0
  %2104 = vmatmul.mubr.f32.gmra.mxu0 %v1815
  %v2105 = vpop.f32.mrf.mxu0
  %v2106 = vadd.f32 0.0, %v2105
  %v2107 = vpop.f32.mrf.mxu0
  %2108 = vmatprep.mubr.f32.mxu0 0.0
  %2109 = vmatmul.mubr.f32.gmra.mxu0 %v1818
  %v2110 = vpop.f32.mrf.mxu0
  %v2111 = vadd.f32 0.0, %v2110
  %v2112 = vpop.f32.mrf.mxu0
  %2113 = vmatprep.mubr.f32.mxu0 0.0
  %2114 = vmatmul.mubr.f32.gmra.mxu0 %v1821
  %v2115 = vpop.f32.mrf.mxu0
  %v2116 = vadd.f32 0.0, %v2115
  %v2117 = vpop.f32.mrf.mxu0
  %2118 = vmatprep.mubr.f32.mxu0 0.0
  %2119 = vmatmul.mubr.f32.gmra.mxu0 %v1824
  %v2120 = vpop.f32.mrf.mxu0
  %v2121 = vadd.f32 0.0, %v2120
  %v2122 = vpop.f32.mrf.mxu0
  %2123 = vmatprep.mubr.f32.mxu0 0.0
  %2124 = vmatmul.mubr.f32.gmra.mxu0 %v1827
  %v2125 = vpop.f32.mrf.mxu0
  %v2126 = vadd.f32 0.0, %v2125
  %v2127 = vpop.f32.mrf.mxu0
  %2128 = vmatprep.mubr.f32.mxu0 0.0
  %2129 = vmatmul.mubr.f32.gmra.mxu0 %v1830
  %v2130 = vpop.f32.mrf.mxu0
  %v2131 = vadd.f32 0.0, %v2130
  %v2132 = vpop.f32.mrf.mxu0
  %2133 = vmatprep.mubr.f32.mxu0 0.0
  %2134 = vmatmul.mubr.f32.gmra.mxu0 %v1833
  %v2135 = vpop.f32.mrf.mxu0
  %v2136 = vadd.f32 0.0, %v2135
  %v2137 = vpop.f32.mrf.mxu0
  %2138 = vmatprep.mubr.f32.mxu0 0.0
  %2139 = vmatmul.mubr.f32.gmra.mxu0 %v1836
  %v2140 = vpop.f32.mrf.mxu0
  %v2141 = vadd.f32 0.0, %v2140
  %v2142 = vpop.f32.mrf.mxu0
  %2143 = vmatprep.mubr.f32.mxu0 0.0
  %2144 = vmatmul.mubr.f32.gmra.mxu0 %v1839
  %v2145 = vpop.f32.mrf.mxu0
  %v2146 = vadd.f32 0.0, %v2145
  %v2147 = vpop.f32.mrf.mxu0
  %2148 = vmatprep.mubr.f32.mxu0 0.0
  %2149 = vmatmul.mubr.f32.gmra.mxu0 %v1842
  %v2150 = vpop.f32.mrf.mxu0
  %v2151 = vadd.f32 0.0, %v2150
  %v2152 = vpop.f32.mrf.mxu0
  %2153 = vdwg.mxu0
  %v2154 = vmax.f32 %v1599, %v1911
  %v2155 = vmax.f32 %v1600, %v1916
  %v2156 = vmax.f32 %v1601, %v1921
  %v2157 = vmax.f32 %v1602, %v1926
  %v2158 = vmax.f32 %v1603, %v1931
  %v2159 = vmax.f32 %v1604, %v1936
  %v2160 = vmax.f32 %v1605, %v1941
  %v2161 = vmax.f32 %v1606, %v1946
  %v2162 = vmax.f32 %v1607, %v1951
  %v2163 = vmax.f32 %v1608, %v1956
  %v2164 = vmax.f32 %v1609, %v1961
  %v2165 = vmax.f32 %v1610, %v1966
  %v2166 = vmax.f32 %v1611, %v1971
  %v2167 = vmax.f32 %v1612, %v1976
  %v2168 = vmax.f32 %v1613, %v1981
  %v2169 = vmax.f32 %v1614, %v1986
  %v2170 = vmax.f32 %v1615, %v1991
  %v2171 = vmax.f32 %v1616, %v1996
  %v2172 = vmax.f32 %v1617, %v2001
  %v2173 = vmax.f32 %v1618, %v2006
  %v2174 = vmax.f32 %v1619, %v2011
  %v2175 = vmax.f32 %v1620, %v2016
  %v2176 = vmax.f32 %v1621, %v2021
  %v2177 = vmax.f32 %v1622, %v2026
  %v2178 = vmax.f32 %v1623, %v2031
  %v2179 = vmax.f32 %v1624, %v2036
  %v2180 = vmax.f32 %v1625, %v2041
  %v2181 = vmax.f32 %v1626, %v2046
  %v2182 = vmax.f32 %v1627, %v2051
  %v2183 = vmax.f32 %v1628, %v2056
  %v2184 = vmax.f32 %v1629, %v2061
  %v2185 = vmax.f32 %v1630, %v2066
  %v2186 = vmax.f32 %v1631, %v2071
  %v2187 = vmax.f32 %v1632, %v2076
  %v2188 = vmax.f32 %v1633, %v2081
  %v2189 = vmax.f32 %v1634, %v2086
  %v2190 = vmax.f32 %v1635, %v2091
  %v2191 = vmax.f32 %v1636, %v2096
  %v2192 = vmax.f32 %v1637, %v2101
  %v2193 = vmax.f32 %v1638, %v2106
  %v2194 = vmax.f32 %v1639, %v2111
  %v2195 = vmax.f32 %v1640, %v2116
  %v2196 = vmax.f32 %v1641, %v2121
  %v2197 = vmax.f32 %v1642, %v2126
  %v2198 = vmax.f32 %v1643, %v2131
  %v2199 = vmax.f32 %v1644, %v2136
  %v2200 = vmax.f32 %v1645, %v2141
  %v2201 = vmax.f32 %v1646, %v2146
  %v2202 = vmax.f32 %v1647, %v2151
  %v2203 = vld [vmem:[%s5] sm:$0x1]
  %v2205 = vlaneseq
  %v2206 = vshrl.u32 %v2205, 7
  %v2207 = vsub.s32 0, %v2206
  %v2208 = vrot.slane %v2203, %v2207
  %v2210 = vadd.f32 %v2154, %v2208
  %v2211 = vadd.f32 %v2155, %v2208
  %v2212 = vadd.f32 %v2156, %v2208
  %v2213 = vadd.f32 %v2157, %v2208
  %v2214 = vadd.f32 %v2158, %v2208
  %v2215 = vadd.f32 %v2159, %v2208
  %v2216 = vadd.f32 %v2160, %v2208
  %v2217 = vadd.f32 %v2161, %v2208
  %v2218 = vadd.f32 %v2162, %v2208
  %v2219 = vadd.f32 %v2163, %v2208
  %v2220 = vadd.f32 %v2164, %v2208
  %v2221 = vadd.f32 %v2165, %v2208
  %v2222 = vadd.f32 %v2166, %v2208
  %v2223 = vadd.f32 %v2167, %v2208
  %v2224 = vadd.f32 %v2168, %v2208
  %v2225 = vadd.f32 %v2169, %v2208
  %v2226 = vadd.f32 %v2170, %v2208
  %v2227 = vadd.f32 %v2171, %v2208
  %v2228 = vadd.f32 %v2172, %v2208
  %v2229 = vadd.f32 %v2173, %v2208
  %v2230 = vadd.f32 %v2174, %v2208
  %v2231 = vadd.f32 %v2175, %v2208
  %v2232 = vadd.f32 %v2176, %v2208
  %v2233 = vadd.f32 %v2177, %v2208
  %v2234 = vadd.f32 %v2178, %v2208
  %v2235 = vadd.f32 %v2179, %v2208
  %v2236 = vadd.f32 %v2180, %v2208
  %v2237 = vadd.f32 %v2181, %v2208
  %v2238 = vadd.f32 %v2182, %v2208
  %v2239 = vadd.f32 %v2183, %v2208
  %v2240 = vadd.f32 %v2184, %v2208
  %v2241 = vadd.f32 %v2185, %v2208
  %v2242 = vadd.f32 %v2186, %v2208
  %v2243 = vadd.f32 %v2187, %v2208
  %v2244 = vadd.f32 %v2188, %v2208
  %v2245 = vadd.f32 %v2189, %v2208
  %v2246 = vadd.f32 %v2190, %v2208
  %v2247 = vadd.f32 %v2191, %v2208
  %v2248 = vadd.f32 %v2192, %v2208
  %v2249 = vadd.f32 %v2193, %v2208
  %v2250 = vadd.f32 %v2194, %v2208
  %v2251 = vadd.f32 %v2195, %v2208
  %v2252 = vadd.f32 %v2196, %v2208
  %v2253 = vadd.f32 %v2197, %v2208
  %v2254 = vadd.f32 %v2198, %v2208
  %v2255 = vadd.f32 %v2199, %v2208
  %v2256 = vadd.f32 %v2200, %v2208
  %v2257 = vadd.f32 %v2201, %v2208
  %v2258 = vadd.f32 %v2202, %v2208
  %v2259 = vmax.f32 %v2210, 0.0
  %v2260 = vmax.f32 %v2211, 0.0
  %v2261 = vmax.f32 %v2212, 0.0
  %v2262 = vmax.f32 %v2213, 0.0
  %v2263 = vmax.f32 %v2214, 0.0
  %v2264 = vmax.f32 %v2215, 0.0
  %v2265 = vmax.f32 %v2216, 0.0
  %v2266 = vmax.f32 %v2217, 0.0
  %v2267 = vmax.f32 %v2218, 0.0
  %v2268 = vmax.f32 %v2219, 0.0
  %v2269 = vmax.f32 %v2220, 0.0
  %v2270 = vmax.f32 %v2221, 0.0
  %v2271 = vmax.f32 %v2222, 0.0
  %v2272 = vmax.f32 %v2223, 0.0
  %v2273 = vmax.f32 %v2224, 0.0
  %v2274 = vmax.f32 %v2225, 0.0
  %v2275 = vmax.f32 %v2226, 0.0
  %v2276 = vmax.f32 %v2227, 0.0
  %v2277 = vmax.f32 %v2228, 0.0
  %v2278 = vmax.f32 %v2229, 0.0
  %v2279 = vmax.f32 %v2230, 0.0
  %v2280 = vmax.f32 %v2231, 0.0
  %v2281 = vmax.f32 %v2232, 0.0
  %v2282 = vmax.f32 %v2233, 0.0
  %v2283 = vmax.f32 %v2234, 0.0
  %v2284 = vmax.f32 %v2235, 0.0
  %v2285 = vmax.f32 %v2236, 0.0
  %v2286 = vmax.f32 %v2237, 0.0
  %v2287 = vmax.f32 %v2238, 0.0
  %v2288 = vmax.f32 %v2239, 0.0
  %v2289 = vmax.f32 %v2240, 0.0
  %v2290 = vmax.f32 %v2241, 0.0
  %v2291 = vmax.f32 %v2242, 0.0
  %v2292 = vmax.f32 %v2243, 0.0
  %v2293 = vmax.f32 %v2244, 0.0
  %v2294 = vmax.f32 %v2245, 0.0
  %v2295 = vmax.f32 %v2246, 0.0
  %v2296 = vmax.f32 %v2247, 0.0
  %v2297 = vmax.f32 %v2248, 0.0
  %v2298 = vmax.f32 %v2249, 0.0
  %v2299 = vmax.f32 %v2250, 0.0
  %v2300 = vmax.f32 %v2251, 0.0
  %v2301 = vmax.f32 %v2252, 0.0
  %v2302 = vmax.f32 %v2253, 0.0
  %v2303 = vmax.f32 %v2254, 0.0
  %v2304 = vmax.f32 %v2255, 0.0
  %v2305 = vmax.f32 %v2256, 0.0
  %v2306 = vmax.f32 %v2257, 0.0
  %v2307 = vmax.f32 %v2258, 0.0
  %2308 = vst [vmem:[%s6] sm:$0xff] %v2259
  %2309 = vst [vmem:[%s6 + $0x8] sm:$0xff] %v2260
  %2310 = vst [vmem:[%s6 + $0x10] sm:$0xff] %v2261
  %2311 = vst [vmem:[%s6 + $0x18] sm:$0xff] %v2262
  %2312 = vst [vmem:[%s6 + $0x20] sm:$0xff] %v2263
  %2313 = vst [vmem:[%s6 + $0x28] sm:$0xff] %v2264
  %2314 = vst [vmem:[%s6 + $0x30] sm:$0xff] %v2265
  %2315 = vst [vmem:[%s6 + $0x38] sm:$0xff] %v2266
  %2316 = vst [vmem:[%s6 + $0x40] sm:$0xff] %v2267
  %2317 = vst [vmem:[%s6 + $0x48] sm:$0xff] %v2268
  %2318 = vst [vmem:[%s6 + $0x50] sm:$0xff] %v2269
  %2319 = vst [vmem:[%s6 + $0x58] sm:$0xff] %v2270
  %2320 = vst [vmem:[%s6 + $0x60] sm:$0xff] %v2271
  %2321 = vst [vmem:[%s6 + $0x68] sm:$0xff] %v2272
  %2322 = vst [vmem:[%s6 + $0x70] sm:$0xff] %v2273
  %2323 = vst [vmem:[%s6 + $0x78] sm:$0xff] %v2274
  %2324 = vst [vmem:[%s6 + $0x80] sm:$0xff] %v2275
  %2325 = vst [vmem:[%s6 + $0x88] sm:$0xff] %v2276
  %2326 = vst [vmem:[%s6 + $0x90] sm:$0xff] %v2277
  %2327 = vst [vmem:[%s6 + $0x98] sm:$0xff] %v2278
  %2328 = vst [vmem:[%s6 + $0xa0] sm:$0xff] %v2279
  %2329 = vst [vmem:[%s6 + $0xa8] sm:$0xff] %v2280
  %2330 = vst [vmem:[%s6 + $0xb0] sm:$0xff] %v2281
  %2331 = vst [vmem:[%s6 + $0xb8] sm:$0xff] %v2282
  %2332 = vst [vmem:[%s6 + $0xc0] sm:$0xff] %v2283
  %2333 = vst [vmem:[%s6 + $0xc8] sm:$0xff] %v2284
  %2334 = vst [vmem:[%s6 + $0xd0] sm:$0xff] %v2285
  %2335 = vst [vmem:[%s6 + $0xd8] sm:$0xff] %v2286
  %2336 = vst [vmem:[%s6 + $0xe0] sm:$0xff] %v2287
  %2337 = vst [vmem:[%s6 + $0xe8] sm:$0xff] %v2288
  %2338 = vst [vmem:[%s6 + $0xf0] sm:$0xff] %v2289
  %2339 = vst [vmem:[%s6 + $0xf8] sm:$0xff] %v2290
  %2340 = vst [vmem:[%s6 + $0x100] sm:$0xff] %v2291
  %2341 = vst [vmem:[%s6 + $0x108] sm:$0xff] %v2292
  %2342 = vst [vmem:[%s6 + $0x110] sm:$0xff] %v2293
  %2343 = vst [vmem:[%s6 + $0x118] sm:$0xff] %v2294
  %2344 = vst [vmem:[%s6 + $0x120] sm:$0xff] %v2295
  %2345 = vst [vmem:[%s6 + $0x128] sm:$0xff] %v2296
  %2346 = vst [vmem:[%s6 + $0x130] sm:$0xff] %v2297
  %2347 = vst [vmem:[%s6 + $0x138] sm:$0xff] %v2298
  %2348 = vst [vmem:[%s6 + $0x140] sm:$0xff] %v2299
  %2349 = vst [vmem:[%s6 + $0x148] sm:$0xff] %v2300
  %2350 = vst [vmem:[%s6 + $0x150] sm:$0xff] %v2301
  %2351 = vst [vmem:[%s6 + $0x158] sm:$0xff] %v2302
  %2352 = vst [vmem:[%s6 + $0x160] sm:$0xff] %v2303
  %2353 = vst [vmem:[%s6 + $0x168] sm:$0xff] %v2304
  %2354 = vst [vmem:[%s6 + $0x170] sm:$0xff] %v2305
  %2355 = vst [vmem:[%s6 + $0x178] sm:$0xff] %v2306
  %2356 = vst [vmem:[%s6 + $0x180] sm:$0xff] %v2307
  // Predicated region
  $region26: #{lenet5_mcdropout_forward.3} parent=0 // pred_check
    _
  $region27: #{lenet5_mcdropout_forward.3} parent=0 // pred_check_branch
    %2358 = sbr.rel (0) target = $region29
  $region28: #{lenet5_mcdropout_forward.3} parent=0 // pred_region
    _
  $region29: #{lenet5_mcdropout_forward.3} parent=0 // pred_fallthru
    _
  // Predicated region
  $region30: #{lenet5_mcdropout_forward.3} parent=0 // pred_check
    _
  $region31: #{lenet5_mcdropout_forward.3} parent=0 // pred_check_branch
    %2360 = sbr.rel (0) target = $region33
  $region32: #{lenet5_mcdropout_forward.3} parent=0 // pred_region
    _
  $region33: #{lenet5_mcdropout_forward.3} parent=0 // pred_fallthru
    _

// kernel: lenet5_mcdropout_forward.4
$region0: #{lenet5_mcdropout_forward.4}
  #allocation0 [shape = 'u32[]', space=smem, size = 0x4, offset = 0x4, fixed_abs, tag = 'smem constant byte address 0x4 - core index']
  #allocation1 [shape = 'u32[144,128]{1,0:T(1,128)}', space=vmem, size = 0x12000, scoped, tag = 'internal scratch']
  %s0 = inlined_call_operand.vmem [shape: f32[50,150], index: 0, kind: input, shape index: {}]
  %s1 = inlined_call_operand.vmem [shape: f32[50,150], index: 1, kind: input, shape index: {}]
  %s2 = inlined_call_operand.vmem [shape: f32[50,150], index: 2, kind: input, shape index: {}]
  %s3 = inlined_call_operand.vmem [shape: f32[50,150], index: 3, kind: input, shape index: {}]
  %s4 = inlined_call_operand.vmem [shape: f32[150,128], index: 4, kind: input, shape index: {}]
  %s5 = inlined_call_operand.vmem [shape: f32[1,128], index: 5, kind: input, shape index: {}]
  %s6 = inlined_call_operand.vmem [shape: f32[50,128], index: 6, kind: output, shape index: {}]
  %s7 = sld [smem:[#allocation0]]
  $region34: #{lenet5_mcdropout_forward.4} parent=0
    _
  %s9 = ssub.s32 1, %s7
  %s10 = scalar_select 0, %s9, %s7
  // Predicated region
  $region2: #{lenet5_mcdropout_forward.4} parent=0 // pred_check
    _
  $region3: #{lenet5_mcdropout_forward.4} parent=0 // pred_check_branch
    %12 = sbr.rel (0) target = $region5
  $region4: #{lenet5_mcdropout_forward.4} parent=0 // pred_region
    _
  $region5: #{lenet5_mcdropout_forward.4} parent=0 // pred_fallthru
    _
  // Predicated region
  $region6: #{lenet5_mcdropout_forward.4} parent=0 // pred_check
    _
  $region7: #{lenet5_mcdropout_forward.4} parent=0 // pred_check_branch
    %14 = sbr.rel (0) target = $region9
  $region8: #{lenet5_mcdropout_forward.4} parent=0 // pred_region
    _
  $region9: #{lenet5_mcdropout_forward.4} parent=0 // pred_fallthru
    _
  // Predicated region
  $region10: #{lenet5_mcdropout_forward.4} parent=0 // pred_check
    _
  $region11: #{lenet5_mcdropout_forward.4} parent=0 // pred_check_branch
    %16 = sbr.rel (0) target = $region13
  $region12: #{lenet5_mcdropout_forward.4} parent=0 // pred_region
    _
  $region13: #{lenet5_mcdropout_forward.4} parent=0 // pred_fallthru
    _
  // Predicated region
  $region14: #{lenet5_mcdropout_forward.4} parent=0 // pred_check
    _
  $region15: #{lenet5_mcdropout_forward.4} parent=0 // pred_check_branch
    %18 = sbr.rel (0) target = $region17
  $region16: #{lenet5_mcdropout_forward.4} parent=0 // pred_region
    _
  $region17: #{lenet5_mcdropout_forward.4} parent=0 // pred_fallthru
    _
  // Predicated region
  $region18: #{lenet5_mcdropout_forward.4} parent=0 // pred_check
    _
  $region19: #{lenet5_mcdropout_forward.4} parent=0 // pred_check_branch
    %20 = sbr.rel (0) target = $region21
  $region20: #{lenet5_mcdropout_forward.4} parent=0 // pred_region
    _
  $region21: #{lenet5_mcdropout_forward.4} parent=0 // pred_fallthru
    _
  // Predicated region
  $region22: #{lenet5_mcdropout_forward.4} parent=0 // pred_check
    _
  $region23: #{lenet5_mcdropout_forward.4} parent=0 // pred_check_branch
    %22 = sbr.rel (0) target = $region25
  $region24: #{lenet5_mcdropout_forward.4} parent=0 // pred_region
    _
  $region25: #{lenet5_mcdropout_forward.4} parent=0 // pred_fallthru
    _
  %v23 = vld [vmem:[%s4] sm:$0xff]
  %v24 = vld [vmem:[%s4 + $0x8] sm:$0xff]
  %v25 = vld [vmem:[%s4 + $0x10] sm:$0xff]
  %v26 = vld [vmem:[%s4 + $0x18] sm:$0xff]
  %v27 = vld [vmem:[%s4 + $0x20] sm:$0xff]
  %v28 = vld [vmem:[%s4 + $0x28] sm:$0xff]
  %v29 = vld [vmem:[%s4 + $0x30] sm:$0xff]
  %v30 = vld [vmem:[%s4 + $0x38] sm:$0xff]
  %v31 = vld [vmem:[%s4 + $0x40] sm:$0xff]
  %v32 = vld [vmem:[%s4 + $0x48] sm:$0xff]
  %v33 = vld [vmem:[%s4 + $0x50] sm:$0xff]
  %v34 = vld [vmem:[%s4 + $0x58] sm:$0xff]
  %v35 = vld [vmem:[%s4 + $0x60] sm:$0xff]
  %v36 = vld [vmem:[%s4 + $0x68] sm:$0xff]
  %v37 = vld [vmem:[%s4 + $0x70] sm:$0xff]
  %v38 = vld [vmem:[%s4 + $0x78] sm:$0xff]
  %v39 = vld [vmem:[%s4 + $0x80] sm:$0xff]
  %v40 = vld [vmem:[%s4 + $0x88] sm:$0xff]
  %v41 = vld [vmem:[%s4 + $0x90] sm:$0x3f]
  %v42 = vld [vmem:[%s0] sm:$0xff]
  %v43 = vld [vmem:[%s0 + $0x8] sm:$0xff]
  %v44 = vld [vmem:[%s0 + $0x10] sm:$0xff]
  %v45 = vld [vmem:[%s0 + $0x18] sm:$0xff]
  %v46 = vld [vmem:[%s0 + $0x20] sm:$0xff]
  %v47 = vld [vmem:[%s0 + $0x28] sm:$0xff]
  %v48 = vld [vmem:[%s0 + $0x30] sm:$0xff]
  %v49 = vld [vmem:[%s0 + $0x38] sm:$0xff]
  %v50 = vld [vmem:[%s0 + $0x40] sm:$0xff]
  %v51 = vld [vmem:[%s0 + $0x48] sm:$0xff]
  %v52 = vld [vmem:[%s0 + $0x50] sm:$0xff]
  %v53 = vld [vmem:[%s0 + $0x58] sm:$0xff]
  %v54 = vld [vmem:[%s0 + $0x60] sm:$0x3]
  %v55 = vld [vmem:[%s0 + $0x68] sm:$0x3]
  %vm56 = vcmask 179200
  %v58 = vsel %vm56, %v43, 0
  %v61 = vsel %vm56, %v45, 0
  %v64 = vsel %vm56, %v47, 0
  %v67 = vsel %vm56, %v49, 0
  %v70 = vsel %vm56, %v51, 0
  %v73 = vsel %vm56, %v53, 0
  %v76 = vsel %vm56, %v55, 0
  %vm78 = vcmask 1045504
  %v80 = vsel %vm78, %v41, 0
  %82 = vmatprep.subr.mxu0 0.0
  %83 = vmatpush1.msra.mxu0 %v38
  %84 = vmatprep.subr.mxu0 0.0
  %85 = vmatpush1.msra.mxu0 %v37
  %86 = vmatprep.subr.mxu0 0.0
  %87 = vmatpush1.msra.mxu0 %v36
  %88 = vmatprep.subr.mxu0 0.0
  %89 = vmatpush1.msra.mxu0 %v35
  %90 = vmatprep.subr.mxu0 0.0
  %91 = vmatpush1.msra.mxu0 %v34
  %92 = vmatprep.subr.mxu0 0.0
  %93 = vmatpush1.msra.mxu0 %v33
  %94 = vmatprep.subr.mxu0 0.0
  %95 = vmatpush1.msra.mxu0 %v32
  %96 = vmatprep.subr.mxu0 0.0
  %97 = vmatpush1.msra.mxu0 %v31
  %98 = vmatprep.subr.mxu0 0.0
  %99 = vmatpush1.msra.mxu0 %v30
  %100 = vmatprep.subr.mxu0 0.0
  %101 = vmatpush1.msra.mxu0 %v29
  %102 = vmatprep.subr.mxu0 0.0
  %103 = vmatpush1.msra.mxu0 %v28
  %104 = vmatprep.subr.mxu0 0.0
  %105 = vmatpush1.msra.mxu0 %v27
  %106 = vmatprep.subr.mxu0 0.0
  %107 = vmatpush1.msra.mxu0 %v26
  %108 = vmatprep.subr.mxu0 0.0
  %109 = vmatpush1.msra.mxu0 %v25
  %110 = vmatprep.subr.mxu0 0.0
  %111 = vmatpush1.msra.mxu0 %v24
  %112 = vmatprep.subr.mxu0 0.0
  %113 = vmatpush1.msra.mxu0 %v23
  %114 = vmatprep.subr.mxu0 0.0
  %115 = vmatpush2.msra.mxu0 0.0
  %116 = vmatprep.subr.mxu0 0.0
  %117 = vmatpush2.msra.mxu0 0.0
  %118 = vmatprep.subr.mxu0 0.0
  %119 = vmatpush2.msra.mxu0 0.0
  %120 = vmatprep.subr.mxu0 0.0
  %121 = vmatpush2.msra.mxu0 0.0
  %122 = vmatprep.subr.mxu0 0.0
  %123 = vmatpush2.msra.mxu0 0.0
  %124 = vmatprep.subr.mxu0 0.0
  %125 = vmatpush2.msra.mxu0 0.0
  %126 = vmatprep.subr.mxu0 0.0
  %127 = vmatpush2.msra.mxu0 0.0
  %128 = vmatprep.subr.mxu0 0.0
  %129 = vmatpush2.msra.mxu0 0.0
  %130 = vmatprep.subr.mxu0 0.0
  %131 = vmatpush2.msra.mxu0 0.0
  %132 = vmatprep.subr.mxu0 0.0
  %133 = vmatpush2.msra.mxu0 0.0
  %134 = vmatprep.subr.mxu0 0.0
  %135 = vmatpush2.msra.mxu0 0.0
  %136 = vmatprep.subr.mxu0 0.0
  %137 = vmatpush2.msra.mxu0 0.0
  %138 = vmatprep.subr.mxu0 0.0
  %139 = vmatpush2.msra.mxu0 0.0
  %140 = vmatprep.subr.mxu0 0.0
  %141 = vmatpush2.msra.mxu0 %v80
  %142 = vmatprep.subr.mxu0 0.0
  %143 = vmatpush2.msra.mxu0 %v40
  %144 = vmatprep.subr.mxu0 0.0
  %145 = vmatpush2.msra.mxu0 %v39
  %146 = vmatprep.mubr.f32.mxu0 %v58
  %147 = vmatmul.mubr.f32.gmra.mxu0 %v42
  %v148 = vpop.f32.mrf.mxu0
  %v149 = vadd.f32 0.0, %v148
  %v150 = vpop.f32.mrf.mxu0
  %151 = vmatprep.mubr.f32.mxu0 %v61
  %152 = vmatmul.mubr.f32.gmra.mxu0 %v44
  %v153 = vpop.f32.mrf.mxu0
  %v154 = vadd.f32 0.0, %v153
  %v155 = vpop.f32.mrf.mxu0
  %156 = vmatprep.mubr.f32.mxu0 %v64
  %157 = vmatmul.mubr.f32.gmra.mxu0 %v46
  %v158 = vpop.f32.mrf.mxu0
  %v159 = vadd.f32 0.0, %v158
  %v160 = vpop.f32.mrf.mxu0
  %161 = vmatprep.mubr.f32.mxu0 %v67
  %162 = vmatmul.mubr.f32.gmra.mxu0 %v48
  %v163 = vpop.f32.mrf.mxu0
  %v164 = vadd.f32 0.0, %v163
  %v165 = vpop.f32.mrf.mxu0
  %166 = vmatprep.mubr.f32.mxu0 %v70
  %167 = vmatmul.mubr.f32.gmra.mxu0 %v50
  %v168 = vpop.f32.mrf.mxu0
  %v169 = vadd.f32 0.0, %v168
  %v170 = vpop.f32.mrf.mxu0
  %171 = vmatprep.mubr.f32.mxu0 %v73
  %172 = vmatmul.mubr.f32.gmra.mxu0 %v52
  %v173 = vpop.f32.mrf.mxu0
  %v174 = vadd.f32 0.0, %v173
  %v175 = vpop.f32.mrf.mxu0
  %176 = vmatprep.mubr.f32.mxu0 %v76
  %177 = vmatmul.mubr.f32.gmra.mxu0 %v54
  %v178 = vpop.f32.mrf.mxu0
  %v179 = vadd.f32 0.0, %v178
  %v180 = vpop.f32.mrf.mxu0
  %181 = vdwg.mxu0
  %v182 = vld [vmem:[%s1] sm:$0xff]
  %v183 = vld [vmem:[%s1 + $0x8] sm:$0xff]
  %v184 = vld [vmem:[%s1 + $0x10] sm:$0xff]
  %v185 = vld [vmem:[%s1 + $0x18] sm:$0xff]
  %v186 = vld [vmem:[%s1 + $0x20] sm:$0xff]
  %v187 = vld [vmem:[%s1 + $0x28] sm:$0xff]
  %v188 = vld [vmem:[%s1 + $0x30] sm:$0xff]
  %v189 = vld [vmem:[%s1 + $0x38] sm:$0xff]
  %v190 = vld [vmem:[%s1 + $0x40] sm:$0xff]
  %v191 = vld [vmem:[%s1 + $0x48] sm:$0xff]
  %v192 = vld [vmem:[%s1 + $0x50] sm:$0xff]
  %v193 = vld [vmem:[%s1 + $0x58] sm:$0xff]
  %v194 = vld [vmem:[%s1 + $0x60] sm:$0x3]
  %v195 = vld [vmem:[%s1 + $0x68] sm:$0x3]
  %v197 = vsel %vm56, %v183, 0
  %v200 = vsel %vm56, %v185, 0
  %v203 = vsel %vm56, %v187, 0
  %v206 = vsel %vm56, %v189, 0
  %v209 = vsel %vm56, %v191, 0
  %v212 = vsel %vm56, %v193, 0
  %v215 = vsel %vm56, %v195, 0
  %217 = vmatprep.subr.mxu0 0.0
  %218 = vmatpush1.msra.mxu0 %v38
  %219 = vmatprep.subr.mxu0 0.0
  %220 = vmatpush1.msra.mxu0 %v37
  %221 = vmatprep.subr.mxu0 0.0
  %222 = vmatpush1.msra.mxu0 %v36
  %223 = vmatprep.subr.mxu0 0.0
  %224 = vmatpush1.msra.mxu0 %v35
  %225 = vmatprep.subr.mxu0 0.0
  %226 = vmatpush1.msra.mxu0 %v34
  %227 = vmatprep.subr.mxu0 0.0
  %228 = vmatpush1.msra.mxu0 %v33
  %229 = vmatprep.subr.mxu0 0.0
  %230 = vmatpush1.msra.mxu0 %v32
  %231 = vmatprep.subr.mxu0 0.0
  %232 = vmatpush1.msra.mxu0 %v31
  %233 = vmatprep.subr.mxu0 0.0
  %234 = vmatpush1.msra.mxu0 %v30
  %235 = vmatprep.subr.mxu0 0.0
  %236 = vmatpush1.msra.mxu0 %v29
  %237 = vmatprep.subr.mxu0 0.0
  %238 = vmatpush1.msra.mxu0 %v28
  %239 = vmatprep.subr.mxu0 0.0
  %240 = vmatpush1.msra.mxu0 %v27
  %241 = vmatprep.subr.mxu0 0.0
  %242 = vmatpush1.msra.mxu0 %v26
  %243 = vmatprep.subr.mxu0 0.0
  %244 = vmatpush1.msra.mxu0 %v25
  %245 = vmatprep.subr.mxu0 0.0
  %246 = vmatpush1.msra.mxu0 %v24
  %247 = vmatprep.subr.mxu0 0.0
  %248 = vmatpush1.msra.mxu0 %v23
  %249 = vmatprep.subr.mxu0 0.0
  %250 = vmatpush2.msra.mxu0 0.0
  %251 = vmatprep.subr.mxu0 0.0
  %252 = vmatpush2.msra.mxu0 0.0
  %253 = vmatprep.subr.mxu0 0.0
  %254 = vmatpush2.msra.mxu0 0.0
  %255 = vmatprep.subr.mxu0 0.0
  %256 = vmatpush2.msra.mxu0 0.0
  %257 = vmatprep.subr.mxu0 0.0
  %258 = vmatpush2.msra.mxu0 0.0
  %259 = vmatprep.subr.mxu0 0.0
  %260 = vmatpush2.msra.mxu0 0.0
  %261 = vmatprep.subr.mxu0 0.0
  %262 = vmatpush2.msra.mxu0 0.0
  %263 = vmatprep.subr.mxu0 0.0
  %264 = vmatpush2.msra.mxu0 0.0
  %265 = vmatprep.subr.mxu0 0.0
  %266 = vmatpush2.msra.mxu0 0.0
  %267 = vmatprep.subr.mxu0 0.0
  %268 = vmatpush2.msra.mxu0 0.0
  %269 = vmatprep.subr.mxu0 0.0
  %270 = vmatpush2.msra.mxu0 0.0
  %271 = vmatprep.subr.mxu0 0.0
  %272 = vmatpush2.msra.mxu0 0.0
  %273 = vmatprep.subr.mxu0 0.0
  %274 = vmatpush2.msra.mxu0 0.0
  %275 = vmatprep.subr.mxu0 0.0
  %276 = vmatpush2.msra.mxu0 %v80
  %277 = vmatprep.subr.mxu0 0.0
  %278 = vmatpush2.msra.mxu0 %v40
  %279 = vmatprep.subr.mxu0 0.0
  %280 = vmatpush2.msra.mxu0 %v39
  %281 = vmatprep.mubr.f32.mxu0 %v197
  %282 = vmatmul.mubr.f32.gmra.mxu0 %v182
  %v283 = vpop.f32.mrf.mxu0
  %v284 = vadd.f32 0.0, %v283
  %v285 = vpop.f32.mrf.mxu0
  %286 = vmatprep.mubr.f32.mxu0 %v200
  %287 = vmatmul.mubr.f32.gmra.mxu0 %v184
  %v288 = vpop.f32.mrf.mxu0
  %v289 = vadd.f32 0.0, %v288
  %v290 = vpop.f32.mrf.mxu0
  %291 = vmatprep.mubr.f32.mxu0 %v203
  %292 = vmatmul.mubr.f32.gmra.mxu0 %v186
  %v293 = vpop.f32.mrf.mxu0
  %v294 = vadd.f32 0.0, %v293
  %v295 = vpop.f32.mrf.mxu0
  %296 = vmatprep.mubr.f32.mxu0 %v206
  %297 = vmatmul.mubr.f32.gmra.mxu0 %v188
  %v298 = vpop.f32.mrf.mxu0
  %v299 = vadd.f32 0.0, %v298
  %v300 = vpop.f32.mrf.mxu0
  %301 = vmatprep.mubr.f32.mxu0 %v209
  %302 = vmatmul.mubr.f32.gmra.mxu0 %v190
  %v303 = vpop.f32.mrf.mxu0
  %v304 = vadd.f32 0.0, %v303
  %v305 = vpop.f32.mrf.mxu0
  %306 = vmatprep.mubr.f32.mxu0 %v212
  %307 = vmatmul.mubr.f32.gmra.mxu0 %v192
  %v308 = vpop.f32.mrf.mxu0
  %v309 = vadd.f32 0.0, %v308
  %v310 = vpop.f32.mrf.mxu0
  %311 = vmatprep.mubr.f32.mxu0 %v215
  %312 = vmatmul.mubr.f32.gmra.mxu0 %v194
  %v313 = vpop.f32.mrf.mxu0
  %v314 = vadd.f32 0.0, %v313
  %v315 = vpop.f32.mrf.mxu0
  %316 = vdwg.mxu0
  %v317 = vmax.f32 %v149, %v284
  %v318 = vmax.f32 %v154, %v289
  %v319 = vmax.f32 %v159, %v294
  %v320 = vmax.f32 %v164, %v299
  %v321 = vmax.f32 %v169, %v304
  %v322 = vmax.f32 %v174, %v309
  %v323 = vmax.f32 %v179, %v314
  %v324 = vld [vmem:[%s2] sm:$0xff]
  %v325 = vld [vmem:[%s2 + $0x8] sm:$0xff]
  %v326 = vld [vmem:[%s2 + $0x10] sm:$0xff]
  %v327 = vld [vmem:[%s2 + $0x18] sm:$0xff]
  %v328 = vld [vmem:[%s2 + $0x20] sm:$0xff]
  %v329 = vld [vmem:[%s2 + $0x28] sm:$0xff]
  %v330 = vld [vmem:[%s2 + $0x30] sm:$0xff]
  %v331 = vld [vmem:[%s2 + $0x38] sm:$0xff]
  %v332 = vld [vmem:[%s2 + $0x40] sm:$0xff]
  %v333 = vld [vmem:[%s2 + $0x48] sm:$0xff]
  %v334 = vld [vmem:[%s2 + $0x50] sm:$0xff]
  %v335 = vld [vmem:[%s2 + $0x58] sm:$0xff]
  %v336 = vld [vmem:[%s2 + $0x60] sm:$0x3]
  %v337 = vld [vmem:[%s2 + $0x68] sm:$0x3]
  %v339 = vsel %vm56, %v325, 0
  %v342 = vsel %vm56, %v327, 0
  %v345 = vsel %vm56, %v329, 0
  %v348 = vsel %vm56, %v331, 0
  %v351 = vsel %vm56, %v333, 0
  %v354 = vsel %vm56, %v335, 0
  %v357 = vsel %vm56, %v337, 0
  %359 = vmatprep.subr.mxu0 0.0
  %360 = vmatpush1.msra.mxu0 %v38
  %361 = vmatprep.subr.mxu0 0.0
  %362 = vmatpush1.msra.mxu0 %v37
  %363 = vmatprep.subr.mxu0 0.0
  %364 = vmatpush1.msra.mxu0 %v36
  %365 = vmatprep.subr.mxu0 0.0
  %366 = vmatpush1.msra.mxu0 %v35
  %367 = vmatprep.subr.mxu0 0.0
  %368 = vmatpush1.msra.mxu0 %v34
  %369 = vmatprep.subr.mxu0 0.0
  %370 = vmatpush1.msra.mxu0 %v33
  %371 = vmatprep.subr.mxu0 0.0
  %372 = vmatpush1.msra.mxu0 %v32
  %373 = vmatprep.subr.mxu0 0.0
  %374 = vmatpush1.msra.mxu0 %v31
  %375 = vmatprep.subr.mxu0 0.0
  %376 = vmatpush1.msra.mxu0 %v30
  %377 = vmatprep.subr.mxu0 0.0
  %378 = vmatpush1.msra.mxu0 %v29
  %379 = vmatprep.subr.mxu0 0.0
  %380 = vmatpush1.msra.mxu0 %v28
  %381 = vmatprep.subr.mxu0 0.0
  %382 = vmatpush1.msra.mxu0 %v27
  %383 = vmatprep.subr.mxu0 0.0
  %384 = vmatpush1.msra.mxu0 %v26
  %385 = vmatprep.subr.mxu0 0.0
  %386 = vmatpush1.msra.mxu0 %v25
  %387 = vmatprep.subr.mxu0 0.0
  %388 = vmatpush1.msra.mxu0 %v24
  %389 = vmatprep.subr.mxu0 0.0
  %390 = vmatpush1.msra.mxu0 %v23
  %391 = vmatprep.subr.mxu0 0.0
  %392 = vmatpush2.msra.mxu0 0.0
  %393 = vmatprep.subr.mxu0 0.0
  %394 = vmatpush2.msra.mxu0 0.0
  %395 = vmatprep.subr.mxu0 0.0
  %396 = vmatpush2.msra.mxu0 0.0
  %397 = vmatprep.subr.mxu0 0.0
  %398 = vmatpush2.msra.mxu0 0.0
  %399 = vmatprep.subr.mxu0 0.0
  %400 = vmatpush2.msra.mxu0 0.0
  %401 = vmatprep.subr.mxu0 0.0
  %402 = vmatpush2.msra.mxu0 0.0
  %403 = vmatprep.subr.mxu0 0.0
  %404 = vmatpush2.msra.mxu0 0.0
  %405 = vmatprep.subr.mxu0 0.0
  %406 = vmatpush2.msra.mxu0 0.0
  %407 = vmatprep.subr.mxu0 0.0
  %408 = vmatpush2.msra.mxu0 0.0
  %409 = vmatprep.subr.mxu0 0.0
  %410 = vmatpush2.msra.mxu0 0.0
  %411 = vmatprep.subr.mxu0 0.0
  %412 = vmatpush2.msra.mxu0 0.0
  %413 = vmatprep.subr.mxu0 0.0
  %414 = vmatpush2.msra.mxu0 0.0
  %415 = vmatprep.subr.mxu0 0.0
  %416 = vmatpush2.msra.mxu0 0.0
  %417 = vmatprep.subr.mxu0 0.0
  %418 = vmatpush2.msra.mxu0 %v80
  %419 = vmatprep.subr.mxu0 0.0
  %420 = vmatpush2.msra.mxu0 %v40
  %421 = vmatprep.subr.mxu0 0.0
  %422 = vmatpush2.msra.mxu0 %v39
  %423 = vmatprep.mubr.f32.mxu0 %v339
  %424 = vmatmul.mubr.f32.gmra.mxu0 %v324
  %v425 = vpop.f32.mrf.mxu0
  %v426 = vadd.f32 0.0, %v425
  %v427 = vpop.f32.mrf.mxu0
  %428 = vmatprep.mubr.f32.mxu0 %v342
  %429 = vmatmul.mubr.f32.gmra.mxu0 %v326
  %v430 = vpop.f32.mrf.mxu0
  %v431 = vadd.f32 0.0, %v430
  %v432 = vpop.f32.mrf.mxu0
  %433 = vmatprep.mubr.f32.mxu0 %v345
  %434 = vmatmul.mubr.f32.gmra.mxu0 %v328
  %v435 = vpop.f32.mrf.mxu0
  %v436 = vadd.f32 0.0, %v435
  %v437 = vpop.f32.mrf.mxu0
  %438 = vmatprep.mubr.f32.mxu0 %v348
  %439 = vmatmul.mubr.f32.gmra.mxu0 %v330
  %v440 = vpop.f32.mrf.mxu0
  %v441 = vadd.f32 0.0, %v440
  %v442 = vpop.f32.mrf.mxu0
  %443 = vmatprep.mubr.f32.mxu0 %v351
  %444 = vmatmul.mubr.f32.gmra.mxu0 %v332
  %v445 = vpop.f32.mrf.mxu0
  %v446 = vadd.f32 0.0, %v445
  %v447 = vpop.f32.mrf.mxu0
  %448 = vmatprep.mubr.f32.mxu0 %v354
  %449 = vmatmul.mubr.f32.gmra.mxu0 %v334
  %v450 = vpop.f32.mrf.mxu0
  %v451 = vadd.f32 0.0, %v450
  %v452 = vpop.f32.mrf.mxu0
  %453 = vmatprep.mubr.f32.mxu0 %v357
  %454 = vmatmul.mubr.f32.gmra.mxu0 %v336
  %v455 = vpop.f32.mrf.mxu0
  %v456 = vadd.f32 0.0, %v455
  %v457 = vpop.f32.mrf.mxu0
  %458 = vdwg.mxu0
  %v459 = vmax.f32 %v317, %v426
  %v460 = vmax.f32 %v318, %v431
  %v461 = vmax.f32 %v319, %v436
  %v462 = vmax.f32 %v320, %v441
  %v463 = vmax.f32 %v321, %v446
  %v464 = vmax.f32 %v322, %v451
  %v465 = vmax.f32 %v323, %v456
  %v466 = vld [vmem:[%s3] sm:$0xff]
  %v467 = vld [vmem:[%s3 + $0x8] sm:$0xff]
  %v468 = vld [vmem:[%s3 + $0x10] sm:$0xff]
  %v469 = vld [vmem:[%s3 + $0x18] sm:$0xff]
  %v470 = vld [vmem:[%s3 + $0x20] sm:$0xff]
  %v471 = vld [vmem:[%s3 + $0x28] sm:$0xff]
  %v472 = vld [vmem:[%s3 + $0x30] sm:$0xff]
  %v473 = vld [vmem:[%s3 + $0x38] sm:$0xff]
  %v474 = vld [vmem:[%s3 + $0x40] sm:$0xff]
  %v475 = vld [vmem:[%s3 + $0x48] sm:$0xff]
  %v476 = vld [vmem:[%s3 + $0x50] sm:$0xff]
  %v477 = vld [vmem:[%s3 + $0x58] sm:$0xff]
  %v478 = vld [vmem:[%s3 + $0x60] sm:$0x3]
  %v479 = vld [vmem:[%s3 + $0x68] sm:$0x3]
  %v481 = vsel %vm56, %v467, 0
  %v484 = vsel %vm56, %v469, 0
  %v487 = vsel %vm56, %v471, 0
  %v490 = vsel %vm56, %v473, 0
  %v493 = vsel %vm56, %v475, 0
  %v496 = vsel %vm56, %v477, 0
  %v499 = vsel %vm56, %v479, 0
  %501 = vmatprep.subr.mxu0 0.0
  %502 = vmatpush1.msra.mxu0 %v38
  %503 = vmatprep.subr.mxu0 0.0
  %504 = vmatpush1.msra.mxu0 %v37
  %505 = vmatprep.subr.mxu0 0.0
  %506 = vmatpush1.msra.mxu0 %v36
  %507 = vmatprep.subr.mxu0 0.0
  %508 = vmatpush1.msra.mxu0 %v35
  %509 = vmatprep.subr.mxu0 0.0
  %510 = vmatpush1.msra.mxu0 %v34
  %511 = vmatprep.subr.mxu0 0.0
  %512 = vmatpush1.msra.mxu0 %v33
  %513 = vmatprep.subr.mxu0 0.0
  %514 = vmatpush1.msra.mxu0 %v32
  %515 = vmatprep.subr.mxu0 0.0
  %516 = vmatpush1.msra.mxu0 %v31
  %517 = vmatprep.subr.mxu0 0.0
  %518 = vmatpush1.msra.mxu0 %v30
  %519 = vmatprep.subr.mxu0 0.0
  %520 = vmatpush1.msra.mxu0 %v29
  %521 = vmatprep.subr.mxu0 0.0
  %522 = vmatpush1.msra.mxu0 %v28
  %523 = vmatprep.subr.mxu0 0.0
  %524 = vmatpush1.msra.mxu0 %v27
  %525 = vmatprep.subr.mxu0 0.0
  %526 = vmatpush1.msra.mxu0 %v26
  %527 = vmatprep.subr.mxu0 0.0
  %528 = vmatpush1.msra.mxu0 %v25
  %529 = vmatprep.subr.mxu0 0.0
  %530 = vmatpush1.msra.mxu0 %v24
  %531 = vmatprep.subr.mxu0 0.0
  %532 = vmatpush1.msra.mxu0 %v23
  %533 = vmatprep.subr.mxu0 0.0
  %534 = vmatpush2.msra.mxu0 0.0
  %535 = vmatprep.subr.mxu0 0.0
  %536 = vmatpush2.msra.mxu0 0.0
  %537 = vmatprep.subr.mxu0 0.0
  %538 = vmatpush2.msra.mxu0 0.0
  %539 = vmatprep.subr.mxu0 0.0
  %540 = vmatpush2.msra.mxu0 0.0
  %541 = vmatprep.subr.mxu0 0.0
  %542 = vmatpush2.msra.mxu0 0.0
  %543 = vmatprep.subr.mxu0 0.0
  %544 = vmatpush2.msra.mxu0 0.0
  %545 = vmatprep.subr.mxu0 0.0
  %546 = vmatpush2.msra.mxu0 0.0
  %547 = vmatprep.subr.mxu0 0.0
  %548 = vmatpush2.msra.mxu0 0.0
  %549 = vmatprep.subr.mxu0 0.0
  %550 = vmatpush2.msra.mxu0 0.0
  %551 = vmatprep.subr.mxu0 0.0
  %552 = vmatpush2.msra.mxu0 0.0
  %553 = vmatprep.subr.mxu0 0.0
  %554 = vmatpush2.msra.mxu0 0.0
  %555 = vmatprep.subr.mxu0 0.0
  %556 = vmatpush2.msra.mxu0 0.0
  %557 = vmatprep.subr.mxu0 0.0
  %558 = vmatpush2.msra.mxu0 0.0
  %559 = vmatprep.subr.mxu0 0.0
  %560 = vmatpush2.msra.mxu0 %v80
  %561 = vmatprep.subr.mxu0 0.0
  %562 = vmatpush2.msra.mxu0 %v40
  %563 = vmatprep.subr.mxu0 0.0
  %564 = vmatpush2.msra.mxu0 %v39
  %565 = vmatprep.mubr.f32.mxu0 %v481
  %566 = vmatmul.mubr.f32.gmra.mxu0 %v466
  %v567 = vpop.f32.mrf.mxu0
  %v568 = vadd.f32 0.0, %v567
  %v569 = vpop.f32.mrf.mxu0
  %570 = vmatprep.mubr.f32.mxu0 %v484
  %571 = vmatmul.mubr.f32.gmra.mxu0 %v468
  %v572 = vpop.f32.mrf.mxu0
  %v573 = vadd.f32 0.0, %v572
  %v574 = vpop.f32.mrf.mxu0
  %575 = vmatprep.mubr.f32.mxu0 %v487
  %576 = vmatmul.mubr.f32.gmra.mxu0 %v470
  %v577 = vpop.f32.mrf.mxu0
  %v578 = vadd.f32 0.0, %v577
  %v579 = vpop.f32.mrf.mxu0
  %580 = vmatprep.mubr.f32.mxu0 %v490
  %581 = vmatmul.mubr.f32.gmra.mxu0 %v472
  %v582 = vpop.f32.mrf.mxu0
  %v583 = vadd.f32 0.0, %v582
  %v584 = vpop.f32.mrf.mxu0
  %585 = vmatprep.mubr.f32.mxu0 %v493
  %586 = vmatmul.mubr.f32.gmra.mxu0 %v474
  %v587 = vpop.f32.mrf.mxu0
  %v588 = vadd.f32 0.0, %v587
  %v589 = vpop.f32.mrf.mxu0
  %590 = vmatprep.mubr.f32.mxu0 %v496
  %591 = vmatmul.mubr.f32.gmra.mxu0 %v476
  %v592 = vpop.f32.mrf.mxu0
  %v593 = vadd.f32 0.0, %v592
  %v594 = vpop.f32.mrf.mxu0
  %595 = vmatprep.mubr.f32.mxu0 %v499
  %596 = vmatmul.mubr.f32.gmra.mxu0 %v478
  %v597 = vpop.f32.mrf.mxu0
  %v598 = vadd.f32 0.0, %v597
  %v599 = vpop.f32.mrf.mxu0
  %600 = vdwg.mxu0
  %v601 = vmax.f32 %v459, %v568
  %v602 = vmax.f32 %v460, %v573
  %v603 = vmax.f32 %v461, %v578
  %v604 = vmax.f32 %v462, %v583
  %v605 = vmax.f32 %v463, %v588
  %v606 = vmax.f32 %v464, %v593
  %v607 = vmax.f32 %v465, %v598
  %v608 = vld [vmem:[%s5] sm:$0x1]
  %v610 = vlaneseq
  %v611 = vshrl.u32 %v610, 7
  %v612 = vsub.s32 0, %v611
  %v613 = vrot.slane %v608, %v612
  %v615 = vadd.f32 %v601, %v613
  %v616 = vadd.f32 %v602, %v613
  %v617 = vadd.f32 %v603, %v613
  %v618 = vadd.f32 %v604, %v613
  %v619 = vadd.f32 %v605, %v613
  %v620 = vadd.f32 %v606, %v613
  %v621 = vadd.f32 %v607, %v613
  %v622 = vmax.f32 %v615, 0.0
  %v623 = vmax.f32 %v616, 0.0
  %v624 = vmax.f32 %v617, 0.0
  %v625 = vmax.f32 %v618, 0.0
  %v626 = vmax.f32 %v619, 0.0
  %v627 = vmax.f32 %v620, 0.0
  %v628 = vmax.f32 %v621, 0.0
  %629 = vst [vmem:[%s6] sm:$0xff] %v622
  %630 = vst [vmem:[%s6 + $0x8] sm:$0xff] %v623
  %631 = vst [vmem:[%s6 + $0x10] sm:$0xff] %v624
  %632 = vst [vmem:[%s6 + $0x18] sm:$0xff] %v625
  %633 = vst [vmem:[%s6 + $0x20] sm:$0xff] %v626
  %634 = vst [vmem:[%s6 + $0x28] sm:$0xff] %v627
  %635 = vst [vmem:[%s6 + $0x30] sm:$0x3] %v628
  // Predicated region
  $region26: #{lenet5_mcdropout_forward.4} parent=0 // pred_check
    _
  $region27: #{lenet5_mcdropout_forward.4} parent=0 // pred_check_branch
    %637 = sbr.rel (0) target = $region29
  $region28: #{lenet5_mcdropout_forward.4} parent=0 // pred_region
    _
  $region29: #{lenet5_mcdropout_forward.4} parent=0 // pred_fallthru
    _
  // Predicated region
  $region30: #{lenet5_mcdropout_forward.4} parent=0 // pred_check
    _
  $region31: #{lenet5_mcdropout_forward.4} parent=0 // pred_check_branch
    %639 = sbr.rel (0) target = $region33
  $region32: #{lenet5_mcdropout_forward.4} parent=0 // pred_region
    _
  $region33: #{lenet5_mcdropout_forward.4} parent=0 // pred_fallthru
    _

// kernel: lenet5_mcdropout_forward.5
$region0: #{lenet5_mcdropout_forward.5}
  #allocation0 [shape = 'u32[]', space=smem, size = 0x4, offset = 0x4, fixed_abs, tag = 'smem constant byte address 0x4 - core index']
  #allocation1 [shape = 'u32[144,128]{1,0:T(1,128)}', space=vmem, size = 0x12000, scoped, tag = 'internal scratch']
  #allocation2 [shape = 's32[1]{0:T(128)S(6)}', space=smem, size = 0x200, scoped, tag = 'scoped memory for lenet5_mcdropout_forward.5']
  %s0 = inlined_call_operand.<no memory space> [shape: s32[1], index: 0, kind: input, shape index: {}]
  %s1 = inlined_call_operand.vmem [shape: f32[2,3200], index: 1, kind: input, shape index: {}]
  %s2 = inlined_call_operand.vmem [shape: f32[3200,128], index: 2, kind: input, shape index: {}]
  %s3 = inlined_call_operand.vmem [shape: f32[1,128], index: 3, kind: input, shape index: {}]
  %s4 = inlined_call_operand.vmem [shape: f32[128,128], index: 4, kind: input, shape index: {}]
  %s5 = inlined_call_operand.vmem [shape: f32[1,128], index: 5, kind: input, shape index: {}]
  %s6 = inlined_call_operand.vmem [shape: f32[128,128], index: 6, kind: input, shape index: {}]
  %s7 = inlined_call_operand.vmem [shape: f32[1,128], index: 7, kind: input, shape index: {}]
  %s8 = inlined_call_operand.hbm [shape: f32[2,128], index: 8, kind: output, shape index: {}]
  %s9 = sld [smem:[#allocation0]]
  $region42: #{lenet5_mcdropout_forward.5} parent=0
    _
  %s11 = ssub.s32 1, %s9
  %s12 = scalar_select 0, %s11, %s9
  %13 = sst [smem:[#allocation2]] %s0
  $region1: #{lenet5_mcdropout_forward.5} parent=0
    #allocation3 [shape = 'u8[1024]{0}', space=vmem, size = 0x400, scoped, tag = 'output window, operand 0, single buffered']
    #allocation4 [shape = 's32[1]{0}', space=sflag, size = 0x4, scoped, tag = 'scoped memory for lenet5_mcdropout_forward.5']
    %14 = vsyncpa [#allocation4], 0
    // Predicated region
    $region2: #{lenet5_mcdropout_forward.5} parent=1 // pred_check
      _
    $region3: #{lenet5_mcdropout_forward.5} parent=1 // pred_check_branch
      %16 = sbr.rel (0) target = $region5
    $region4: #{lenet5_mcdropout_forward.5} parent=1 // pred_region
      _
    $region5: #{lenet5_mcdropout_forward.5} parent=1 // pred_fallthru
      _
    // Predicated region
    $region6: #{lenet5_mcdropout_forward.5} parent=1 // pred_check
      _
    $region7: #{lenet5_mcdropout_forward.5} parent=1 // pred_check_branch
      %18 = sbr.rel (0) target = $region9
    $region8: #{lenet5_mcdropout_forward.5} parent=1 // pred_region
      _
    $region9: #{lenet5_mcdropout_forward.5} parent=1 // pred_fallthru
      _
    // Predicated region
    $region10: #{lenet5_mcdropout_forward.5} parent=1 // pred_check
      _
    $region11: #{lenet5_mcdropout_forward.5} parent=1 // pred_check_branch
      %20 = sbr.rel (0) target = $region13
    $region12: #{lenet5_mcdropout_forward.5} parent=1 // pred_region
      _
    $region13: #{lenet5_mcdropout_forward.5} parent=1 // pred_fallthru
      _
    // Predicated region
    $region14: #{lenet5_mcdropout_forward.5} parent=1 // pred_check
      _
    $region15: #{lenet5_mcdropout_forward.5} parent=1 // pred_check_branch
      %22 = sbr.rel (0) target = $region17
    $region16: #{lenet5_mcdropout_forward.5} parent=1 // pred_region
      _
    $region17: #{lenet5_mcdropout_forward.5} parent=1 // pred_fallthru
      _
    // Predicated region
    $region18: #{lenet5_mcdropout_forward.5} parent=1 // pred_check
      _
    $region19: #{lenet5_mcdropout_forward.5} parent=1 // pred_check_branch
      %24 = sbr.rel (0) target = $region21
    $region20: #{lenet5_mcdropout_forward.5} parent=1 // pred_region
      _
    $region21: #{lenet5_mcdropout_forward.5} parent=1 // pred_fallthru
      _
    // Predicated region
    $region22: #{lenet5_mcdropout_forward.5} parent=1 // pred_check
      _
    $region23: #{lenet5_mcdropout_forward.5} parent=1 // pred_check_branch
      %26 = sbr.rel (0) target = $region25
    $region24: #{lenet5_mcdropout_forward.5} parent=1 // pred_region
      _
    $region25: #{lenet5_mcdropout_forward.5} parent=1 // pred_fallthru
      _
    // Predicated region
    $region26: #{lenet5_mcdropout_forward.5} parent=1 // pred_check
      _
    $region27: #{lenet5_mcdropout_forward.5} parent=1 // pred_check_branch
      %28 = sbr.rel (0) target = $region29
    $region28: #{lenet5_mcdropout_forward.5} parent=1 // pred_region
      _
    $region29: #{lenet5_mcdropout_forward.5} parent=1 // pred_fallthru
      _
    // Predicated region
    $region30: #{lenet5_mcdropout_forward.5} parent=1 // pred_check
      _
    $region31: #{lenet5_mcdropout_forward.5} parent=1 // pred_check_branch
      %30 = sbr.rel (0) target = $region33
    $region32: #{lenet5_mcdropout_forward.5} parent=1 // pred_region
      _
    $region33: #{lenet5_mcdropout_forward.5} parent=1 // pred_fallthru
      _
    %s31 = sld [smem:[#allocation2]]
    %v32 = vld [vmem:[%s1] sm:$0xff]
    %v33 = vld [vmem:[%s1 + $0x8] sm:$0xff]
    %v34 = vld [vmem:[%s1 + $0x10] sm:$0xff]
    %v35 = vld [vmem:[%s1 + $0x18] sm:$0xff]
    %v36 = vld [vmem:[%s1 + $0x20] sm:$0xff]
    %v37 = vld [vmem:[%s1 + $0x28] sm:$0xff]
    %v38 = vld [vmem:[%s1 + $0x30] sm:$0x3]
    %v39 = vld [vmem:[%s2] sm:$0xff]
    %v40 = vld [vmem:[%s2 + $0x8] sm:$0xff]
    %v41 = vld [vmem:[%s2 + $0x10] sm:$0xff]
    %v42 = vld [vmem:[%s2 + $0x18] sm:$0xff]
    %v43 = vld [vmem:[%s2 + $0x20] sm:$0xff]
    %v44 = vld [vmem:[%s2 + $0x28] sm:$0xff]
    %v45 = vld [vmem:[%s2 + $0x30] sm:$0xff]
    %v46 = vld [vmem:[%s2 + $0x38] sm:$0xff]
    %v47 = vld [vmem:[%s2 + $0x40] sm:$0xff]
    %v48 = vld [vmem:[%s2 + $0x48] sm:$0xff]
    %v49 = vld [vmem:[%s2 + $0x50] sm:$0xff]
    %v50 = vld [vmem:[%s2 + $0x58] sm:$0xff]
    %v51 = vld [vmem:[%s2 + $0x60] sm:$0xff]
    %v52 = vld [vmem:[%s2 + $0x68] sm:$0xff]
    %v53 = vld [vmem:[%s2 + $0x70] sm:$0xff]
    %v54 = vld [vmem:[%s2 + $0x78] sm:$0xff]
    %v55 = vld [vmem:[%s2 + $0x80] sm:$0xff]
    %v56 = vld [vmem:[%s2 + $0x88] sm:$0xff]
    %v57 = vld [vmem:[%s2 + $0x90] sm:$0xff]
    %v58 = vld [vmem:[%s2 + $0x98] sm:$0xff]
    %v59 = vld [vmem:[%s2 + $0xa0] sm:$0xff]
    %v60 = vld [vmem:[%s2 + $0xa8] sm:$0xff]
    %v61 = vld [vmem:[%s2 + $0xb0] sm:$0xff]
    %v62 = vld [vmem:[%s2 + $0xb8] sm:$0xff]
    %v63 = vld [vmem:[%s2 + $0xc0] sm:$0xff]
    %v64 = vld [vmem:[%s2 + $0xc8] sm:$0xff]
    %v65 = vld [vmem:[%s2 + $0xd0] sm:$0xff]
    %v66 = vld [vmem:[%s2 + $0xd8] sm:$0xff]
    %v67 = vld [vmem:[%s2 + $0xe0] sm:$0xff]
    %v68 = vld [vmem:[%s2 + $0xe8] sm:$0xff]
    %v69 = vld [vmem:[%s2 + $0xf0] sm:$0xff]
    %v70 = vld [vmem:[%s2 + $0xf8] sm:$0xff]
    %v71 = vld [vmem:[%s2 + $0x100] sm:$0xff]
    %v72 = vld [vmem:[%s2 + $0x108] sm:$0xff]
    %v73 = vld [vmem:[%s2 + $0x110] sm:$0xff]
    %v74 = vld [vmem:[%s2 + $0x118] sm:$0xff]
    %v75 = vld [vmem:[%s2 + $0x120] sm:$0xff]
    %v76 = vld [vmem:[%s2 + $0x128] sm:$0xff]
    %v77 = vld [vmem:[%s2 + $0x130] sm:$0xff]
    %v78 = vld [vmem:[%s2 + $0x138] sm:$0xff]
    %v79 = vld [vmem:[%s2 + $0x140] sm:$0xff]
    %v80 = vld [vmem:[%s2 + $0x148] sm:$0xff]
    %v81 = vld [vmem:[%s2 + $0x150] sm:$0xff]
    %v82 = vld [vmem:[%s2 + $0x158] sm:$0xff]
    %v83 = vld [vmem:[%s2 + $0x160] sm:$0xff]
    %v84 = vld [vmem:[%s2 + $0x168] sm:$0xff]
    %v85 = vld [vmem:[%s2 + $0x170] sm:$0xff]
    %v86 = vld [vmem:[%s2 + $0x178] sm:$0xff]
    %v87 = vld [vmem:[%s2 + $0x180] sm:$0xff]
    %v88 = vld [vmem:[%s2 + $0x188] sm:$0xff]
    %v89 = vld [vmem:[%s2 + $0x190] sm:$0xff]
    %v90 = vld [vmem:[%s2 + $0x198] sm:$0xff]
    %v91 = vld [vmem:[%s2 + $0x1a0] sm:$0xff]
    %v92 = vld [vmem:[%s2 + $0x1a8] sm:$0xff]
    %v93 = vld [vmem:[%s2 + $0x1b0] sm:$0xff]
    %v94 = vld [vmem:[%s2 + $0x1b8] sm:$0xff]
    %v95 = vld [vmem:[%s2 + $0x1c0] sm:$0xff]
    %v96 = vld [vmem:[%s2 + $0x1c8] sm:$0xff]
    %v97 = vld [vmem:[%s2 + $0x1d0] sm:$0xff]
    %v98 = vld [vmem:[%s2 + $0x1d8] sm:$0xff]
    %v99 = vld [vmem:[%s2 + $0x1e0] sm:$0xff]
    %v100 = vld [vmem:[%s2 + $0x1e8] sm:$0xff]
    %v101 = vld [vmem:[%s2 + $0x1f0] sm:$0xff]
    %v102 = vld [vmem:[%s2 + $0x1f8] sm:$0xff]
    %v103 = vld [vmem:[%s2 + $0x200] sm:$0xff]
    %v104 = vld [vmem:[%s2 + $0x208] sm:$0xff]
    %v105 = vld [vmem:[%s2 + $0x210] sm:$0xff]
    %v106 = vld [vmem:[%s2 + $0x218] sm:$0xff]
    %v107 = vld [vmem:[%s2 + $0x220] sm:$0xff]
    %v108 = vld [vmem:[%s2 + $0x228] sm:$0xff]
    %v109 = vld [vmem:[%s2 + $0x230] sm:$0xff]
    %v110 = vld [vmem:[%s2 + $0x238] sm:$0xff]
    %v111 = vld [vmem:[%s2 + $0x240] sm:$0xff]
    %v112 = vld [vmem:[%s2 + $0x248] sm:$0xff]
    %v113 = vld [vmem:[%s2 + $0x250] sm:$0xff]
    %v114 = vld [vmem:[%s2 + $0x258] sm:$0xff]
    %v115 = vld [vmem:[%s2 + $0x260] sm:$0xff]
    %v116 = vld [vmem:[%s2 + $0x268] sm:$0xff]
    %v117 = vld [vmem:[%s2 + $0x270] sm:$0xff]
    %v118 = vld [vmem:[%s2 + $0x278] sm:$0xff]
    %v119 = vld [vmem:[%s2 + $0x280] sm:$0xff]
    %v120 = vld [vmem:[%s2 + $0x288] sm:$0xff]
    %v121 = vld [vmem:[%s2 + $0x290] sm:$0xff]
    %v122 = vld [vmem:[%s2 + $0x298] sm:$0xff]
    %v123 = vld [vmem:[%s2 + $0x2a0] sm:$0xff]
    %v124 = vld [vmem:[%s2 + $0x2a8] sm:$0xff]
    %v125 = vld [vmem:[%s2 + $0x2b0] sm:$0xff]
    %v126 = vld [vmem:[%s2 + $0x2b8] sm:$0xff]
    %v127 = vld [vmem:[%s2 + $0x2c0] sm:$0xff]
    %v128 = vld [vmem:[%s2 + $0x2c8] sm:$0xff]
    %v129 = vld [vmem:[%s2 + $0x2d0] sm:$0xff]
    %v130 = vld [vmem:[%s2 + $0x2d8] sm:$0xff]
    %v131 = vld [vmem:[%s2 + $0x2e0] sm:$0xff]
    %v132 = vld [vmem:[%s2 + $0x2e8] sm:$0xff]
    %v133 = vld [vmem:[%s2 + $0x2f0] sm:$0xff]
    %v134 = vld [vmem:[%s2 + $0x2f8] sm:$0xff]
    %v135 = vld [vmem:[%s2 + $0x300] sm:$0xff]
    %v136 = vld [vmem:[%s2 + $0x308] sm:$0xff]
    %v137 = vld [vmem:[%s2 + $0x310] sm:$0xff]
    %v138 = vld [vmem:[%s2 + $0x318] sm:$0xff]
    %v139 = vld [vmem:[%s2 + $0x320] sm:$0xff]
    %v140 = vld [vmem:[%s2 + $0x328] sm:$0xff]
    %v141 = vld [vmem:[%s2 + $0x330] sm:$0xff]
    %v142 = vld [vmem:[%s2 + $0x338] sm:$0xff]
    %v143 = vld [vmem:[%s2 + $0x340] sm:$0xff]
    %v144 = vld [vmem:[%s2 + $0x348] sm:$0xff]
    %v145 = vld [vmem:[%s2 + $0x350] sm:$0xff]
    %v146 = vld [vmem:[%s2 + $0x358] sm:$0xff]
    %v147 = vld [vmem:[%s2 + $0x360] sm:$0xff]
    %v148 = vld [vmem:[%s2 + $0x368] sm:$0xff]
    %v149 = vld [vmem:[%s2 + $0x370] sm:$0xff]
    %v150 = vld [vmem:[%s2 + $0x378] sm:$0xff]
    %v151 = vld [vmem:[%s2 + $0x380] sm:$0xff]
    %v152 = vld [vmem:[%s2 + $0x388] sm:$0xff]
    %v153 = vld [vmem:[%s2 + $0x390] sm:$0xff]
    %v154 = vld [vmem:[%s2 + $0x398] sm:$0xff]
    %v155 = vld [vmem:[%s2 + $0x3a0] sm:$0xff]
    %v156 = vld [vmem:[%s2 + $0x3a8] sm:$0xff]
    %v157 = vld [vmem:[%s2 + $0x3b0] sm:$0xff]
    %v158 = vld [vmem:[%s2 + $0x3b8] sm:$0xff]
    %v159 = vld [vmem:[%s2 + $0x3c0] sm:$0xff]
    %v160 = vld [vmem:[%s2 + $0x3c8] sm:$0xff]
    %v161 = vld [vmem:[%s2 + $0x3d0] sm:$0xff]
    %v162 = vld [vmem:[%s2 + $0x3d8] sm:$0xff]
    %v163 = vld [vmem:[%s2 + $0x3e0] sm:$0xff]
    %v164 = vld [vmem:[%s2 + $0x3e8] sm:$0xff]
    %v165 = vld [vmem:[%s2 + $0x3f0] sm:$0xff]
    %v166 = vld [vmem:[%s2 + $0x3f8] sm:$0xff]
    %v167 = vld [vmem:[%s2 + $0x400] sm:$0xff]
    %v168 = vld [vmem:[%s2 + $0x408] sm:$0xff]
    %v169 = vld [vmem:[%s2 + $0x410] sm:$0xff]
    %v170 = vld [vmem:[%s2 + $0x418] sm:$0xff]
    %v171 = vld [vmem:[%s2 + $0x420] sm:$0xff]
    %v172 = vld [vmem:[%s2 + $0x428] sm:$0xff]
    %v173 = vld [vmem:[%s2 + $0x430] sm:$0xff]
    %v174 = vld [vmem:[%s2 + $0x438] sm:$0xff]
    %v175 = vld [vmem:[%s2 + $0x440] sm:$0xff]
    %v176 = vld [vmem:[%s2 + $0x448] sm:$0xff]
    %v177 = vld [vmem:[%s2 + $0x450] sm:$0xff]
    %v178 = vld [vmem:[%s2 + $0x458] sm:$0xff]
    %v179 = vld [vmem:[%s2 + $0x460] sm:$0xff]
    %v180 = vld [vmem:[%s2 + $0x468] sm:$0xff]
    %v181 = vld [vmem:[%s2 + $0x470] sm:$0xff]
    %v182 = vld [vmem:[%s2 + $0x478] sm:$0xff]
    %v183 = vld [vmem:[%s2 + $0x480] sm:$0xff]
    %v184 = vld [vmem:[%s2 + $0x488] sm:$0xff]
    %v185 = vld [vmem:[%s2 + $0x490] sm:$0xff]
    %v186 = vld [vmem:[%s2 + $0x498] sm:$0xff]
    %v187 = vld [vmem:[%s2 + $0x4a0] sm:$0xff]
    %v188 = vld [vmem:[%s2 + $0x4a8] sm:$0xff]
    %v189 = vld [vmem:[%s2 + $0x4b0] sm:$0xff]
    %v190 = vld [vmem:[%s2 + $0x4b8] sm:$0xff]
    %v191 = vld [vmem:[%s2 + $0x4c0] sm:$0xff]
    %v192 = vld [vmem:[%s2 + $0x4c8] sm:$0xff]
    %v193 = vld [vmem:[%s2 + $0x4d0] sm:$0xff]
    %v194 = vld [vmem:[%s2 + $0x4d8] sm:$0xff]
    %v195 = vld [vmem:[%s2 + $0x4e0] sm:$0xff]
    %v196 = vld [vmem:[%s2 + $0x4e8] sm:$0xff]
    %v197 = vld [vmem:[%s2 + $0x4f0] sm:$0xff]
    %v198 = vld [vmem:[%s2 + $0x4f8] sm:$0xff]
    %v199 = vld [vmem:[%s2 + $0x500] sm:$0xff]
    %v200 = vld [vmem:[%s2 + $0x508] sm:$0xff]
    %v201 = vld [vmem:[%s2 + $0x510] sm:$0xff]
    %v202 = vld [vmem:[%s2 + $0x518] sm:$0xff]
    %v203 = vld [vmem:[%s2 + $0x520] sm:$0xff]
    %v204 = vld [vmem:[%s2 + $0x528] sm:$0xff]
    %v205 = vld [vmem:[%s2 + $0x530] sm:$0xff]
    %v206 = vld [vmem:[%s2 + $0x538] sm:$0xff]
    %v207 = vld [vmem:[%s2 + $0x540] sm:$0xff]
    %v208 = vld [vmem:[%s2 + $0x548] sm:$0xff]
    %v209 = vld [vmem:[%s2 + $0x550] sm:$0xff]
    %v210 = vld [vmem:[%s2 + $0x558] sm:$0xff]
    %v211 = vld [vmem:[%s2 + $0x560] sm:$0xff]
    %v212 = vld [vmem:[%s2 + $0x568] sm:$0xff]
    %v213 = vld [vmem:[%s2 + $0x570] sm:$0xff]
    %v214 = vld [vmem:[%s2 + $0x578] sm:$0xff]
    %v215 = vld [vmem:[%s2 + $0x580] sm:$0xff]
    %v216 = vld [vmem:[%s2 + $0x588] sm:$0xff]
    %v217 = vld [vmem:[%s2 + $0x590] sm:$0xff]
    %v218 = vld [vmem:[%s2 + $0x598] sm:$0xff]
    %v219 = vld [vmem:[%s2 + $0x5a0] sm:$0xff]
    %v220 = vld [vmem:[%s2 + $0x5a8] sm:$0xff]
    %v221 = vld [vmem:[%s2 + $0x5b0] sm:$0xff]
    %v222 = vld [vmem:[%s2 + $0x5b8] sm:$0xff]
    %v223 = vld [vmem:[%s2 + $0x5c0] sm:$0xff]
    %v224 = vld [vmem:[%s2 + $0x5c8] sm:$0xff]
    %v225 = vld [vmem:[%s2 + $0x5d0] sm:$0xff]
    %v226 = vld [vmem:[%s2 + $0x5d8] sm:$0xff]
    %v227 = vld [vmem:[%s2 + $0x5e0] sm:$0xff]
    %v228 = vld [vmem:[%s2 + $0x5e8] sm:$0xff]
    %v229 = vld [vmem:[%s2 + $0x5f0] sm:$0xff]
    %v230 = vld [vmem:[%s2 + $0x5f8] sm:$0xff]
    %v231 = vld [vmem:[%s2 + $0x600] sm:$0xff]
    %v232 = vld [vmem:[%s2 + $0x608] sm:$0xff]
    %v233 = vld [vmem:[%s2 + $0x610] sm:$0xff]
    %v234 = vld [vmem:[%s2 + $0x618] sm:$0xff]
    %v235 = vld [vmem:[%s2 + $0x620] sm:$0xff]
    %v236 = vld [vmem:[%s2 + $0x628] sm:$0xff]
    %v237 = vld [vmem:[%s2 + $0x630] sm:$0xff]
    %v238 = vld [vmem:[%s2 + $0x638] sm:$0xff]
    %v239 = vld [vmem:[%s2 + $0x640] sm:$0xff]
    %v240 = vld [vmem:[%s2 + $0x648] sm:$0xff]
    %v241 = vld [vmem:[%s2 + $0x650] sm:$0xff]
    %v242 = vld [vmem:[%s2 + $0x658] sm:$0xff]
    %v243 = vld [vmem:[%s2 + $0x660] sm:$0xff]
    %v244 = vld [vmem:[%s2 + $0x668] sm:$0xff]
    %v245 = vld [vmem:[%s2 + $0x670] sm:$0xff]
    %v246 = vld [vmem:[%s2 + $0x678] sm:$0xff]
    %v247 = vld [vmem:[%s2 + $0x680] sm:$0xff]
    %v248 = vld [vmem:[%s2 + $0x688] sm:$0xff]
    %v249 = vld [vmem:[%s2 + $0x690] sm:$0xff]
    %v250 = vld [vmem:[%s2 + $0x698] sm:$0xff]
    %v251 = vld [vmem:[%s2 + $0x6a0] sm:$0xff]
    %v252 = vld [vmem:[%s2 + $0x6a8] sm:$0xff]
    %v253 = vld [vmem:[%s2 + $0x6b0] sm:$0xff]
    %v254 = vld [vmem:[%s2 + $0x6b8] sm:$0xff]
    %v255 = vld [vmem:[%s2 + $0x6c0] sm:$0xff]
    %v256 = vld [vmem:[%s2 + $0x6c8] sm:$0xff]
    %v257 = vld [vmem:[%s2 + $0x6d0] sm:$0xff]
    %v258 = vld [vmem:[%s2 + $0x6d8] sm:$0xff]
    %v259 = vld [vmem:[%s2 + $0x6e0] sm:$0xff]
    %v260 = vld [vmem:[%s2 + $0x6e8] sm:$0xff]
    %v261 = vld [vmem:[%s2 + $0x6f0] sm:$0xff]
    %v262 = vld [vmem:[%s2 + $0x6f8] sm:$0xff]
    %v263 = vld [vmem:[%s2 + $0x700] sm:$0xff]
    %v264 = vld [vmem:[%s2 + $0x708] sm:$0xff]
    %v265 = vld [vmem:[%s2 + $0x710] sm:$0xff]
    %v266 = vld [vmem:[%s2 + $0x718] sm:$0xff]
    %v267 = vld [vmem:[%s2 + $0x720] sm:$0xff]
    %v268 = vld [vmem:[%s2 + $0x728] sm:$0xff]
    %v269 = vld [vmem:[%s2 + $0x730] sm:$0xff]
    %v270 = vld [vmem:[%s2 + $0x738] sm:$0xff]
    %v271 = vld [vmem:[%s2 + $0x740] sm:$0xff]
    %v272 = vld [vmem:[%s2 + $0x748] sm:$0xff]
    %v273 = vld [vmem:[%s2 + $0x750] sm:$0xff]
    %v274 = vld [vmem:[%s2 + $0x758] sm:$0xff]
    %v275 = vld [vmem:[%s2 + $0x760] sm:$0xff]
    %v276 = vld [vmem:[%s2 + $0x768] sm:$0xff]
    %v277 = vld [vmem:[%s2 + $0x770] sm:$0xff]
    %v278 = vld [vmem:[%s2 + $0x778] sm:$0xff]
    %v279 = vld [vmem:[%s2 + $0x780] sm:$0xff]
    %v280 = vld [vmem:[%s2 + $0x788] sm:$0xff]
    %v281 = vld [vmem:[%s2 + $0x790] sm:$0xff]
    %v282 = vld [vmem:[%s2 + $0x798] sm:$0xff]
    %v283 = vld [vmem:[%s2 + $0x7a0] sm:$0xff]
    %v284 = vld [vmem:[%s2 + $0x7a8] sm:$0xff]
    %v285 = vld [vmem:[%s2 + $0x7b0] sm:$0xff]
    %v286 = vld [vmem:[%s2 + $0x7b8] sm:$0xff]
    %v287 = vld [vmem:[%s2 + $0x7c0] sm:$0xff]
    %v288 = vld [vmem:[%s2 + $0x7c8] sm:$0xff]
    %v289 = vld [vmem:[%s2 + $0x7d0] sm:$0xff]
    %v290 = vld [vmem:[%s2 + $0x7d8] sm:$0xff]
    %v291 = vld [vmem:[%s2 + $0x7e0] sm:$0xff]
    %v292 = vld [vmem:[%s2 + $0x7e8] sm:$0xff]
    %v293 = vld [vmem:[%s2 + $0x7f0] sm:$0xff]
    %v294 = vld [vmem:[%s2 + $0x7f8] sm:$0xff]
    %v295 = vld [vmem:[%s2 + $0x800] sm:$0xff]
    %v296 = vld [vmem:[%s2 + $0x808] sm:$0xff]
    %v297 = vld [vmem:[%s2 + $0x810] sm:$0xff]
    %v298 = vld [vmem:[%s2 + $0x818] sm:$0xff]
    %v299 = vld [vmem:[%s2 + $0x820] sm:$0xff]
    %v300 = vld [vmem:[%s2 + $0x828] sm:$0xff]
    %v301 = vld [vmem:[%s2 + $0x830] sm:$0xff]
    %v302 = vld [vmem:[%s2 + $0x838] sm:$0xff]
    %v303 = vld [vmem:[%s2 + $0x840] sm:$0xff]
    %v304 = vld [vmem:[%s2 + $0x848] sm:$0xff]
    %v305 = vld [vmem:[%s2 + $0x850] sm:$0xff]
    %v306 = vld [vmem:[%s2 + $0x858] sm:$0xff]
    %v307 = vld [vmem:[%s2 + $0x860] sm:$0xff]
    %v308 = vld [vmem:[%s2 + $0x868] sm:$0xff]
    %v309 = vld [vmem:[%s2 + $0x870] sm:$0xff]
    %v310 = vld [vmem:[%s2 + $0x878] sm:$0xff]
    %v311 = vld [vmem:[%s2 + $0x880] sm:$0xff]
    %v312 = vld [vmem:[%s2 + $0x888] sm:$0xff]
    %v313 = vld [vmem:[%s2 + $0x890] sm:$0xff]
    %v314 = vld [vmem:[%s2 + $0x898] sm:$0xff]
    %v315 = vld [vmem:[%s2 + $0x8a0] sm:$0xff]
    %v316 = vld [vmem:[%s2 + $0x8a8] sm:$0xff]
    %v317 = vld [vmem:[%s2 + $0x8b0] sm:$0xff]
    %v318 = vld [vmem:[%s2 + $0x8b8] sm:$0xff]
    %v319 = vld [vmem:[%s2 + $0x8c0] sm:$0xff]
    %v320 = vld [vmem:[%s2 + $0x8c8] sm:$0xff]
    %v321 = vld [vmem:[%s2 + $0x8d0] sm:$0xff]
    %v322 = vld [vmem:[%s2 + $0x8d8] sm:$0xff]
    %v323 = vld [vmem:[%s2 + $0x8e0] sm:$0xff]
    %v324 = vld [vmem:[%s2 + $0x8e8] sm:$0xff]
    %v325 = vld [vmem:[%s2 + $0x8f0] sm:$0xff]
    %v326 = vld [vmem:[%s2 + $0x8f8] sm:$0xff]
    %v327 = vld [vmem:[%s2 + $0x900] sm:$0xff]
    %v328 = vld [vmem:[%s2 + $0x908] sm:$0xff]
    %v329 = vld [vmem:[%s2 + $0x910] sm:$0xff]
    %v330 = vld [vmem:[%s2 + $0x918] sm:$0xff]
    %v331 = vld [vmem:[%s2 + $0x920] sm:$0xff]
    %v332 = vld [vmem:[%s2 + $0x928] sm:$0xff]
    %v333 = vld [vmem:[%s2 + $0x930] sm:$0xff]
    %v334 = vld [vmem:[%s2 + $0x938] sm:$0xff]
    %v335 = vld [vmem:[%s2 + $0x940] sm:$0xff]
    %v336 = vld [vmem:[%s2 + $0x948] sm:$0xff]
    %v337 = vld [vmem:[%s2 + $0x950] sm:$0xff]
    %v338 = vld [vmem:[%s2 + $0x958] sm:$0xff]
    %v339 = vld [vmem:[%s2 + $0x960] sm:$0xff]
    %v340 = vld [vmem:[%s2 + $0x968] sm:$0xff]
    %v341 = vld [vmem:[%s2 + $0x970] sm:$0xff]
    %v342 = vld [vmem:[%s2 + $0x978] sm:$0xff]
    %v343 = vld [vmem:[%s2 + $0x980] sm:$0xff]
    %v344 = vld [vmem:[%s2 + $0x988] sm:$0xff]
    %v345 = vld [vmem:[%s2 + $0x990] sm:$0xff]
    %v346 = vld [vmem:[%s2 + $0x998] sm:$0xff]
    %v347 = vld [vmem:[%s2 + $0x9a0] sm:$0xff]
    %v348 = vld [vmem:[%s2 + $0x9a8] sm:$0xff]
    %v349 = vld [vmem:[%s2 + $0x9b0] sm:$0xff]
    %v350 = vld [vmem:[%s2 + $0x9b8] sm:$0xff]
    %v351 = vld [vmem:[%s2 + $0x9c0] sm:$0xff]
    %v352 = vld [vmem:[%s2 + $0x9c8] sm:$0xff]
    %v353 = vld [vmem:[%s2 + $0x9d0] sm:$0xff]
    %v354 = vld [vmem:[%s2 + $0x9d8] sm:$0xff]
    %v355 = vld [vmem:[%s2 + $0x9e0] sm:$0xff]
    %v356 = vld [vmem:[%s2 + $0x9e8] sm:$0xff]
    %v357 = vld [vmem:[%s2 + $0x9f0] sm:$0xff]
    %v358 = vld [vmem:[%s2 + $0x9f8] sm:$0xff]
    %v359 = vld [vmem:[%s2 + $0xa00] sm:$0xff]
    %v360 = vld [vmem:[%s2 + $0xa08] sm:$0xff]
    %v361 = vld [vmem:[%s2 + $0xa10] sm:$0xff]
    %v362 = vld [vmem:[%s2 + $0xa18] sm:$0xff]
    %v363 = vld [vmem:[%s2 + $0xa20] sm:$0xff]
    %v364 = vld [vmem:[%s2 + $0xa28] sm:$0xff]
    %v365 = vld [vmem:[%s2 + $0xa30] sm:$0xff]
    %v366 = vld [vmem:[%s2 + $0xa38] sm:$0xff]
    %v367 = vld [vmem:[%s2 + $0xa40] sm:$0xff]
    %v368 = vld [vmem:[%s2 + $0xa48] sm:$0xff]
    %v369 = vld [vmem:[%s2 + $0xa50] sm:$0xff]
    %v370 = vld [vmem:[%s2 + $0xa58] sm:$0xff]
    %v371 = vld [vmem:[%s2 + $0xa60] sm:$0xff]
    %v372 = vld [vmem:[%s2 + $0xa68] sm:$0xff]
    %v373 = vld [vmem:[%s2 + $0xa70] sm:$0xff]
    %v374 = vld [vmem:[%s2 + $0xa78] sm:$0xff]
    %v375 = vld [vmem:[%s2 + $0xa80] sm:$0xff]
    %v376 = vld [vmem:[%s2 + $0xa88] sm:$0xff]
    %v377 = vld [vmem:[%s2 + $0xa90] sm:$0xff]
    %v378 = vld [vmem:[%s2 + $0xa98] sm:$0xff]
    %v379 = vld [vmem:[%s2 + $0xaa0] sm:$0xff]
    %v380 = vld [vmem:[%s2 + $0xaa8] sm:$0xff]
    %v381 = vld [vmem:[%s2 + $0xab0] sm:$0xff]
    %v382 = vld [vmem:[%s2 + $0xab8] sm:$0xff]
    %v383 = vld [vmem:[%s2 + $0xac0] sm:$0xff]
    %v384 = vld [vmem:[%s2 + $0xac8] sm:$0xff]
    %v385 = vld [vmem:[%s2 + $0xad0] sm:$0xff]
    %v386 = vld [vmem:[%s2 + $0xad8] sm:$0xff]
    %v387 = vld [vmem:[%s2 + $0xae0] sm:$0xff]
    %v388 = vld [vmem:[%s2 + $0xae8] sm:$0xff]
    %v389 = vld [vmem:[%s2 + $0xaf0] sm:$0xff]
    %v390 = vld [vmem:[%s2 + $0xaf8] sm:$0xff]
    %v391 = vld [vmem:[%s2 + $0xb00] sm:$0xff]
    %v392 = vld [vmem:[%s2 + $0xb08] sm:$0xff]
    %v393 = vld [vmem:[%s2 + $0xb10] sm:$0xff]
    %v394 = vld [vmem:[%s2 + $0xb18] sm:$0xff]
    %v395 = vld [vmem:[%s2 + $0xb20] sm:$0xff]
    %v396 = vld [vmem:[%s2 + $0xb28] sm:$0xff]
    %v397 = vld [vmem:[%s2 + $0xb30] sm:$0xff]
    %v398 = vld [vmem:[%s2 + $0xb38] sm:$0xff]
    %v399 = vld [vmem:[%s2 + $0xb40] sm:$0xff]
    %v400 = vld [vmem:[%s2 + $0xb48] sm:$0xff]
    %v401 = vld [vmem:[%s2 + $0xb50] sm:$0xff]
    %v402 = vld [vmem:[%s2 + $0xb58] sm:$0xff]
    %v403 = vld [vmem:[%s2 + $0xb60] sm:$0xff]
    %v404 = vld [vmem:[%s2 + $0xb68] sm:$0xff]
    %v405 = vld [vmem:[%s2 + $0xb70] sm:$0xff]
    %v406 = vld [vmem:[%s2 + $0xb78] sm:$0xff]
    %v407 = vld [vmem:[%s2 + $0xb80] sm:$0xff]
    %v408 = vld [vmem:[%s2 + $0xb88] sm:$0xff]
    %v409 = vld [vmem:[%s2 + $0xb90] sm:$0xff]
    %v410 = vld [vmem:[%s2 + $0xb98] sm:$0xff]
    %v411 = vld [vmem:[%s2 + $0xba0] sm:$0xff]
    %v412 = vld [vmem:[%s2 + $0xba8] sm:$0xff]
    %v413 = vld [vmem:[%s2 + $0xbb0] sm:$0xff]
    %v414 = vld [vmem:[%s2 + $0xbb8] sm:$0xff]
    %v415 = vld [vmem:[%s2 + $0xbc0] sm:$0xff]
    %v416 = vld [vmem:[%s2 + $0xbc8] sm:$0xff]
    %v417 = vld [vmem:[%s2 + $0xbd0] sm:$0xff]
    %v418 = vld [vmem:[%s2 + $0xbd8] sm:$0xff]
    %v419 = vld [vmem:[%s2 + $0xbe0] sm:$0xff]
    %v420 = vld [vmem:[%s2 + $0xbe8] sm:$0xff]
    %v421 = vld [vmem:[%s2 + $0xbf0] sm:$0xff]
    %v422 = vld [vmem:[%s2 + $0xbf8] sm:$0xff]
    %v423 = vld [vmem:[%s2 + $0xc00] sm:$0xff]
    %v424 = vld [vmem:[%s2 + $0xc08] sm:$0xff]
    %v425 = vld [vmem:[%s2 + $0xc10] sm:$0xff]
    %v426 = vld [vmem:[%s2 + $0xc18] sm:$0xff]
    %v427 = vld [vmem:[%s2 + $0xc20] sm:$0xff]
    %v428 = vld [vmem:[%s2 + $0xc28] sm:$0xff]
    %v429 = vld [vmem:[%s2 + $0xc30] sm:$0xff]
    %v430 = vld [vmem:[%s2 + $0xc38] sm:$0xff]
    %v431 = vld [vmem:[%s2 + $0xc40] sm:$0xff]
    %v432 = vld [vmem:[%s2 + $0xc48] sm:$0xff]
    %v433 = vld [vmem:[%s2 + $0xc50] sm:$0xff]
    %v434 = vld [vmem:[%s2 + $0xc58] sm:$0xff]
    %v435 = vld [vmem:[%s2 + $0xc60] sm:$0xff]
    %v436 = vld [vmem:[%s2 + $0xc68] sm:$0xff]
    %v437 = vld [vmem:[%s2 + $0xc70] sm:$0xff]
    %v438 = vld [vmem:[%s2 + $0xc78] sm:$0xff]
    %v439 = vld [vmem:[%s3] sm:$0x1]
    %v441 = vlaneseq
    %v442 = vshrl.u32 %v441, 7
    %v443 = vsub.s32 0, %v442
    %v444 = vrot.slane %v439, %v443
    %v453 = vcombine.high %v32, %v32
    %v455 = vunpack.c.l.s4 1983009808
    %v456 = vunpack.c.0.s8 %v455
    %v457 = vlaneseq
    %v458 = vshrl.u32 %v457, 7
    %v459 = vsub.s32 %v456, %v458
    %v460 = vrot.slane %v32, %v459
    %v462 = vunpack.c.l.s4 1983009808
    %v463 = vunpack.c.0.s8 %v462
    %v464 = vlaneseq
    %v465 = vshrl.u32 %v464, 7
    %v466 = vsub.s32 %v463, %v465
    %v467 = vrot.slane %v453, %v466
    %v468 = vcombine.high %v460, %v460
    %v469 = vcombine.high %v467, %v467
    %v470 = vcombine.high %v33, %v33
    %v472 = vunpack.c.l.s4 1983009808
    %v473 = vunpack.c.0.s8 %v472
    %v474 = vlaneseq
    %v475 = vshrl.u32 %v474, 7
    %v476 = vsub.s32 %v473, %v475
    %v477 = vrot.slane %v33, %v476
    %v479 = vunpack.c.l.s4 1983009808
    %v480 = vunpack.c.0.s8 %v479
    %v481 = vlaneseq
    %v482 = vshrl.u32 %v481, 7
    %v483 = vsub.s32 %v480, %v482
    %v484 = vrot.slane %v470, %v483
    %v485 = vcombine.high %v477, %v477
    %v486 = vcombine.high %v484, %v484
    %v487 = vcombine.high %v34, %v34
    %v489 = vunpack.c.l.s4 1983009808
    %v490 = vunpack.c.0.s8 %v489
    %v491 = vlaneseq
    %v492 = vshrl.u32 %v491, 7
    %v493 = vsub.s32 %v490, %v492
    %v494 = vrot.slane %v34, %v493
    %v496 = vunpack.c.l.s4 1983009808
    %v497 = vunpack.c.0.s8 %v496
    %v498 = vlaneseq
    %v499 = vshrl.u32 %v498, 7
    %v500 = vsub.s32 %v497, %v499
    %v501 = vrot.slane %v487, %v500
    %v502 = vcombine.high %v494, %v494
    %v503 = vcombine.high %v501, %v501
    %v504 = vcombine.high %v35, %v35
    %v506 = vunpack.c.l.s4 1983009808
    %v507 = vunpack.c.0.s8 %v506
    %v508 = vlaneseq
    %v509 = vshrl.u32 %v508, 7
    %v510 = vsub.s32 %v507, %v509
    %v511 = vrot.slane %v35, %v510
    %v513 = vunpack.c.l.s4 1983009808
    %v514 = vunpack.c.0.s8 %v513
    %v515 = vlaneseq
    %v516 = vshrl.u32 %v515, 7
    %v517 = vsub.s32 %v514, %v516
    %v518 = vrot.slane %v504, %v517
    %v519 = vcombine.high %v511, %v511
    %v520 = vcombine.high %v518, %v518
    %v521 = vcombine.high %v36, %v36
    %v523 = vunpack.c.l.s4 1983009808
    %v524 = vunpack.c.0.s8 %v523
    %v525 = vlaneseq
    %v526 = vshrl.u32 %v525, 7
    %v527 = vsub.s32 %v524, %v526
    %v528 = vrot.slane %v36, %v527
    %v530 = vunpack.c.l.s4 1983009808
    %v531 = vunpack.c.0.s8 %v530
    %v532 = vlaneseq
    %v533 = vshrl.u32 %v532, 7
    %v534 = vsub.s32 %v531, %v533
    %v535 = vrot.slane %v521, %v534
    %v536 = vcombine.high %v528, %v528
    %v537 = vcombine.high %v535, %v535
    %v538 = vcombine.high %v37, %v37
    %v540 = vunpack.c.l.s4 1983009808
    %v541 = vunpack.c.0.s8 %v540
    %v542 = vlaneseq
    %v543 = vshrl.u32 %v542, 7
    %v544 = vsub.s32 %v541, %v543
    %v545 = vrot.slane %v37, %v544
    %v547 = vunpack.c.l.s4 1983009808
    %v548 = vunpack.c.0.s8 %v547
    %v549 = vlaneseq
    %v550 = vshrl.u32 %v549, 7
    %v551 = vsub.s32 %v548, %v550
    %v552 = vrot.slane %v538, %v551
    %v553 = vcombine.high %v545, %v545
    %v554 = vcombine.high %v552, %v552
    %v556 = vunpack.c.l.s4 1983009808
    %v557 = vunpack.c.0.s8 %v556
    %v558 = vlaneseq
    %v559 = vshrl.u32 %v558, 7
    %v560 = vsub.s32 %v557, %v559
    %v561 = vrot.slane %v38, %v560
    %587 = vmatprep.subr.mxu0 0.0
    %588 = vmatpush1.msra.mxu0 %v54
    %589 = vmatprep.subr.mxu0 0.0
    %590 = vmatpush1.msra.mxu0 %v53
    %591 = vmatprep.subr.mxu0 0.0
    %592 = vmatpush1.msra.mxu0 %v52
    %593 = vmatprep.subr.mxu0 0.0
    %594 = vmatpush1.msra.mxu0 %v51
    %595 = vmatprep.subr.mxu0 0.0
    %596 = vmatpush1.msra.mxu0 %v50
    %597 = vmatprep.subr.mxu0 0.0
    %598 = vmatpush1.msra.mxu0 %v49
    %599 = vmatprep.subr.mxu0 0.0
    %600 = vmatpush1.msra.mxu0 %v48
    %601 = vmatprep.subr.mxu0 0.0
    %602 = vmatpush1.msra.mxu0 %v47
    %603 = vmatprep.subr.mxu0 0.0
    %604 = vmatpush1.msra.mxu0 %v46
    %605 = vmatprep.subr.mxu0 0.0
    %606 = vmatpush1.msra.mxu0 %v45
    %607 = vmatprep.subr.mxu0 0.0
    %608 = vmatpush1.msra.mxu0 %v44
    %609 = vmatprep.subr.mxu0 0.0
    %610 = vmatpush1.msra.mxu0 %v43
    %611 = vmatprep.subr.mxu0 0.0
    %612 = vmatpush1.msra.mxu0 %v42
    %613 = vmatprep.subr.mxu0 0.0
    %614 = vmatpush1.msra.mxu0 %v41
    %615 = vmatprep.subr.mxu0 0.0
    %616 = vmatpush1.msra.mxu0 %v40
    %617 = vmatprep.subr.mxu0 0.0
    %618 = vmatpush1.msra.mxu0 %v39
    %619 = vmatprep.subr.mxu0 0.0
    %620 = vmatpush2.msra.mxu0 %v70
    %621 = vmatprep.subr.mxu0 0.0
    %622 = vmatpush2.msra.mxu0 %v69
    %623 = vmatprep.subr.mxu0 0.0
    %624 = vmatpush2.msra.mxu0 %v68
    %625 = vmatprep.subr.mxu0 0.0
    %626 = vmatpush2.msra.mxu0 %v67
    %627 = vmatprep.subr.mxu0 0.0
    %628 = vmatpush2.msra.mxu0 %v66
    %629 = vmatprep.subr.mxu0 0.0
    %630 = vmatpush2.msra.mxu0 %v65
    %631 = vmatprep.subr.mxu0 0.0
    %632 = vmatpush2.msra.mxu0 %v64
    %633 = vmatprep.subr.mxu0 0.0
    %634 = vmatpush2.msra.mxu0 %v63
    %635 = vmatprep.subr.mxu0 0.0
    %636 = vmatpush2.msra.mxu0 %v62
    %637 = vmatprep.subr.mxu0 0.0
    %638 = vmatpush2.msra.mxu0 %v61
    %639 = vmatprep.subr.mxu0 0.0
    %640 = vmatpush2.msra.mxu0 %v60
    %641 = vmatprep.subr.mxu0 0.0
    %642 = vmatpush2.msra.mxu0 %v59
    %643 = vmatprep.subr.mxu0 0.0
    %644 = vmatpush2.msra.mxu0 %v58
    %645 = vmatprep.subr.mxu0 0.0
    %646 = vmatpush2.msra.mxu0 %v57
    %647 = vmatprep.subr.mxu0 0.0
    %648 = vmatpush2.msra.mxu0 %v56
    %649 = vmatprep.subr.mxu0 0.0
    %650 = vmatpush2.msra.mxu0 %v55
    %651 = vmatprep.mubr.f32.mxu0 %v468
    %652 = vmatmul.mubr.f32.gmra.mxu0 %v460
    %v653 = vpop.f32.mrf.mxu0
    %v654 = vadd.f32 %v444, %v653
    %v655 = vpop.f32.mrf.mxu0
    %656 = vdwg.mxu0
    %657 = vmatprep.subr.mxu0 0.0
    %658 = vmatpush1.msra.mxu0 %v86
    %659 = vmatprep.subr.mxu0 0.0
    %660 = vmatpush1.msra.mxu0 %v85
    %661 = vmatprep.subr.mxu0 0.0
    %662 = vmatpush1.msra.mxu0 %v84
    %663 = vmatprep.subr.mxu0 0.0
    %664 = vmatpush1.msra.mxu0 %v83
    %665 = vmatprep.subr.mxu0 0.0
    %666 = vmatpush1.msra.mxu0 %v82
    %667 = vmatprep.subr.mxu0 0.0
    %668 = vmatpush1.msra.mxu0 %v81
    %669 = vmatprep.subr.mxu0 0.0
    %670 = vmatpush1.msra.mxu0 %v80
    %671 = vmatprep.subr.mxu0 0.0
    %672 = vmatpush1.msra.mxu0 %v79
    %673 = vmatprep.subr.mxu0 0.0
    %674 = vmatpush1.msra.mxu0 %v78
    %675 = vmatprep.subr.mxu0 0.0
    %676 = vmatpush1.msra.mxu0 %v77
    %677 = vmatprep.subr.mxu0 0.0
    %678 = vmatpush1.msra.mxu0 %v76
    %679 = vmatprep.subr.mxu0 0.0
    %680 = vmatpush1.msra.mxu0 %v75
    %681 = vmatprep.subr.mxu0 0.0
    %682 = vmatpush1.msra.mxu0 %v74
    %683 = vmatprep.subr.mxu0 0.0
    %684 = vmatpush1.msra.mxu0 %v73
    %685 = vmatprep.subr.mxu0 0.0
    %686 = vmatpush1.msra.mxu0 %v72
    %687 = vmatprep.subr.mxu0 0.0
    %688 = vmatpush1.msra.mxu0 %v71
    %689 = vmatprep.subr.mxu0 0.0
    %690 = vmatpush2.msra.mxu0 %v102
    %691 = vmatprep.subr.mxu0 0.0
    %692 = vmatpush2.msra.mxu0 %v101
    %693 = vmatprep.subr.mxu0 0.0
    %694 = vmatpush2.msra.mxu0 %v100
    %695 = vmatprep.subr.mxu0 0.0
    %696 = vmatpush2.msra.mxu0 %v99
    %697 = vmatprep.subr.mxu0 0.0
    %698 = vmatpush2.msra.mxu0 %v98
    %699 = vmatprep.subr.mxu0 0.0
    %700 = vmatpush2.msra.mxu0 %v97
    %701 = vmatprep.subr.mxu0 0.0
    %702 = vmatpush2.msra.mxu0 %v96
    %703 = vmatprep.subr.mxu0 0.0
    %704 = vmatpush2.msra.mxu0 %v95
    %705 = vmatprep.subr.mxu0 0.0
    %706 = vmatpush2.msra.mxu0 %v94
    %707 = vmatprep.subr.mxu0 0.0
    %708 = vmatpush2.msra.mxu0 %v93
    %709 = vmatprep.subr.mxu0 0.0
    %710 = vmatpush2.msra.mxu0 %v92
    %711 = vmatprep.subr.mxu0 0.0
    %712 = vmatpush2.msra.mxu0 %v91
    %713 = vmatprep.subr.mxu0 0.0
    %714 = vmatpush2.msra.mxu0 %v90
    %715 = vmatprep.subr.mxu0 0.0
    %716 = vmatpush2.msra.mxu0 %v89
    %717 = vmatprep.subr.mxu0 0.0
    %718 = vmatpush2.msra.mxu0 %v88
    %719 = vmatprep.subr.mxu0 0.0
    %720 = vmatpush2.msra.mxu0 %v87
    %721 = vmatprep.mubr.f32.mxu0 %v469
    %722 = vmatmul.mubr.f32.gmra.mxu0 %v467
    %v723 = vpop.f32.mrf.mxu0
    %v724 = vadd.f32 %v654, %v723
    %v725 = vpop.f32.mrf.mxu0
    %726 = vdwg.mxu0
    %727 = vmatprep.subr.mxu0 0.0
    %728 = vmatpush1.msra.mxu0 %v118
    %729 = vmatprep.subr.mxu0 0.0
    %730 = vmatpush1.msra.mxu0 %v117
    %731 = vmatprep.subr.mxu0 0.0
    %732 = vmatpush1.msra.mxu0 %v116
    %733 = vmatprep.subr.mxu0 0.0
    %734 = vmatpush1.msra.mxu0 %v115
    %735 = vmatprep.subr.mxu0 0.0
    %736 = vmatpush1.msra.mxu0 %v114
    %737 = vmatprep.subr.mxu0 0.0
    %738 = vmatpush1.msra.mxu0 %v113
    %739 = vmatprep.subr.mxu0 0.0
    %740 = vmatpush1.msra.mxu0 %v112
    %741 = vmatprep.subr.mxu0 0.0
    %742 = vmatpush1.msra.mxu0 %v111
    %743 = vmatprep.subr.mxu0 0.0
    %744 = vmatpush1.msra.mxu0 %v110
    %745 = vmatprep.subr.mxu0 0.0
    %746 = vmatpush1.msra.mxu0 %v109
    %747 = vmatprep.subr.mxu0 0.0
    %748 = vmatpush1.msra.mxu0 %v108
    %749 = vmatprep.subr.mxu0 0.0
    %750 = vmatpush1.msra.mxu0 %v107
    %751 = vmatprep.subr.mxu0 0.0
    %752 = vmatpush1.msra.mxu0 %v106
    %753 = vmatprep.subr.mxu0 0.0
    %754 = vmatpush1.msra.mxu0 %v105
    %755 = vmatprep.subr.mxu0 0.0
    %756 = vmatpush1.msra.mxu0 %v104
    %757 = vmatprep.subr.mxu0 0.0
    %758 = vmatpush1.msra.mxu0 %v103
    %759 = vmatprep.subr.mxu0 0.0
    %760 = vmatpush2.msra.mxu0 %v134
    %761 = vmatprep.subr.mxu0 0.0
    %762 = vmatpush2.msra.mxu0 %v133
    %763 = vmatprep.subr.mxu0 0.0
    %764 = vmatpush2.msra.mxu0 %v132
    %765 = vmatprep.subr.mxu0 0.0
    %766 = vmatpush2.msra.mxu0 %v131
    %767 = vmatprep.subr.mxu0 0.0
    %768 = vmatpush2.msra.mxu0 %v130
    %769 = vmatprep.subr.mxu0 0.0
    %770 = vmatpush2.msra.mxu0 %v129
    %771 = vmatprep.subr.mxu0 0.0
    %772 = vmatpush2.msra.mxu0 %v128
    %773 = vmatprep.subr.mxu0 0.0
    %774 = vmatpush2.msra.mxu0 %v127
    %775 = vmatprep.subr.mxu0 0.0
    %776 = vmatpush2.msra.mxu0 %v126
    %777 = vmatprep.subr.mxu0 0.0
    %778 = vmatpush2.msra.mxu0 %v125
    %779 = vmatprep.subr.mxu0 0.0
    %780 = vmatpush2.msra.mxu0 %v124
    %781 = vmatprep.subr.mxu0 0.0
    %782 = vmatpush2.msra.mxu0 %v123
    %783 = vmatprep.subr.mxu0 0.0
    %784 = vmatpush2.msra.mxu0 %v122
    %785 = vmatprep.subr.mxu0 0.0
    %786 = vmatpush2.msra.mxu0 %v121
    %787 = vmatprep.subr.mxu0 0.0
    %788 = vmatpush2.msra.mxu0 %v120
    %789 = vmatprep.subr.mxu0 0.0
    %790 = vmatpush2.msra.mxu0 %v119
    %791 = vmatprep.mubr.f32.mxu0 %v485
    %792 = vmatmul.mubr.f32.gmra.mxu0 %v477
    %v793 = vpop.f32.mrf.mxu0
    %v794 = vadd.f32 %v724, %v793
    %v795 = vpop.f32.mrf.mxu0
    %796 = vdwg.mxu0
    %797 = vmatprep.subr.mxu0 0.0
    %798 = vmatpush1.msra.mxu0 %v150
    %799 = vmatprep.subr.mxu0 0.0
    %800 = vmatpush1.msra.mxu0 %v149
    %801 = vmatprep.subr.mxu0 0.0
    %802 = vmatpush1.msra.mxu0 %v148
    %803 = vmatprep.subr.mxu0 0.0
    %804 = vmatpush1.msra.mxu0 %v147
    %805 = vmatprep.subr.mxu0 0.0
    %806 = vmatpush1.msra.mxu0 %v146
    %807 = vmatprep.subr.mxu0 0.0
    %808 = vmatpush1.msra.mxu0 %v145
    %809 = vmatprep.subr.mxu0 0.0
    %810 = vmatpush1.msra.mxu0 %v144
    %811 = vmatprep.subr.mxu0 0.0
    %812 = vmatpush1.msra.mxu0 %v143
    %813 = vmatprep.subr.mxu0 0.0
    %814 = vmatpush1.msra.mxu0 %v142
    %815 = vmatprep.subr.mxu0 0.0
    %816 = vmatpush1.msra.mxu0 %v141
    %817 = vmatprep.subr.mxu0 0.0
    %818 = vmatpush1.msra.mxu0 %v140
    %819 = vmatprep.subr.mxu0 0.0
    %820 = vmatpush1.msra.mxu0 %v139
    %821 = vmatprep.subr.mxu0 0.0
    %822 = vmatpush1.msra.mxu0 %v138
    %823 = vmatprep.subr.mxu0 0.0
    %824 = vmatpush1.msra.mxu0 %v137
    %825 = vmatprep.subr.mxu0 0.0
    %826 = vmatpush1.msra.mxu0 %v136
    %827 = vmatprep.subr.mxu0 0.0
    %828 = vmatpush1.msra.mxu0 %v135
    %829 = vmatprep.subr.mxu0 0.0
    %830 = vmatpush2.msra.mxu0 %v166
    %831 = vmatprep.subr.mxu0 0.0
    %832 = vmatpush2.msra.mxu0 %v165
    %833 = vmatprep.subr.mxu0 0.0
    %834 = vmatpush2.msra.mxu0 %v164
    %835 = vmatprep.subr.mxu0 0.0
    %836 = vmatpush2.msra.mxu0 %v163
    %837 = vmatprep.subr.mxu0 0.0
    %838 = vmatpush2.msra.mxu0 %v162
    %839 = vmatprep.subr.mxu0 0.0
    %840 = vmatpush2.msra.mxu0 %v161
    %841 = vmatprep.subr.mxu0 0.0
    %842 = vmatpush2.msra.mxu0 %v160
    %843 = vmatprep.subr.mxu0 0.0
    %844 = vmatpush2.msra.mxu0 %v159
    %845 = vmatprep.subr.mxu0 0.0
    %846 = vmatpush2.msra.mxu0 %v158
    %847 = vmatprep.subr.mxu0 0.0
    %848 = vmatpush2.msra.mxu0 %v157
    %849 = vmatprep.subr.mxu0 0.0
    %850 = vmatpush2.msra.mxu0 %v156
    %851 = vmatprep.subr.mxu0 0.0
    %852 = vmatpush2.msra.mxu0 %v155
    %853 = vmatprep.subr.mxu0 0.0
    %854 = vmatpush2.msra.mxu0 %v154
    %855 = vmatprep.subr.mxu0 0.0
    %856 = vmatpush2.msra.mxu0 %v153
    %857 = vmatprep.subr.mxu0 0.0
    %858 = vmatpush2.msra.mxu0 %v152
    %859 = vmatprep.subr.mxu0 0.0
    %860 = vmatpush2.msra.mxu0 %v151
    %861 = vmatprep.mubr.f32.mxu0 %v486
    %862 = vmatmul.mubr.f32.gmra.mxu0 %v484
    %v863 = vpop.f32.mrf.mxu0
    %v864 = vadd.f32 %v794, %v863
    %v865 = vpop.f32.mrf.mxu0
    %866 = vdwg.mxu0
    %867 = vmatprep.subr.mxu0 0.0
    %868 = vmatpush1.msra.mxu0 %v182
    %869 = vmatprep.subr.mxu0 0.0
    %870 = vmatpush1.msra.mxu0 %v181
    %871 = vmatprep.subr.mxu0 0.0
    %872 = vmatpush1.msra.mxu0 %v180
    %873 = vmatprep.subr.mxu0 0.0
    %874 = vmatpush1.msra.mxu0 %v179
    %875 = vmatprep.subr.mxu0 0.0
    %876 = vmatpush1.msra.mxu0 %v178
    %877 = vmatprep.subr.mxu0 0.0
    %878 = vmatpush1.msra.mxu0 %v177
    %879 = vmatprep.subr.mxu0 0.0
    %880 = vmatpush1.msra.mxu0 %v176
    %881 = vmatprep.subr.mxu0 0.0
    %882 = vmatpush1.msra.mxu0 %v175
    %883 = vmatprep.subr.mxu0 0.0
    %884 = vmatpush1.msra.mxu0 %v174
    %885 = vmatprep.subr.mxu0 0.0
    %886 = vmatpush1.msra.mxu0 %v173
    %887 = vmatprep.subr.mxu0 0.0
    %888 = vmatpush1.msra.mxu0 %v172
    %889 = vmatprep.subr.mxu0 0.0
    %890 = vmatpush1.msra.mxu0 %v171
    %891 = vmatprep.subr.mxu0 0.0
    %892 = vmatpush1.msra.mxu0 %v170
    %893 = vmatprep.subr.mxu0 0.0
    %894 = vmatpush1.msra.mxu0 %v169
    %895 = vmatprep.subr.mxu0 0.0
    %896 = vmatpush1.msra.mxu0 %v168
    %897 = vmatprep.subr.mxu0 0.0
    %898 = vmatpush1.msra.mxu0 %v167
    %899 = vmatprep.subr.mxu0 0.0
    %900 = vmatpush2.msra.mxu0 %v198
    %901 = vmatprep.subr.mxu0 0.0
    %902 = vmatpush2.msra.mxu0 %v197
    %903 = vmatprep.subr.mxu0 0.0
    %904 = vmatpush2.msra.mxu0 %v196
    %905 = vmatprep.subr.mxu0 0.0
    %906 = vmatpush2.msra.mxu0 %v195
    %907 = vmatprep.subr.mxu0 0.0
    %908 = vmatpush2.msra.mxu0 %v194
    %909 = vmatprep.subr.mxu0 0.0
    %910 = vmatpush2.msra.mxu0 %v193
    %911 = vmatprep.subr.mxu0 0.0
    %912 = vmatpush2.msra.mxu0 %v192
    %913 = vmatprep.subr.mxu0 0.0
    %914 = vmatpush2.msra.mxu0 %v191
    %915 = vmatprep.subr.mxu0 0.0
    %916 = vmatpush2.msra.mxu0 %v190
    %917 = vmatprep.subr.mxu0 0.0
    %918 = vmatpush2.msra.mxu0 %v189
    %919 = vmatprep.subr.mxu0 0.0
    %920 = vmatpush2.msra.mxu0 %v188
    %921 = vmatprep.subr.mxu0 0.0
    %922 = vmatpush2.msra.mxu0 %v187
    %923 = vmatprep.subr.mxu0 0.0
    %924 = vmatpush2.msra.mxu0 %v186
    %925 = vmatprep.subr.mxu0 0.0
    %926 = vmatpush2.msra.mxu0 %v185
    %927 = vmatprep.subr.mxu0 0.0
    %928 = vmatpush2.msra.mxu0 %v184
    %929 = vmatprep.subr.mxu0 0.0
    %930 = vmatpush2.msra.mxu0 %v183
    %931 = vmatprep.mubr.f32.mxu0 %v502
    %932 = vmatmul.mubr.f32.gmra.mxu0 %v494
    %v933 = vpop.f32.mrf.mxu0
    %v934 = vadd.f32 %v864, %v933
    %v935 = vpop.f32.mrf.mxu0
    %936 = vdwg.mxu0
    %937 = vmatprep.subr.mxu0 0.0
    %938 = vmatpush1.msra.mxu0 %v214
    %939 = vmatprep.subr.mxu0 0.0
    %940 = vmatpush1.msra.mxu0 %v213
    %941 = vmatprep.subr.mxu0 0.0
    %942 = vmatpush1.msra.mxu0 %v212
    %943 = vmatprep.subr.mxu0 0.0
    %944 = vmatpush1.msra.mxu0 %v211
    %945 = vmatprep.subr.mxu0 0.0
    %946 = vmatpush1.msra.mxu0 %v210
    %947 = vmatprep.subr.mxu0 0.0
    %948 = vmatpush1.msra.mxu0 %v209
    %949 = vmatprep.subr.mxu0 0.0
    %950 = vmatpush1.msra.mxu0 %v208
    %951 = vmatprep.subr.mxu0 0.0
    %952 = vmatpush1.msra.mxu0 %v207
    %953 = vmatprep.subr.mxu0 0.0
    %954 = vmatpush1.msra.mxu0 %v206
    %955 = vmatprep.subr.mxu0 0.0
    %956 = vmatpush1.msra.mxu0 %v205
    %957 = vmatprep.subr.mxu0 0.0
    %958 = vmatpush1.msra.mxu0 %v204
    %959 = vmatprep.subr.mxu0 0.0
    %960 = vmatpush1.msra.mxu0 %v203
    %961 = vmatprep.subr.mxu0 0.0
    %962 = vmatpush1.msra.mxu0 %v202
    %963 = vmatprep.subr.mxu0 0.0
    %964 = vmatpush1.msra.mxu0 %v201
    %965 = vmatprep.subr.mxu0 0.0
    %966 = vmatpush1.msra.mxu0 %v200
    %967 = vmatprep.subr.mxu0 0.0
    %968 = vmatpush1.msra.mxu0 %v199
    %969 = vmatprep.subr.mxu0 0.0
    %970 = vmatpush2.msra.mxu0 %v230
    %971 = vmatprep.subr.mxu0 0.0
    %972 = vmatpush2.msra.mxu0 %v229
    %973 = vmatprep.subr.mxu0 0.0
    %974 = vmatpush2.msra.mxu0 %v228
    %975 = vmatprep.subr.mxu0 0.0
    %976 = vmatpush2.msra.mxu0 %v227
    %977 = vmatprep.subr.mxu0 0.0
    %978 = vmatpush2.msra.mxu0 %v226
    %979 = vmatprep.subr.mxu0 0.0
    %980 = vmatpush2.msra.mxu0 %v225
    %981 = vmatprep.subr.mxu0 0.0
    %982 = vmatpush2.msra.mxu0 %v224
    %983 = vmatprep.subr.mxu0 0.0
    %984 = vmatpush2.msra.mxu0 %v223
    %985 = vmatprep.subr.mxu0 0.0
    %986 = vmatpush2.msra.mxu0 %v222
    %987 = vmatprep.subr.mxu0 0.0
    %988 = vmatpush2.msra.mxu0 %v221
    %989 = vmatprep.subr.mxu0 0.0
    %990 = vmatpush2.msra.mxu0 %v220
    %991 = vmatprep.subr.mxu0 0.0
    %992 = vmatpush2.msra.mxu0 %v219
    %993 = vmatprep.subr.mxu0 0.0
    %994 = vmatpush2.msra.mxu0 %v218
    %995 = vmatprep.subr.mxu0 0.0
    %996 = vmatpush2.msra.mxu0 %v217
    %997 = vmatprep.subr.mxu0 0.0
    %998 = vmatpush2.msra.mxu0 %v216
    %999 = vmatprep.subr.mxu0 0.0
    %1000 = vmatpush2.msra.mxu0 %v215
    %1001 = vmatprep.mubr.f32.mxu0 %v503
    %1002 = vmatmul.mubr.f32.gmra.mxu0 %v501
    %v1003 = vpop.f32.mrf.mxu0
    %v1004 = vadd.f32 %v934, %v1003
    %v1005 = vpop.f32.mrf.mxu0
    %1006 = vdwg.mxu0
    %1007 = vmatprep.subr.mxu0 0.0
    %1008 = vmatpush1.msra.mxu0 %v246
    %1009 = vmatprep.subr.mxu0 0.0
    %1010 = vmatpush1.msra.mxu0 %v245
    %1011 = vmatprep.subr.mxu0 0.0
    %1012 = vmatpush1.msra.mxu0 %v244
    %1013 = vmatprep.subr.mxu0 0.0
    %1014 = vmatpush1.msra.mxu0 %v243
    %1015 = vmatprep.subr.mxu0 0.0
    %1016 = vmatpush1.msra.mxu0 %v242
    %1017 = vmatprep.subr.mxu0 0.0
    %1018 = vmatpush1.msra.mxu0 %v241
    %1019 = vmatprep.subr.mxu0 0.0
    %1020 = vmatpush1.msra.mxu0 %v240
    %1021 = vmatprep.subr.mxu0 0.0
    %1022 = vmatpush1.msra.mxu0 %v239
    %1023 = vmatprep.subr.mxu0 0.0
    %1024 = vmatpush1.msra.mxu0 %v238
    %1025 = vmatprep.subr.mxu0 0.0
    %1026 = vmatpush1.msra.mxu0 %v237
    %1027 = vmatprep.subr.mxu0 0.0
    %1028 = vmatpush1.msra.mxu0 %v236
    %1029 = vmatprep.subr.mxu0 0.0
    %1030 = vmatpush1.msra.mxu0 %v235
    %1031 = vmatprep.subr.mxu0 0.0
    %1032 = vmatpush1.msra.mxu0 %v234
    %1033 = vmatprep.subr.mxu0 0.0
    %1034 = vmatpush1.msra.mxu0 %v233
    %1035 = vmatprep.subr.mxu0 0.0
    %1036 = vmatpush1.msra.mxu0 %v232
    %1037 = vmatprep.subr.mxu0 0.0
    %1038 = vmatpush1.msra.mxu0 %v231
    %1039 = vmatprep.subr.mxu0 0.0
    %1040 = vmatpush2.msra.mxu0 %v262
    %1041 = vmatprep.subr.mxu0 0.0
    %1042 = vmatpush2.msra.mxu0 %v261
    %1043 = vmatprep.subr.mxu0 0.0
    %1044 = vmatpush2.msra.mxu0 %v260
    %1045 = vmatprep.subr.mxu0 0.0
    %1046 = vmatpush2.msra.mxu0 %v259
    %1047 = vmatprep.subr.mxu0 0.0
    %1048 = vmatpush2.msra.mxu0 %v258
    %1049 = vmatprep.subr.mxu0 0.0
    %1050 = vmatpush2.msra.mxu0 %v257
    %1051 = vmatprep.subr.mxu0 0.0
    %1052 = vmatpush2.msra.mxu0 %v256
    %1053 = vmatprep.subr.mxu0 0.0
    %1054 = vmatpush2.msra.mxu0 %v255
    %1055 = vmatprep.subr.mxu0 0.0
    %1056 = vmatpush2.msra.mxu0 %v254
    %1057 = vmatprep.subr.mxu0 0.0
    %1058 = vmatpush2.msra.mxu0 %v253
    %1059 = vmatprep.subr.mxu0 0.0
    %1060 = vmatpush2.msra.mxu0 %v252
    %1061 = vmatprep.subr.mxu0 0.0
    %1062 = vmatpush2.msra.mxu0 %v251
    %1063 = vmatprep.subr.mxu0 0.0
    %1064 = vmatpush2.msra.mxu0 %v250
    %1065 = vmatprep.subr.mxu0 0.0
    %1066 = vmatpush2.msra.mxu0 %v249
    %1067 = vmatprep.subr.mxu0 0.0
    %1068 = vmatpush2.msra.mxu0 %v248
    %1069 = vmatprep.subr.mxu0 0.0
    %1070 = vmatpush2.msra.mxu0 %v247
    %1071 = vmatprep.mubr.f32.mxu0 %v519
    %1072 = vmatmul.mubr.f32.gmra.mxu0 %v511
    %v1073 = vpop.f32.mrf.mxu0
    %v1074 = vadd.f32 %v1004, %v1073
    %v1075 = vpop.f32.mrf.mxu0
    %1076 = vdwg.mxu0
    %1077 = vmatprep.subr.mxu0 0.0
    %1078 = vmatpush1.msra.mxu0 %v278
    %1079 = vmatprep.subr.mxu0 0.0
    %1080 = vmatpush1.msra.mxu0 %v277
    %1081 = vmatprep.subr.mxu0 0.0
    %1082 = vmatpush1.msra.mxu0 %v276
    %1083 = vmatprep.subr.mxu0 0.0
    %1084 = vmatpush1.msra.mxu0 %v275
    %1085 = vmatprep.subr.mxu0 0.0
    %1086 = vmatpush1.msra.mxu0 %v274
    %1087 = vmatprep.subr.mxu0 0.0
    %1088 = vmatpush1.msra.mxu0 %v273
    %1089 = vmatprep.subr.mxu0 0.0
    %1090 = vmatpush1.msra.mxu0 %v272
    %1091 = vmatprep.subr.mxu0 0.0
    %1092 = vmatpush1.msra.mxu0 %v271
    %1093 = vmatprep.subr.mxu0 0.0
    %1094 = vmatpush1.msra.mxu0 %v270
    %1095 = vmatprep.subr.mxu0 0.0
    %1096 = vmatpush1.msra.mxu0 %v269
    %1097 = vmatprep.subr.mxu0 0.0
    %1098 = vmatpush1.msra.mxu0 %v268
    %1099 = vmatprep.subr.mxu0 0.0
    %1100 = vmatpush1.msra.mxu0 %v267
    %1101 = vmatprep.subr.mxu0 0.0
    %1102 = vmatpush1.msra.mxu0 %v266
    %1103 = vmatprep.subr.mxu0 0.0
    %1104 = vmatpush1.msra.mxu0 %v265
    %1105 = vmatprep.subr.mxu0 0.0
    %1106 = vmatpush1.msra.mxu0 %v264
    %1107 = vmatprep.subr.mxu0 0.0
    %1108 = vmatpush1.msra.mxu0 %v263
    %1109 = vmatprep.subr.mxu0 0.0
    %1110 = vmatpush2.msra.mxu0 %v294
    %1111 = vmatprep.subr.mxu0 0.0
    %1112 = vmatpush2.msra.mxu0 %v293
    %1113 = vmatprep.subr.mxu0 0.0
    %1114 = vmatpush2.msra.mxu0 %v292
    %1115 = vmatprep.subr.mxu0 0.0
    %1116 = vmatpush2.msra.mxu0 %v291
    %1117 = vmatprep.subr.mxu0 0.0
    %1118 = vmatpush2.msra.mxu0 %v290
    %1119 = vmatprep.subr.mxu0 0.0
    %1120 = vmatpush2.msra.mxu0 %v289
    %1121 = vmatprep.subr.mxu0 0.0
    %1122 = vmatpush2.msra.mxu0 %v288
    %1123 = vmatprep.subr.mxu0 0.0
    %1124 = vmatpush2.msra.mxu0 %v287
    %1125 = vmatprep.subr.mxu0 0.0
    %1126 = vmatpush2.msra.mxu0 %v286
    %1127 = vmatprep.subr.mxu0 0.0
    %1128 = vmatpush2.msra.mxu0 %v285
    %1129 = vmatprep.subr.mxu0 0.0
    %1130 = vmatpush2.msra.mxu0 %v284
    %1131 = vmatprep.subr.mxu0 0.0
    %1132 = vmatpush2.msra.mxu0 %v283
    %1133 = vmatprep.subr.mxu0 0.0
    %1134 = vmatpush2.msra.mxu0 %v282
    %1135 = vmatprep.subr.mxu0 0.0
    %1136 = vmatpush2.msra.mxu0 %v281
    %1137 = vmatprep.subr.mxu0 0.0
    %1138 = vmatpush2.msra.mxu0 %v280
    %1139 = vmatprep.subr.mxu0 0.0
    %1140 = vmatpush2.msra.mxu0 %v279
    %1141 = vmatprep.mubr.f32.mxu0 %v520
    %1142 = vmatmul.mubr.f32.gmra.mxu0 %v518
    %v1143 = vpop.f32.mrf.mxu0
    %v1144 = vadd.f32 %v1074, %v1143
    %v1145 = vpop.f32.mrf.mxu0
    %1146 = vdwg.mxu0
    %1147 = vmatprep.subr.mxu0 0.0
    %1148 = vmatpush1.msra.mxu0 %v310
    %1149 = vmatprep.subr.mxu0 0.0
    %1150 = vmatpush1.msra.mxu0 %v309
    %1151 = vmatprep.subr.mxu0 0.0
    %1152 = vmatpush1.msra.mxu0 %v308
    %1153 = vmatprep.subr.mxu0 0.0
    %1154 = vmatpush1.msra.mxu0 %v307
    %1155 = vmatprep.subr.mxu0 0.0
    %1156 = vmatpush1.msra.mxu0 %v306
    %1157 = vmatprep.subr.mxu0 0.0
    %1158 = vmatpush1.msra.mxu0 %v305
    %1159 = vmatprep.subr.mxu0 0.0
    %1160 = vmatpush1.msra.mxu0 %v304
    %1161 = vmatprep.subr.mxu0 0.0
    %1162 = vmatpush1.msra.mxu0 %v303
    %1163 = vmatprep.subr.mxu0 0.0
    %1164 = vmatpush1.msra.mxu0 %v302
    %1165 = vmatprep.subr.mxu0 0.0
    %1166 = vmatpush1.msra.mxu0 %v301
    %1167 = vmatprep.subr.mxu0 0.0
    %1168 = vmatpush1.msra.mxu0 %v300
    %1169 = vmatprep.subr.mxu0 0.0
    %1170 = vmatpush1.msra.mxu0 %v299
    %1171 = vmatprep.subr.mxu0 0.0
    %1172 = vmatpush1.msra.mxu0 %v298
    %1173 = vmatprep.subr.mxu0 0.0
    %1174 = vmatpush1.msra.mxu0 %v297
    %1175 = vmatprep.subr.mxu0 0.0
    %1176 = vmatpush1.msra.mxu0 %v296
    %1177 = vmatprep.subr.mxu0 0.0
    %1178 = vmatpush1.msra.mxu0 %v295
    %1179 = vmatprep.subr.mxu0 0.0
    %1180 = vmatpush2.msra.mxu0 %v326
    %1181 = vmatprep.subr.mxu0 0.0
    %1182 = vmatpush2.msra.mxu0 %v325
    %1183 = vmatprep.subr.mxu0 0.0
    %1184 = vmatpush2.msra.mxu0 %v324
    %1185 = vmatprep.subr.mxu0 0.0
    %1186 = vmatpush2.msra.mxu0 %v323
    %1187 = vmatprep.subr.mxu0 0.0
    %1188 = vmatpush2.msra.mxu0 %v322
    %1189 = vmatprep.subr.mxu0 0.0
    %1190 = vmatpush2.msra.mxu0 %v321
    %1191 = vmatprep.subr.mxu0 0.0
    %1192 = vmatpush2.msra.mxu0 %v320
    %1193 = vmatprep.subr.mxu0 0.0
    %1194 = vmatpush2.msra.mxu0 %v319
    %1195 = vmatprep.subr.mxu0 0.0
    %1196 = vmatpush2.msra.mxu0 %v318
    %1197 = vmatprep.subr.mxu0 0.0
    %1198 = vmatpush2.msra.mxu0 %v317
    %1199 = vmatprep.subr.mxu0 0.0
    %1200 = vmatpush2.msra.mxu0 %v316
    %1201 = vmatprep.subr.mxu0 0.0
    %1202 = vmatpush2.msra.mxu0 %v315
    %1203 = vmatprep.subr.mxu0 0.0
    %1204 = vmatpush2.msra.mxu0 %v314
    %1205 = vmatprep.subr.mxu0 0.0
    %1206 = vmatpush2.msra.mxu0 %v313
    %1207 = vmatprep.subr.mxu0 0.0
    %1208 = vmatpush2.msra.mxu0 %v312
    %1209 = vmatprep.subr.mxu0 0.0
    %1210 = vmatpush2.msra.mxu0 %v311
    %1211 = vmatprep.mubr.f32.mxu0 %v536
    %1212 = vmatmul.mubr.f32.gmra.mxu0 %v528
    %v1213 = vpop.f32.mrf.mxu0
    %v1214 = vadd.f32 %v1144, %v1213
    %v1215 = vpop.f32.mrf.mxu0
    %1216 = vdwg.mxu0
    %1217 = vmatprep.subr.mxu0 0.0
    %1218 = vmatpush1.msra.mxu0 %v342
    %1219 = vmatprep.subr.mxu0 0.0
    %1220 = vmatpush1.msra.mxu0 %v341
    %1221 = vmatprep.subr.mxu0 0.0
    %1222 = vmatpush1.msra.mxu0 %v340
    %1223 = vmatprep.subr.mxu0 0.0
    %1224 = vmatpush1.msra.mxu0 %v339
    %1225 = vmatprep.subr.mxu0 0.0
    %1226 = vmatpush1.msra.mxu0 %v338
    %1227 = vmatprep.subr.mxu0 0.0
    %1228 = vmatpush1.msra.mxu0 %v337
    %1229 = vmatprep.subr.mxu0 0.0
    %1230 = vmatpush1.msra.mxu0 %v336
    %1231 = vmatprep.subr.mxu0 0.0
    %1232 = vmatpush1.msra.mxu0 %v335
    %1233 = vmatprep.subr.mxu0 0.0
    %1234 = vmatpush1.msra.mxu0 %v334
    %1235 = vmatprep.subr.mxu0 0.0
    %1236 = vmatpush1.msra.mxu0 %v333
    %1237 = vmatprep.subr.mxu0 0.0
    %1238 = vmatpush1.msra.mxu0 %v332
    %1239 = vmatprep.subr.mxu0 0.0
    %1240 = vmatpush1.msra.mxu0 %v331
    %1241 = vmatprep.subr.mxu0 0.0
    %1242 = vmatpush1.msra.mxu0 %v330
    %1243 = vmatprep.subr.mxu0 0.0
    %1244 = vmatpush1.msra.mxu0 %v329
    %1245 = vmatprep.subr.mxu0 0.0
    %1246 = vmatpush1.msra.mxu0 %v328
    %1247 = vmatprep.subr.mxu0 0.0
    %1248 = vmatpush1.msra.mxu0 %v327
    %1249 = vmatprep.subr.mxu0 0.0
    %1250 = vmatpush2.msra.mxu0 %v358
    %1251 = vmatprep.subr.mxu0 0.0
    %1252 = vmatpush2.msra.mxu0 %v357
    %1253 = vmatprep.subr.mxu0 0.0
    %1254 = vmatpush2.msra.mxu0 %v356
    %1255 = vmatprep.subr.mxu0 0.0
    %1256 = vmatpush2.msra.mxu0 %v355
    %1257 = vmatprep.subr.mxu0 0.0
    %1258 = vmatpush2.msra.mxu0 %v354
    %1259 = vmatprep.subr.mxu0 0.0
    %1260 = vmatpush2.msra.mxu0 %v353
    %1261 = vmatprep.subr.mxu0 0.0
    %1262 = vmatpush2.msra.mxu0 %v352
    %1263 = vmatprep.subr.mxu0 0.0
    %1264 = vmatpush2.msra.mxu0 %v351
    %1265 = vmatprep.subr.mxu0 0.0
    %1266 = vmatpush2.msra.mxu0 %v350
    %1267 = vmatprep.subr.mxu0 0.0
    %1268 = vmatpush2.msra.mxu0 %v349
    %1269 = vmatprep.subr.mxu0 0.0
    %1270 = vmatpush2.msra.mxu0 %v348
    %1271 = vmatprep.subr.mxu0 0.0
    %1272 = vmatpush2.msra.mxu0 %v347
    %1273 = vmatprep.subr.mxu0 0.0
    %1274 = vmatpush2.msra.mxu0 %v346
    %1275 = vmatprep.subr.mxu0 0.0
    %1276 = vmatpush2.msra.mxu0 %v345
    %1277 = vmatprep.subr.mxu0 0.0
    %1278 = vmatpush2.msra.mxu0 %v344
    %1279 = vmatprep.subr.mxu0 0.0
    %1280 = vmatpush2.msra.mxu0 %v343
    %1281 = vmatprep.mubr.f32.mxu0 %v537
    %1282 = vmatmul.mubr.f32.gmra.mxu0 %v535
    %v1283 = vpop.f32.mrf.mxu0
    %v1284 = vadd.f32 %v1214, %v1283
    %v1285 = vpop.f32.mrf.mxu0
    %1286 = vdwg.mxu0
    %1287 = vmatprep.subr.mxu0 0.0
    %1288 = vmatpush1.msra.mxu0 %v374
    %1289 = vmatprep.subr.mxu0 0.0
    %1290 = vmatpush1.msra.mxu0 %v373
    %1291 = vmatprep.subr.mxu0 0.0
    %1292 = vmatpush1.msra.mxu0 %v372
    %1293 = vmatprep.subr.mxu0 0.0
    %1294 = vmatpush1.msra.mxu0 %v371
    %1295 = vmatprep.subr.mxu0 0.0
    %1296 = vmatpush1.msra.mxu0 %v370
    %1297 = vmatprep.subr.mxu0 0.0
    %1298 = vmatpush1.msra.mxu0 %v369
    %1299 = vmatprep.subr.mxu0 0.0
    %1300 = vmatpush1.msra.mxu0 %v368
    %1301 = vmatprep.subr.mxu0 0.0
    %1302 = vmatpush1.msra.mxu0 %v367
    %1303 = vmatprep.subr.mxu0 0.0
    %1304 = vmatpush1.msra.mxu0 %v366
    %1305 = vmatprep.subr.mxu0 0.0
    %1306 = vmatpush1.msra.mxu0 %v365
    %1307 = vmatprep.subr.mxu0 0.0
    %1308 = vmatpush1.msra.mxu0 %v364
    %1309 = vmatprep.subr.mxu0 0.0
    %1310 = vmatpush1.msra.mxu0 %v363
    %1311 = vmatprep.subr.mxu0 0.0
    %1312 = vmatpush1.msra.mxu0 %v362
    %1313 = vmatprep.subr.mxu0 0.0
    %1314 = vmatpush1.msra.mxu0 %v361
    %1315 = vmatprep.subr.mxu0 0.0
    %1316 = vmatpush1.msra.mxu0 %v360
    %1317 = vmatprep.subr.mxu0 0.0
    %1318 = vmatpush1.msra.mxu0 %v359
    %1319 = vmatprep.subr.mxu0 0.0
    %1320 = vmatpush2.msra.mxu0 %v390
    %1321 = vmatprep.subr.mxu0 0.0
    %1322 = vmatpush2.msra.mxu0 %v389
    %1323 = vmatprep.subr.mxu0 0.0
    %1324 = vmatpush2.msra.mxu0 %v388
    %1325 = vmatprep.subr.mxu0 0.0
    %1326 = vmatpush2.msra.mxu0 %v387
    %1327 = vmatprep.subr.mxu0 0.0
    %1328 = vmatpush2.msra.mxu0 %v386
    %1329 = vmatprep.subr.mxu0 0.0
    %1330 = vmatpush2.msra.mxu0 %v385
    %1331 = vmatprep.subr.mxu0 0.0
    %1332 = vmatpush2.msra.mxu0 %v384
    %1333 = vmatprep.subr.mxu0 0.0
    %1334 = vmatpush2.msra.mxu0 %v383
    %1335 = vmatprep.subr.mxu0 0.0
    %1336 = vmatpush2.msra.mxu0 %v382
    %1337 = vmatprep.subr.mxu0 0.0
    %1338 = vmatpush2.msra.mxu0 %v381
    %1339 = vmatprep.subr.mxu0 0.0
    %1340 = vmatpush2.msra.mxu0 %v380
    %1341 = vmatprep.subr.mxu0 0.0
    %1342 = vmatpush2.msra.mxu0 %v379
    %1343 = vmatprep.subr.mxu0 0.0
    %1344 = vmatpush2.msra.mxu0 %v378
    %1345 = vmatprep.subr.mxu0 0.0
    %1346 = vmatpush2.msra.mxu0 %v377
    %1347 = vmatprep.subr.mxu0 0.0
    %1348 = vmatpush2.msra.mxu0 %v376
    %1349 = vmatprep.subr.mxu0 0.0
    %1350 = vmatpush2.msra.mxu0 %v375
    %1351 = vmatprep.mubr.f32.mxu0 %v553
    %1352 = vmatmul.mubr.f32.gmra.mxu0 %v545
    %v1353 = vpop.f32.mrf.mxu0
    %v1354 = vadd.f32 %v1284, %v1353
    %v1355 = vpop.f32.mrf.mxu0
    %1356 = vdwg.mxu0
    %1357 = vmatprep.subr.mxu0 0.0
    %1358 = vmatpush1.msra.mxu0 %v406
    %1359 = vmatprep.subr.mxu0 0.0
    %1360 = vmatpush1.msra.mxu0 %v405
    %1361 = vmatprep.subr.mxu0 0.0
    %1362 = vmatpush1.msra.mxu0 %v404
    %1363 = vmatprep.subr.mxu0 0.0
    %1364 = vmatpush1.msra.mxu0 %v403
    %1365 = vmatprep.subr.mxu0 0.0
    %1366 = vmatpush1.msra.mxu0 %v402
    %1367 = vmatprep.subr.mxu0 0.0
    %1368 = vmatpush1.msra.mxu0 %v401
    %1369 = vmatprep.subr.mxu0 0.0
    %1370 = vmatpush1.msra.mxu0 %v400
    %1371 = vmatprep.subr.mxu0 0.0
    %1372 = vmatpush1.msra.mxu0 %v399
    %1373 = vmatprep.subr.mxu0 0.0
    %1374 = vmatpush1.msra.mxu0 %v398
    %1375 = vmatprep.subr.mxu0 0.0
    %1376 = vmatpush1.msra.mxu0 %v397
    %1377 = vmatprep.subr.mxu0 0.0
    %1378 = vmatpush1.msra.mxu0 %v396
    %1379 = vmatprep.subr.mxu0 0.0
    %1380 = vmatpush1.msra.mxu0 %v395
    %1381 = vmatprep.subr.mxu0 0.0
    %1382 = vmatpush1.msra.mxu0 %v394
    %1383 = vmatprep.subr.mxu0 0.0
    %1384 = vmatpush1.msra.mxu0 %v393
    %1385 = vmatprep.subr.mxu0 0.0
    %1386 = vmatpush1.msra.mxu0 %v392
    %1387 = vmatprep.subr.mxu0 0.0
    %1388 = vmatpush1.msra.mxu0 %v391
    %1389 = vmatprep.subr.mxu0 0.0
    %1390 = vmatpush2.msra.mxu0 %v422
    %1391 = vmatprep.subr.mxu0 0.0
    %1392 = vmatpush2.msra.mxu0 %v421
    %1393 = vmatprep.subr.mxu0 0.0
    %1394 = vmatpush2.msra.mxu0 %v420
    %1395 = vmatprep.subr.mxu0 0.0
    %1396 = vmatpush2.msra.mxu0 %v419
    %1397 = vmatprep.subr.mxu0 0.0
    %1398 = vmatpush2.msra.mxu0 %v418
    %1399 = vmatprep.subr.mxu0 0.0
    %1400 = vmatpush2.msra.mxu0 %v417
    %1401 = vmatprep.subr.mxu0 0.0
    %1402 = vmatpush2.msra.mxu0 %v416
    %1403 = vmatprep.subr.mxu0 0.0
    %1404 = vmatpush2.msra.mxu0 %v415
    %1405 = vmatprep.subr.mxu0 0.0
    %1406 = vmatpush2.msra.mxu0 %v414
    %1407 = vmatprep.subr.mxu0 0.0
    %1408 = vmatpush2.msra.mxu0 %v413
    %1409 = vmatprep.subr.mxu0 0.0
    %1410 = vmatpush2.msra.mxu0 %v412
    %1411 = vmatprep.subr.mxu0 0.0
    %1412 = vmatpush2.msra.mxu0 %v411
    %1413 = vmatprep.subr.mxu0 0.0
    %1414 = vmatpush2.msra.mxu0 %v410
    %1415 = vmatprep.subr.mxu0 0.0
    %1416 = vmatpush2.msra.mxu0 %v409
    %1417 = vmatprep.subr.mxu0 0.0
    %1418 = vmatpush2.msra.mxu0 %v408
    %1419 = vmatprep.subr.mxu0 0.0
    %1420 = vmatpush2.msra.mxu0 %v407
    %1421 = vmatprep.mubr.f32.mxu0 %v554
    %1422 = vmatmul.mubr.f32.gmra.mxu0 %v552
    %v1423 = vpop.f32.mrf.mxu0
    %v1424 = vadd.f32 %v1354, %v1423
    %v1425 = vpop.f32.mrf.mxu0
    %1426 = vdwg.mxu0
    %1427 = vmatprep.subr.mxu0 0.0
    %1428 = vmatpush1.msra.mxu0 %v438
    %1429 = vmatprep.subr.mxu0 0.0
    %1430 = vmatpush1.msra.mxu0 %v437
    %1431 = vmatprep.subr.mxu0 0.0
    %1432 = vmatpush1.msra.mxu0 %v436
    %1433 = vmatprep.subr.mxu0 0.0
    %1434 = vmatpush1.msra.mxu0 %v435
    %1435 = vmatprep.subr.mxu0 0.0
    %1436 = vmatpush1.msra.mxu0 %v434
    %1437 = vmatprep.subr.mxu0 0.0
    %1438 = vmatpush1.msra.mxu0 %v433
    %1439 = vmatprep.subr.mxu0 0.0
    %1440 = vmatpush1.msra.mxu0 %v432
    %1441 = vmatprep.subr.mxu0 0.0
    %1442 = vmatpush1.msra.mxu0 %v431
    %1443 = vmatprep.subr.mxu0 0.0
    %1444 = vmatpush1.msra.mxu0 %v430
    %1445 = vmatprep.subr.mxu0 0.0
    %1446 = vmatpush1.msra.mxu0 %v429
    %1447 = vmatprep.subr.mxu0 0.0
    %1448 = vmatpush1.msra.mxu0 %v428
    %1449 = vmatprep.subr.mxu0 0.0
    %1450 = vmatpush1.msra.mxu0 %v427
    %1451 = vmatprep.subr.mxu0 0.0
    %1452 = vmatpush1.msra.mxu0 %v426
    %1453 = vmatprep.subr.mxu0 0.0
    %1454 = vmatpush1.msra.mxu0 %v425
    %1455 = vmatprep.subr.mxu0 0.0
    %1456 = vmatpush1.msra.mxu0 %v424
    %1457 = vmatprep.subr.mxu0 0.0
    %1458 = vmatpush1.msra.mxu0 %v423
    %1459 = vmatprep.subr.mxu0 0.0
    %1460 = vmatpush2.msra.mxu0 0.0
    %1461 = vmatprep.subr.mxu0 0.0
    %1462 = vmatpush2.msra.mxu0 0.0
    %1463 = vmatprep.subr.mxu0 0.0
    %1464 = vmatpush2.msra.mxu0 0.0
    %1465 = vmatprep.subr.mxu0 0.0
    %1466 = vmatpush2.msra.mxu0 0.0
    %1467 = vmatprep.subr.mxu0 0.0
    %1468 = vmatpush2.msra.mxu0 0.0
    %1469 = vmatprep.subr.mxu0 0.0
    %1470 = vmatpush2.msra.mxu0 0.0
    %1471 = vmatprep.subr.mxu0 0.0
    %1472 = vmatpush2.msra.mxu0 0.0
    %1473 = vmatprep.subr.mxu0 0.0
    %1474 = vmatpush2.msra.mxu0 0.0
    %1475 = vmatprep.subr.mxu0 0.0
    %1476 = vmatpush2.msra.mxu0 0.0
    %1477 = vmatprep.subr.mxu0 0.0
    %1478 = vmatpush2.msra.mxu0 0.0
    %1479 = vmatprep.subr.mxu0 0.0
    %1480 = vmatpush2.msra.mxu0 0.0
    %1481 = vmatprep.subr.mxu0 0.0
    %1482 = vmatpush2.msra.mxu0 0.0
    %1483 = vmatprep.subr.mxu0 0.0
    %1484 = vmatpush2.msra.mxu0 0.0
    %1485 = vmatprep.subr.mxu0 0.0
    %1486 = vmatpush2.msra.mxu0 0.0
    %1487 = vmatprep.subr.mxu0 0.0
    %1488 = vmatpush2.msra.mxu0 0.0
    %1489 = vmatprep.subr.mxu0 0.0
    %1490 = vmatpush2.msra.mxu0 0.0
    %1491 = vmatprep.mubr.f32.mxu0 0.0
    %1492 = vmatmul.mubr.f32.gmra.mxu0 %v561
    %v1493 = vpop.f32.mrf.mxu0
    %v1494 = vadd.f32 %v1424, %v1493
    %v1495 = vpop.f32.mrf.mxu0
    %1496 = vdwg.mxu0
    %v1497 = vmax.f32 %v1494, 0.0
    %v1498 = vlaneseq
    %v1499 = vshrl.u32 %v1498, 7
    %v1500 = vlaneseq
    %v1501 = vand.u32 %v1500, 127
    %v1502 = vmul.u32 %v1499, 128
    %v1503 = vadd.s32 %v1502, %v1501
    %s1504 = smul.u32 %s31, 1664525
    %v1505 = vstv %s1504
    %v1506 = vadd.s32 %v1503, %v1505
    %v1507 = vadd.s32 %v1506, 1013904223
    %v1508 = vshrl.u32 %v1507, 16
    %v1509 = vxor.u32 %v1508, %v1507
    %v1510 = vmul.u32 %v1509, 73244475
    %v1511 = vshrl.u32 %v1510, 16
    %v1512 = vxor.u32 %v1511, %v1510
    %v1513 = vmul.u32 %v1512, 73244475
    %v1514 = vshrl.u32 %v1513, 16
    %v1515 = vxor.u32 %v1514, %v1513
    %v1516 = vand.u32 %v1515, 1
    %v1517 = vcvt.s32.f32 %v1516
    %v1518 = vmul.f32 %v1497, %v1517
    %v1519 = vmul.f32 %v1518, 2.0
    %v1520 = vld [vmem:[%s4] sm:$0xff]
    %v1521 = vld [vmem:[%s4 + $0x8] sm:$0xff]
    %v1522 = vld [vmem:[%s4 + $0x10] sm:$0xff]
    %v1523 = vld [vmem:[%s4 + $0x18] sm:$0xff]
    %v1524 = vld [vmem:[%s4 + $0x20] sm:$0xff]
    %v1525 = vld [vmem:[%s4 + $0x28] sm:$0xff]
    %v1526 = vld [vmem:[%s4 + $0x30] sm:$0xff]
    %v1527 = vld [vmem:[%s4 + $0x38] sm:$0xff]
    %v1528 = vld [vmem:[%s4 + $0x40] sm:$0xff]
    %v1529 = vld [vmem:[%s4 + $0x48] sm:$0xff]
    %v1530 = vld [vmem:[%s4 + $0x50] sm:$0xff]
    %v1531 = vld [vmem:[%s4 + $0x58] sm:$0xff]
    %v1532 = vld [vmem:[%s4 + $0x60] sm:$0xff]
    %v1533 = vld [vmem:[%s4 + $0x68] sm:$0xff]
    %v1534 = vld [vmem:[%s4 + $0x70] sm:$0xff]
    %v1535 = vld [vmem:[%s4 + $0x78] sm:$0xff]
    %v1536 = vld [vmem:[%s5] sm:$0x1]
    %v1538 = vlaneseq
    %v1539 = vshrl.u32 %v1538, 7
    %v1540 = vsub.s32 0, %v1539
    %v1541 = vrot.slane %v1536, %v1540
    %1543 = vmatprep.subr.mxu0 0.0
    %1544 = vmatpush1.msra.mxu0 %v1535
    %1545 = vmatprep.subr.mxu0 0.0
    %1546 = vmatpush1.msra.mxu0 %v1534
    %1547 = vmatprep.subr.mxu0 0.0
    %1548 = vmatpush1.msra.mxu0 %v1533
    %1549 = vmatprep.subr.mxu0 0.0
    %1550 = vmatpush1.msra.mxu0 %v1532
    %1551 = vmatprep.subr.mxu0 0.0
    %1552 = vmatpush1.msra.mxu0 %v1531
    %1553 = vmatprep.subr.mxu0 0.0
    %1554 = vmatpush1.msra.mxu0 %v1530
    %1555 = vmatprep.subr.mxu0 0.0
    %1556 = vmatpush1.msra.mxu0 %v1529
    %1557 = vmatprep.subr.mxu0 0.0
    %1558 = vmatpush1.msra.mxu0 %v1528
    %1559 = vmatprep.subr.mxu0 0.0
    %1560 = vmatpush1.msra.mxu0 %v1527
    %1561 = vmatprep.subr.mxu0 0.0
    %1562 = vmatpush1.msra.mxu0 %v1526
    %1563 = vmatprep.subr.mxu0 0.0
    %1564 = vmatpush1.msra.mxu0 %v1525
    %1565 = vmatprep.subr.mxu0 0.0
    %1566 = vmatpush1.msra.mxu0 %v1524
    %1567 = vmatprep.subr.mxu0 0.0
    %1568 = vmatpush1.msra.mxu0 %v1523
    %1569 = vmatprep.subr.mxu0 0.0
    %1570 = vmatpush1.msra.mxu0 %v1522
    %1571 = vmatprep.subr.mxu0 0.0
    %1572 = vmatpush1.msra.mxu0 %v1521
    %1573 = vmatprep.subr.mxu0 0.0
    %1574 = vmatpush1.msra.mxu0 %v1520
    %1575 = vmatprep.subr.mxu0 0.0
    %1576 = vmatpush2.msra.mxu0 0.0
    %1577 = vmatprep.subr.mxu0 0.0
    %1578 = vmatpush2.msra.mxu0 0.0
    %1579 = vmatprep.subr.mxu0 0.0
    %1580 = vmatpush2.msra.mxu0 0.0
    %1581 = vmatprep.subr.mxu0 0.0
    %1582 = vmatpush2.msra.mxu0 0.0
    %1583 = vmatprep.subr.mxu0 0.0
    %1584 = vmatpush2.msra.mxu0 0.0
    %1585 = vmatprep.subr.mxu0 0.0
    %1586 = vmatpush2.msra.mxu0 0.0
    %1587 = vmatprep.subr.mxu0 0.0
    %1588 = vmatpush2.msra.mxu0 0.0
    %1589 = vmatprep.subr.mxu0 0.0
    %1590 = vmatpush2.msra.mxu0 0.0
    %1591 = vmatprep.subr.mxu0 0.0
    %1592 = vmatpush2.msra.mxu0 0.0
    %1593 = vmatprep.subr.mxu0 0.0
    %1594 = vmatpush2.msra.mxu0 0.0
    %1595 = vmatprep.subr.mxu0 0.0
    %1596 = vmatpush2.msra.mxu0 0.0
    %1597 = vmatprep.subr.mxu0 0.0
    %1598 = vmatpush2.msra.mxu0 0.0
    %1599 = vmatprep.subr.mxu0 0.0
    %1600 = vmatpush2.msra.mxu0 0.0
    %1601 = vmatprep.subr.mxu0 0.0
    %1602 = vmatpush2.msra.mxu0 0.0
    %1603 = vmatprep.subr.mxu0 0.0
    %1604 = vmatpush2.msra.mxu0 0.0
    %1605 = vmatprep.subr.mxu0 0.0
    %1606 = vmatpush2.msra.mxu0 0.0
    %1607 = vmatprep.mubr.f32.mxu0 0.0
    %1608 = vmatmul.mubr.f32.gmra.mxu0 %v1519
    %v1609 = vpop.f32.mrf.mxu0
    %v1610 = vadd.f32 %v1541, %v1609
    %v1611 = vpop.f32.mrf.mxu0
    %1612 = vdwg.mxu0
    %v1613 = vmax.f32 %v1610, 0.0
    %v1614 = vadd.s32 %v1506, 2027808446
    %v1615 = vshrl.u32 %v1614, 16
    %v1616 = vxor.u32 %v1615, %v1614
    %v1617 = vmul.u32 %v1616, 73244475
    %v1618 = vshrl.u32 %v1617, 16
    %v1619 = vxor.u32 %v1618, %v1617
    %v1620 = vmul.u32 %v1619, 73244475
    %v1621 = vshrl.u32 %v1620, 16
    %v1622 = vxor.u32 %v1621, %v1620
    %v1623 = vand.u32 %v1622, 1
    %v1624 = vcvt.s32.f32 %v1623
    %v1625 = vmul.f32 %v1613, %v1624
    %v1626 = vmul.f32 %v1625, 2.0
    %v1627 = vld [vmem:[%s6] sm:$0xff]
    %v1628 = vld [vmem:[%s6 + $0x8] sm:$0xff]
    %v1629 = vld [vmem:[%s6 + $0x10] sm:$0xff]
    %v1630 = vld [vmem:[%s6 + $0x18] sm:$0xff]
    %v1631 = vld [vmem:[%s6 + $0x20] sm:$0xff]
    %v1632 = vld [vmem:[%s6 + $0x28] sm:$0xff]
    %v1633 = vld [vmem:[%s6 + $0x30] sm:$0xff]
    %v1634 = vld [vmem:[%s6 + $0x38] sm:$0xff]
    %v1635 = vld [vmem:[%s6 + $0x40] sm:$0xff]
    %v1636 = vld [vmem:[%s6 + $0x48] sm:$0xff]
    %v1637 = vld [vmem:[%s6 + $0x50] sm:$0xff]
    %v1638 = vld [vmem:[%s6 + $0x58] sm:$0xff]
    %v1639 = vld [vmem:[%s6 + $0x60] sm:$0xff]
    %v1640 = vld [vmem:[%s6 + $0x68] sm:$0xff]
    %v1641 = vld [vmem:[%s6 + $0x70] sm:$0xff]
    %v1642 = vld [vmem:[%s6 + $0x78] sm:$0xff]
    %v1643 = vld [vmem:[%s7] sm:$0x1]
    %v1645 = vlaneseq
    %v1646 = vshrl.u32 %v1645, 7
    %v1647 = vsub.s32 0, %v1646
    %v1648 = vrot.slane %v1643, %v1647
    %1650 = vmatprep.subr.mxu0 0.0
    %1651 = vmatpush1.msra.mxu0 %v1642
    %1652 = vmatprep.subr.mxu0 0.0
    %1653 = vmatpush1.msra.mxu0 %v1641
    %1654 = vmatprep.subr.mxu0 0.0
    %1655 = vmatpush1.msra.mxu0 %v1640
    %1656 = vmatprep.subr.mxu0 0.0
    %1657 = vmatpush1.msra.mxu0 %v1639
    %1658 = vmatprep.subr.mxu0 0.0
    %1659 = vmatpush1.msra.mxu0 %v1638
    %1660 = vmatprep.subr.mxu0 0.0
    %1661 = vmatpush1.msra.mxu0 %v1637
    %1662 = vmatprep.subr.mxu0 0.0
    %1663 = vmatpush1.msra.mxu0 %v1636
    %1664 = vmatprep.subr.mxu0 0.0
    %1665 = vmatpush1.msra.mxu0 %v1635
    %1666 = vmatprep.subr.mxu0 0.0
    %1667 = vmatpush1.msra.mxu0 %v1634
    %1668 = vmatprep.subr.mxu0 0.0
    %1669 = vmatpush1.msra.mxu0 %v1633
    %1670 = vmatprep.subr.mxu0 0.0
    %1671 = vmatpush1.msra.mxu0 %v1632
    %1672 = vmatprep.subr.mxu0 0.0
    %1673 = vmatpush1.msra.mxu0 %v1631
    %1674 = vmatprep.subr.mxu0 0.0
    %1675 = vmatpush1.msra.mxu0 %v1630
    %1676 = vmatprep.subr.mxu0 0.0
    %1677 = vmatpush1.msra.mxu0 %v1629
    %1678 = vmatprep.subr.mxu0 0.0
    %1679 = vmatpush1.msra.mxu0 %v1628
    %1680 = vmatprep.subr.mxu0 0.0
    %1681 = vmatpush1.msra.mxu0 %v1627
    %1682 = vmatprep.subr.mxu0 0.0
    %1683 = vmatpush2.msra.mxu0 0.0
    %1684 = vmatprep.subr.mxu0 0.0
    %1685 = vmatpush2.msra.mxu0 0.0
    %1686 = vmatprep.subr.mxu0 0.0
    %1687 = vmatpush2.msra.mxu0 0.0
    %1688 = vmatprep.subr.mxu0 0.0
    %1689 = vmatpush2.msra.mxu0 0.0
    %1690 = vmatprep.subr.mxu0 0.0
    %1691 = vmatpush2.msra.mxu0 0.0
    %1692 = vmatprep.subr.mxu0 0.0
    %1693 = vmatpush2.msra.mxu0 0.0
    %1694 = vmatprep.subr.mxu0 0.0
    %1695 = vmatpush2.msra.mxu0 0.0
    %1696 = vmatprep.subr.mxu0 0.0
    %1697 = vmatpush2.msra.mxu0 0.0
    %1698 = vmatprep.subr.mxu0 0.0
    %1699 = vmatpush2.msra.mxu0 0.0
    %1700 = vmatprep.subr.mxu0 0.0
    %1701 = vmatpush2.msra.mxu0 0.0
    %1702 = vmatprep.subr.mxu0 0.0
    %1703 = vmatpush2.msra.mxu0 0.0
    %1704 = vmatprep.subr.mxu0 0.0
    %1705 = vmatpush2.msra.mxu0 0.0
    %1706 = vmatprep.subr.mxu0 0.0
    %1707 = vmatpush2.msra.mxu0 0.0
    %1708 = vmatprep.subr.mxu0 0.0
    %1709 = vmatpush2.msra.mxu0 0.0
    %1710 = vmatprep.subr.mxu0 0.0
    %1711 = vmatpush2.msra.mxu0 0.0
    %1712 = vmatprep.subr.mxu0 0.0
    %1713 = vmatpush2.msra.mxu0 0.0
    %1714 = vmatprep.mubr.f32.mxu0 0.0
    %1715 = vmatmul.mubr.f32.gmra.mxu0 %v1626
    %v1716 = vpop.f32.mrf.mxu0
    %v1717 = vadd.f32 %v1648, %v1716
    %v1718 = vpop.f32.mrf.mxu0
    %1719 = vdwg.mxu0
    %1720 = vst [vmem:[#allocation3] sm:$0x3] %v1717
    // Predicated region
    $region34: #{lenet5_mcdropout_forward.5} parent=1 // pred_check
      _
    $region35: #{lenet5_mcdropout_forward.5} parent=1 // pred_check_branch
      %1722 = sbr.rel (0) target = $region37
    $region36: #{lenet5_mcdropout_forward.5} parent=1 // pred_region
      %s1724 = ssub.s32 32, 32
      %1725 = vsyncadd [#allocation4], %s1724
      %s1727 = sshll.u32 [#allocation3], 4
      %s1728 = int_to_ptr.vmem [resolvable:$true] %s1727
      %1730 = dma.vmem_to_hbm [thread:$0]  %s1728, 32, %s8, [#allocation4]
    $region37: #{lenet5_mcdropout_forward.5} parent=1 // pred_fallthru
      _
    // Predicated region
    $region38: #{lenet5_mcdropout_forward.5} parent=1 // pred_check
      _
    $region39: #{lenet5_mcdropout_forward.5} parent=1 // pred_check_branch
      %1732 = sbr.rel (0) target = $region41
    $region40: #{lenet5_mcdropout_forward.5} parent=1 // pred_region
      %1733 = dma.done [#allocation4], 32
    $region41: #{lenet5_mcdropout_forward.5} parent=1 // pred_fallthru
      _
    %1734 = vsyncpa [#allocation4], 1

</llo_original>
